<compile_context>
chip_gen: v6e
topology: v6e:2x2x1
jax: 0.10.0
libtpu: 0.0.40
codegen_flags: <defaults>
</compile_context>

<pallas_src>
import functools
import math

import jax
import jax.numpy as jnp
from jax.experimental import pallas as pl
from jax.experimental.pallas import tpu as pltpu


# ------------------------------ Fused kernel --------------------------------

def _t5_mhsa_kernel(x_ref, wqkv_ref, bqkv_ref, wout_ref, bout_ref, bias_ref,
                    o_ref, qkv_scr, oh_scr, *, num_heads, query_dim, value_dim):
    H, Qd, Vd = num_heads, query_dim, value_dim
    Bt, L, E = x_ref.shape
    R = Bt * L
    E_pad = o_ref.shape[-1]

    # Single fused q/k/v projection: columns are [all-q heads | all-k heads |
    # all-v heads]; the q half already carries the 1/sqrt(Qd) scale.
    xf = x_ref[...].reshape(R, E).astype(jnp.bfloat16)
    qkv = jnp.dot(xf, wqkv_ref[...], preferred_element_type=jnp.float32) + bqkv_ref[...]
    qkv_scr[...] = qkv.astype(jnp.bfloat16)          # bf16 MXU operands from here on

    q_off = 0
    k_off = H * Qd
    v_off = 2 * H * Qd

    # Static loop over heads (H known at trace time).  Each iteration reads its
    # q/k/v column window from the VMEM scratch and writes its output straight
    # into oh_scr, so nothing per-head stays live across iterations.
    for h in range(H):
        q_h = qkv_scr[:, q_off + h * Qd: q_off + (h + 1) * Qd].reshape(Bt, L, Qd)
        k_h = qkv_scr[:, k_off + h * Qd: k_off + (h + 1) * Qd].reshape(Bt, L, Qd)
        v_h = qkv_scr[:, v_off + h * Vd: v_off + (h + 1) * Vd].reshape(Bt, L, Vd)

        # QK^T batched over the batch block; contraction on the last dims.
        s = jnp.einsum("bqd,bkd->bqk", q_h, k_h,
                       preferred_element_type=jnp.float32)          # (Bt, L, L) f32
        s = s + bias_ref[h].astype(jnp.float32)      # bf16 T5 bias promoted on the add

        m = jnp.max(s, axis=-1, keepdims=True)
        p = jnp.exp(s - m)                           # f32 exp (v5e-safe)
        denom = jnp.sum(p, axis=-1, keepdims=True)

        pv = jnp.einsum("bqk,bkd->bqd", p.astype(jnp.bfloat16), v_h,
                        preferred_element_type=jnp.float32)          # (Bt, L, Vd) f32
        # Normalize AFTER the PV matmul, on the f32 accumulator (EUP reciprocal).
        pv = pv * pl.reciprocal(denom, approx=True)

        oh_scr[:, h * Vd:(h + 1) * Vd] = pv.reshape(R, Vd).astype(jnp.bfloat16)

    # Output projection to a 128-lane padded slab -> full (unmasked) store.
    out = jnp.dot(oh_scr[...], wout_ref[...],
                  preferred_element_type=jnp.float32) + bout_ref[...]
    o_ref[...] = out.reshape(Bt, L, E_pad)


# ------------------------------ Wrapper --------------------------------------

def _vmem_limit_bytes(default=32 * 1024 * 1024):
    try:
        cap = pltpu.get_tpu_info().vmem_capacity_bytes
        return min(int(cap * 3 // 4), 96 * 1024 * 1024)
    except Exception:
        return default


def _pick_block_b(B, L, max_rows=256):
    divisors = [d for d in range(1, B + 1) if B % d == 0 and d * L <= max_rows]
    if not divisors:
        return 1
    multi_step = [d for d in divisors if B // d >= 2]   # keep >=2 grid steps (megacore)
    return max(multi_step) if multi_step else max(divisors)


def t5_mhsa_forward(x, kparams, rel_bias, *, num_heads, query_dim, value_dim,
                    block_b=None, single_buffer_weights=True):
    """x: (B, L, E) f32; kparams from prepare_kernel_params; rel_bias: (H, L, L) f32."""
    B, L, E = x.shape
    H, Qd, Vd = num_heads, query_dim, value_dim
    D_qkv = 2 * H * Qd + H * Vd
    E_pad = kparams["w_out"].shape[1]

    if block_b is None:
        block_b = _pick_block_b(B, L)
    assert B % block_b == 0, "block_b must divide the batch size"
    nb = B // block_b

    rel_bias_bf16 = rel_bias.astype(jnp.bfloat16)
    kern = functools.partial(_t5_mhsa_kernel, num_heads=H,
                             query_dim=Qd, value_dim=Vd)

    def run(single_buffer):
        def const_spec(shape):
            zeros = (0,) * len(shape)
            kwargs = {}
            if single_buffer:
                # Constant-index operands: no point double-buffering them.
                kwargs["pipeline_mode"] = pl.Buffered(1)
            return pl.BlockSpec(shape, lambda b: zeros, **kwargs)

        return pl.pallas_call(
            kern,
            out_shape=jax.ShapeDtypeStruct((B, L, E_pad), jnp.float32),
            grid=(nb,),
            in_specs=[
                pl.BlockSpec((block_b, L, E), lambda b: (b, 0, 0)),   # x (batch block)
                const_spec((E, D_qkv)),                               # fused W_qkv
                const_spec((1, D_qkv)),                               # fused b_qkv
                const_spec((H * Vd, E_pad)),                          # W_out (padded)
                const_spec((1, E_pad)),                               # b_out (padded)
                const_spec((H, L, L)),                                # T5 bias (bf16)
            ],
            out_specs=pl.BlockSpec((block_b, L, E_pad), lambda b: (b, 0, 0)),
            scratch_shapes=[
                pltpu.VMEM((block_b * L, D_qkv), jnp.bfloat16),       # qkv projection
                pltpu.VMEM((block_b * L, H * Vd), jnp.bfloat16),      # per-head outputs
            ],
            compiler_params=pltpu.CompilerParams(
                dimension_semantics=("parallel",),        # shard batch blocks over TCs
                vmem_limit_bytes=_vmem_limit_bytes(),     # generation-aware limit
            ),
        )(x, kparams["w_qkv"], kparams["b_qkv"], kparams["w_out"],
          kparams["b_out"], rel_bias_bf16)

    out = None
    if single_buffer_weights:
        try:
            out = jax.block_until_ready(run(True))
        except Exception:
            out = None       # pl.Buffered(1) unsupported here -> default buffering
    if out is None:
        out = run(False)
    return out[..., :E]


# -------------------- Parameter prep (one-time, outside kernel) --------------

def prepare_kernel_params(raw, *, num_heads, query_dim, value_dim, lane=128):
    H, Qd, Vd = num_heads, query_dim, value_dim
    E = raw["w_qk"].shape[0]

    # Column permutation: torch layout [h, (q|k), d] -> [all-q heads | all-k heads].
    col = jnp.arange(2 * H * Qd).reshape(H, 2, Qd)
    perm = jnp.concatenate([col[:, 0, :].reshape(-1), col[:, 1, :].reshape(-1)])
    w_qk = raw["w_qk"][:, perm]
    b_qk = raw["b_qk"][perm]

    # Fold the 1/sqrt(Qd) attention scale into the q half (zero runtime cost).
    scale = 1.0 / math.sqrt(Qd)
    qscale = jnp.concatenate([jnp.full((H * Qd,), scale, jnp.float32),
                              jnp.ones((H * Qd,), jnp.float32)])
    w_qk = w_qk * qscale[None, :]
    b_qk = b_qk * qscale

    # Fuse q/k and v projections into a single matmul operand.
    w_qkv = jnp.concatenate([w_qk, raw["w_v"]], axis=1)          # (E, 2HQd + HVd)
    b_qkv = jnp.concatenate([b_qk, raw["b_v"]])

    # Zero-pad the output projection to a >=128-lane slab (wrapper slices back).
    E_pad = ((E + lane - 1) // lane) * lane
    w_out = jnp.zeros((H * Vd, E_pad), jnp.float32).at[:, :E].set(raw["w_out"])
    b_out = jnp.zeros((E_pad,), jnp.float32).at[:E].set(raw["b_out"])

    return {
        "w_qkv": w_qkv.astype(jnp.bfloat16),   # bf16 MXU operands, f32 accumulation
        "b_qkv": b_qkv.reshape(1, -1),         # biases stay f32 (VPU adds)
        "w_out": w_out.astype(jnp.bfloat16),
        "b_out": b_out.reshape(1, -1),
    }


def t5_relative_bias(bias_table, L, bins, max_distance):
    """Dense (H, L, L) T5 relative-position bias (causal=False), faithful to the
    reference's `indices` buffer and forward-time gather (data-independent of x)."""
    n = jnp.arange(max_distance + 1)
    m = bins // 2
    log_part = (jnp.log(jnp.clip(n, m, None).astype(jnp.float32) - m + 1.0)
                * (bins - 1 - m) / math.log(max_distance - m + 1))
    indices = jnp.clip(n, None, m) + log_part.astype(jnp.int32)   # trunc == .long()

    pos = jnp.arange(L)
    shifts = pos[:, None] - pos[None, :]
    bins_idx = indices[jnp.clip(jnp.abs(shifts), None, max_distance)] \
        + (bins - 1) * (shifts < 0)
    return jnp.transpose(bias_table[bins_idx], (2, 0, 1))          # (H, L, L)


# ----------------------------- Pure-JAX reference ----------------------------

def t5_mhsa_reference(x, raw, rel_bias, *, num_heads, query_dim, value_dim):
    B, L, E = x.shape
    H, Qd, Vd = num_heads, query_dim, value_dim
    qk = x @ raw["w_qk"] + raw["b_qk"]
    qk = jnp.transpose(qk.reshape(B, L, H, 2 * Qd), (0, 2, 1, 3))
    q, k = qk[..., :Qd], qk[..., Qd:]
    v = jnp.transpose((x @ raw["w_v"] + raw["b_v"]).reshape(B, L, H, Vd), (0, 2, 1, 3))
    s = jnp.einsum("bhld,bhmd->bhlm", q, k) / math.sqrt(Qd) + rel_bias[None]
    p = jax.nn.softmax(s, axis=-1)
    o = jnp.einsum("bhlm,bhmd->bhld", p, v)
    o = jnp.transpose(o, (0, 2, 1, 3)).reshape(B, L, H * Vd)
    return o @ raw["w_out"] + raw["b_out"]


# -------------------------------- Param init ---------------------------------

def make_params(key, E, Qd, Vd, H, bins):
    ks = jax.random.split(key, 7)
    return {
        "w_qk": jax.random.normal(ks[0], (E, 2 * Qd * H), jnp.float32) / math.sqrt(E),
        "b_qk": 0.01 * jax.random.normal(ks[1], (2 * Qd * H,), jnp.float32),
        "w_v": jax.random.normal(ks[2], (E, Vd * H), jnp.float32) / math.sqrt(E),
        "b_v": 0.01 * jax.random.normal(ks[3], (Vd * H,), jnp.float32),
        "w_out": jax.random.normal(ks[4], (Vd * H, E), jnp.float32) / math.sqrt(Vd * H),
        "b_out": 0.01 * jax.random.normal(ks[5], (E,), jnp.float32),
        # T5 bias table (2*bins-1, H); the module inits it to zeros — use random
        # values here so the bias path is actually exercised.
        "rel_bias_table": 0.5 * jax.random.normal(ks[6], (2 * bins - 1, H), jnp.float32),
    }


# ----------------------------------- Main ------------------------------------

if __name__ == "__main__":
    B, L = 4, 8
    embedding_dim, query_dim, value_dim, num_heads = 32, 16, 16, 4
    bins, max_distance = 8, 32

    key = jax.random.PRNGKey(0)
    kx, kp = jax.random.split(key)
    x = jax.random.normal(kx, (B, L, embedding_dim), jnp.float32)
    raw = make_params(kp, embedding_dim, query_dim, value_dim, num_heads, bins)

    rel_bias = t5_relative_bias(raw["rel_bias_table"], L, bins, max_distance)
    kparams = prepare_kernel_params(raw, num_heads=num_heads,
                                    query_dim=query_dim, value_dim=value_dim)

    out = t5_mhsa_forward(x, kparams, rel_bias, num_heads=num_heads,
                          query_dim=query_dim, value_dim=value_dim)
    out = jax.block_until_ready(out)
    assert out.shape == (B, L, embedding_dim)

    ref = t5_mhsa_reference(x, raw, rel_bias, num_heads=num_heads,
                            query_dim=query_dim, value_dim=value_dim)
    max_err = float(jnp.max(jnp.abs(out - ref)))
    # Tolerance covers bf16 MXU operands / bf16 bias (f32 accumulation) vs the
    # f32 reference; post-PV f32 normalization keeps this well inside 1e-1.
    assert max_err < 1e-1, f"mismatch vs reference: max_err={max_err}"

    print("KERNEL_OK")
</pallas_src>

<mosaic_0001>
module attributes {stable_mosaic.version = 11 : i64} {
  func.func @_t5_mhsa_kernel(%arg0: i32, %arg1: memref<2x8x32xf32, #tpu.memory_space<vmem>>, %arg2: memref<32x192xbf16, #tpu.memory_space<vmem>>, %arg3: memref<1x192xf32, #tpu.memory_space<vmem>>, %arg4: memref<64x128xbf16, #tpu.memory_space<vmem>>, %arg5: memref<1x128xf32, #tpu.memory_space<vmem>>, %arg6: memref<4x8x8xbf16, #tpu.memory_space<vmem>>, %arg7: memref<2x8x128xf32, #tpu.memory_space<vmem>>, %arg8: memref<16x192xbf16, #tpu.memory_space<vmem>>, %arg9: memref<16x64xbf16, #tpu.memory_space<vmem>>) attributes {dimension_semantics = [#tpu.dimension_semantics<parallel>], iteration_bounds = array<i64: 2>, scalar_prefetch = 0 : i64, scratch_operands = 2 : i64, tpu.core_type = #tpu.core_type<tc>, window_params = [{transform_indices = @transform_0, window_bounds = array<i64: 2, 8, 32>}, {pipeline_mode = #tpu.pipeline_mode<synchronous>, transform_indices = @transform_1, window_bounds = array<i64: 32, 192>}, {pipeline_mode = #tpu.pipeline_mode<synchronous>, transform_indices = @transform_2, window_bounds = array<i64: 1, 192>}, {pipeline_mode = #tpu.pipeline_mode<synchronous>, transform_indices = @transform_3, window_bounds = array<i64: 64, 128>}, {pipeline_mode = #tpu.pipeline_mode<synchronous>, transform_indices = @transform_4, window_bounds = array<i64: 1, 128>}, {pipeline_mode = #tpu.pipeline_mode<synchronous>, transform_indices = @transform_5, window_bounds = array<i64: 4, 8, 8>}, {transform_indices = @transform_6, window_bounds = array<i64: 2, 8, 128>}]} {
    %c0 = arith.constant 0 : index
    %c0_0 = arith.constant 0 : index
    %c0_1 = arith.constant 0 : index
    %0 = vector.load %arg1[%c0, %c0_0, %c0_1] : memref<2x8x32xf32, #tpu.memory_space<vmem>>, vector<2x8x32xf32>
    %1 = vector.shape_cast %0 : vector<2x8x32xf32> to vector<16x32xf32>
    %2 = arith.truncf %1 : vector<16x32xf32> to vector<16x32xbf16>
    %c0_2 = arith.constant 0 : index
    %c0_3 = arith.constant 0 : index
    %3 = vector.load %arg2[%c0_2, %c0_3] : memref<32x192xbf16, #tpu.memory_space<vmem>>, vector<32x192xbf16>
    %cst = arith.constant dense<0.000000e+00> : vector<16x192xf32>
    %4 = tpu.matmul %2, %3, %cst {dimension_numbers = #tpu.dot_dimension_numbers<[1], [0], [0], [1], [0, 0, 1, 1], [], []>} : vector<16x32xbf16>, vector<32x192xbf16>, vector<16x192xf32> -> vector<16x192xf32>
    %c0_4 = arith.constant 0 : index
    %c0_5 = arith.constant 0 : index
    %5 = vector.load %arg3[%c0_4, %c0_5] : memref<1x192xf32, #tpu.memory_space<vmem>>, vector<1x192xf32>
    %6 = vector.broadcast %5 : vector<1x192xf32> to vector<16x192xf32>
    %7 = arith.addf %4, %6 : vector<16x192xf32>
    %8 = arith.truncf %7 : vector<16x192xf32> to vector<16x192xbf16>
    %c0_6 = arith.constant 0 : index
    %c0_7 = arith.constant 0 : index
    %9 = vector.load %arg8[%c0_6, %c0_7] : memref<16x192xbf16, #tpu.memory_space<vmem>>, vector<16x192xbf16>
    tpu.vector_store %arg8[%c0_6, %c0_7], %8 {strides = array<i32>} : memref<16x192xbf16, #tpu.memory_space<vmem>>, vector<16x192xbf16>,
    %c0_8 = arith.constant 0 : index
    %c0_9 = arith.constant 0 : index
    %10 = vector.load %arg8[%c0_8, %c0_9] : memref<16x192xbf16, #tpu.memory_space<vmem>>, vector<16x16xbf16>
    %11 = vector.shape_cast %10 : vector<16x16xbf16> to vector<2x8x16xbf16>
    %c0_10 = arith.constant 0 : index
    %c64 = arith.constant 64 : index
    %12 = vector.load %arg8[%c0_10, %c64] : memref<16x192xbf16, #tpu.memory_space<vmem>>, vector<16x16xbf16>
    %13 = vector.shape_cast %12 : vector<16x16xbf16> to vector<2x8x16xbf16>
    %c0_11 = arith.constant 0 : index
    %c128 = arith.constant 128 : index
    %14 = vector.load %arg8[%c0_11, %c128] : memref<16x192xbf16, #tpu.memory_space<vmem>>, vector<16x16xbf16>
    %15 = vector.shape_cast %14 : vector<16x16xbf16> to vector<2x8x16xbf16>
    "tpu.trace_start"() <{level = 10 : i32, message = "bqd,bkd->bqk"}> : () -> ()
    %cst_12 = arith.constant dense<0.000000e+00> : vector<2x8x8xf32>
    %16 = tpu.matmul %11, %13, %cst_12 {dimension_numbers = #tpu.dot_dimension_numbers<[2], [2], [1], [1], [0, 0, 0, 1, 1, 1], [0], [0]>} : vector<2x8x16xbf16>, vector<2x8x16xbf16>, vector<2x8x8xf32> -> vector<2x8x8xf32>
    "tpu.trace_stop"() : () -> ()
    %c0_13 = arith.constant 0 : index
    %c0_14 = arith.constant 0 : index
    %c0_15 = arith.constant 0 : index
    %17 = vector.load %arg6[%c0_13, %c0_14, %c0_15] : memref<4x8x8xbf16, #tpu.memory_space<vmem>>, vector<1x8x8xbf16>
    %18 = vector.shape_cast %17 : vector<1x8x8xbf16> to vector<8x8xbf16>
    %19 = arith.extf %18 : vector<8x8xbf16> to vector<8x8xf32>
    %20 = vector.shape_cast %19 : vector<8x8xf32> to vector<1x8x8xf32>
    %21 = vector.broadcast %20 : vector<1x8x8xf32> to vector<2x8x8xf32>
    %22 = arith.addf %16, %21 : vector<2x8x8xf32>
    %cst_16 = arith.constant dense<0xFF800000> : vector<2x8xf32>
    %23 = vector.multi_reduction <maximumf>, %22, %cst_16 [2] : vector<2x8x8xf32> to vector<2x8xf32>
    %24 = vector.shape_cast %23 : vector<2x8xf32> to vector<2x8x1xf32>
    %25 = vector.broadcast %24 : vector<2x8x1xf32> to vector<2x8x8xf32>
    %26 = arith.subf %22, %25 : vector<2x8x8xf32>
    %27 = math.exp %26 : vector<2x8x8xf32>
    %cst_17 = arith.constant dense<0.000000e+00> : vector<2x8xf32>
    %28 = vector.multi_reduction <add>, %27, %cst_17 [2] : vector<2x8x8xf32> to vector<2x8xf32>
    %29 = vector.shape_cast %28 : vector<2x8xf32> to vector<2x8x1xf32>
    %30 = arith.truncf %27 : vector<2x8x8xf32> to vector<2x8x8xbf16>
    "tpu.trace_start"() <{level = 10 : i32, message = "bqk,bkd->bqd"}> : () -> ()
    %cst_18 = arith.constant dense<0.000000e+00> : vector<2x8x16xf32>
    %31 = tpu.matmul %30, %15, %cst_18 {dimension_numbers = #tpu.dot_dimension_numbers<[2], [1], [1], [2], [0, 0, 0, 1, 1, 2], [0], [0]>} : vector<2x8x8xbf16>, vector<2x8x16xbf16>, vector<2x8x16xf32> -> vector<2x8x16xf32>
    "tpu.trace_stop"() : () -> ()
    %32 = tpu.reciprocal %29 {approx = true} : vector<2x8x1xf32> -> vector<2x8x1xf32>
    %33 = vector.broadcast %32 : vector<2x8x1xf32> to vector<2x8x16xf32>
    %34 = arith.mulf %31, %33 : vector<2x8x16xf32>
    %35 = vector.shape_cast %34 : vector<2x8x16xf32> to vector<16x16xf32>
    %36 = arith.truncf %35 : vector<16x16xf32> to vector<16x16xbf16>
    %c0_19 = arith.constant 0 : index
    %c0_20 = arith.constant 0 : index
    %37 = vector.load %arg9[%c0_19, %c0_20] : memref<16x64xbf16, #tpu.memory_space<vmem>>, vector<16x16xbf16>
    tpu.vector_store %arg9[%c0_19, %c0_20], %36 {strides = array<i32>} : memref<16x64xbf16, #tpu.memory_space<vmem>>, vector<16x16xbf16>,
    %c0_21 = arith.constant 0 : index
    %c16 = arith.constant 16 : index
    %38 = vector.load %arg8[%c0_21, %c16] : memref<16x192xbf16, #tpu.memory_space<vmem>>, vector<16x16xbf16>
    %39 = vector.shape_cast %38 : vector<16x16xbf16> to vector<2x8x16xbf16>
    %c0_22 = arith.constant 0 : index
    %c80 = arith.constant 80 : index
    %40 = vector.load %arg8[%c0_22, %c80] : memref<16x192xbf16, #tpu.memory_space<vmem>>, vector<16x16xbf16>
    %41 = vector.shape_cast %40 : vector<16x16xbf16> to vector<2x8x16xbf16>
    %c0_23 = arith.constant 0 : index
    %c144 = arith.constant 144 : index
    %42 = vector.load %arg8[%c0_23, %c144] : memref<16x192xbf16, #tpu.memory_space<vmem>>, vector<16x16xbf16>
    %43 = vector.shape_cast %42 : vector<16x16xbf16> to vector<2x8x16xbf16>
    "tpu.trace_start"() <{level = 10 : i32, message = "bqd,bkd->bqk"}> : () -> ()
    %cst_24 = arith.constant dense<0.000000e+00> : vector<2x8x8xf32>
    %44 = tpu.matmul %39, %41, %cst_24 {dimension_numbers = #tpu.dot_dimension_numbers<[2], [2], [1], [1], [0, 0, 0, 1, 1, 1], [0], [0]>} : vector<2x8x16xbf16>, vector<2x8x16xbf16>, vector<2x8x8xf32> -> vector<2x8x8xf32>
    "tpu.trace_stop"() : () -> ()
    %c1 = arith.constant 1 : index
    %c0_25 = arith.constant 0 : index
    %c0_26 = arith.constant 0 : index
    %45 = vector.load %arg6[%c1, %c0_25, %c0_26] : memref<4x8x8xbf16, #tpu.memory_space<vmem>>, vector<1x8x8xbf16>
    %46 = vector.shape_cast %45 : vector<1x8x8xbf16> to vector<8x8xbf16>
    %47 = arith.extf %46 : vector<8x8xbf16> to vector<8x8xf32>
    %48 = vector.shape_cast %47 : vector<8x8xf32> to vector<1x8x8xf32>
    %49 = vector.broadcast %48 : vector<1x8x8xf32> to vector<2x8x8xf32>
    %50 = arith.addf %44, %49 : vector<2x8x8xf32>
    %cst_27 = arith.constant dense<0xFF800000> : vector<2x8xf32>
    %51 = vector.multi_reduction <maximumf>, %50, %cst_27 [2] : vector<2x8x8xf32> to vector<2x8xf32>
    %52 = vector.shape_cast %51 : vector<2x8xf32> to vector<2x8x1xf32>
    %53 = vector.broadcast %52 : vector<2x8x1xf32> to vector<2x8x8xf32>
    %54 = arith.subf %50, %53 : vector<2x8x8xf32>
    %55 = math.exp %54 : vector<2x8x8xf32>
    %cst_28 = arith.constant dense<0.000000e+00> : vector<2x8xf32>
    %56 = vector.multi_reduction <add>, %55, %cst_28 [2] : vector<2x8x8xf32> to vector<2x8xf32>
    %57 = vector.shape_cast %56 : vector<2x8xf32> to vector<2x8x1xf32>
    %58 = arith.truncf %55 : vector<2x8x8xf32> to vector<2x8x8xbf16>
    "tpu.trace_start"() <{level = 10 : i32, message = "bqk,bkd->bqd"}> : () -> ()
    %cst_29 = arith.constant dense<0.000000e+00> : vector<2x8x16xf32>
    %59 = tpu.matmul %58, %43, %cst_29 {dimension_numbers = #tpu.dot_dimension_numbers<[2], [1], [1], [2], [0, 0, 0, 1, 1, 2], [0], [0]>} : vector<2x8x8xbf16>, vector<2x8x16xbf16>, vector<2x8x16xf32> -> vector<2x8x16xf32>
    "tpu.trace_stop"() : () -> ()
    %60 = tpu.reciprocal %57 {approx = true} : vector<2x8x1xf32> -> vector<2x8x1xf32>
    %61 = vector.broadcast %60 : vector<2x8x1xf32> to vector<2x8x16xf32>
    %62 = arith.mulf %59, %61 : vector<2x8x16xf32>
    %63 = vector.shape_cast %62 : vector<2x8x16xf32> to vector<16x16xf32>
    %64 = arith.truncf %63 : vector<16x16xf32> to vector<16x16xbf16>
    %c0_30 = arith.constant 0 : index
    %c16_31 = arith.constant 16 : index
    %65 = vector.load %arg9[%c0_30, %c16_31] : memref<16x64xbf16, #tpu.memory_space<vmem>>, vector<16x16xbf16>
    tpu.vector_store %arg9[%c0_30, %c16_31], %64 {strides = array<i32>} : memref<16x64xbf16, #tpu.memory_space<vmem>>, vector<16x16xbf16>,
    %c0_32 = arith.constant 0 : index
    %c32 = arith.constant 32 : index
    %66 = vector.load %arg8[%c0_32, %c32] : memref<16x192xbf16, #tpu.memory_space<vmem>>, vector<16x16xbf16>
    %67 = vector.shape_cast %66 : vector<16x16xbf16> to vector<2x8x16xbf16>
    %c0_33 = arith.constant 0 : index
    %c96 = arith.constant 96 : index
    %68 = vector.load %arg8[%c0_33, %c96] : memref<16x192xbf16, #tpu.memory_space<vmem>>, vector<16x16xbf16>
    %69 = vector.shape_cast %68 : vector<16x16xbf16> to vector<2x8x16xbf16>
    %c0_34 = arith.constant 0 : index
    %c160 = arith.constant 160 : index
    %70 = vector.load %arg8[%c0_34, %c160] : memref<16x192xbf16, #tpu.memory_space<vmem>>, vector<16x16xbf16>
    %71 = vector.shape_cast %70 : vector<16x16xbf16> to vector<2x8x16xbf16>
    "tpu.trace_start"() <{level = 10 : i32, message = "bqd,bkd->bqk"}> : () -> ()
    %cst_35 = arith.constant dense<0.000000e+00> : vector<2x8x8xf32>
    %72 = tpu.matmul %67, %69, %cst_35 {dimension_numbers = #tpu.dot_dimension_numbers<[2], [2], [1], [1], [0, 0, 0, 1, 1, 1], [0], [0]>} : vector<2x8x16xbf16>, vector<2x8x16xbf16>, vector<2x8x8xf32> -> vector<2x8x8xf32>
    "tpu.trace_stop"() : () -> ()
    %c2 = arith.constant 2 : index
    %c0_36 = arith.constant 0 : index
    %c0_37 = arith.constant 0 : index
    %73 = vector.load %arg6[%c2, %c0_36, %c0_37] : memref<4x8x8xbf16, #tpu.memory_space<vmem>>, vector<1x8x8xbf16>
    %74 = vector.shape_cast %73 : vector<1x8x8xbf16> to vector<8x8xbf16>
    %75 = arith.extf %74 : vector<8x8xbf16> to vector<8x8xf32>
    %76 = vector.shape_cast %75 : vector<8x8xf32> to vector<1x8x8xf32>
    %77 = vector.broadcast %76 : vector<1x8x8xf32> to vector<2x8x8xf32>
    %78 = arith.addf %72, %77 : vector<2x8x8xf32>
    %cst_38 = arith.constant dense<0xFF800000> : vector<2x8xf32>
    %79 = vector.multi_reduction <maximumf>, %78, %cst_38 [2] : vector<2x8x8xf32> to vector<2x8xf32>
    %80 = vector.shape_cast %79 : vector<2x8xf32> to vector<2x8x1xf32>
    %81 = vector.broadcast %80 : vector<2x8x1xf32> to vector<2x8x8xf32>
    %82 = arith.subf %78, %81 : vector<2x8x8xf32>
    %83 = math.exp %82 : vector<2x8x8xf32>
    %cst_39 = arith.constant dense<0.000000e+00> : vector<2x8xf32>
    %84 = vector.multi_reduction <add>, %83, %cst_39 [2] : vector<2x8x8xf32> to vector<2x8xf32>
    %85 = vector.shape_cast %84 : vector<2x8xf32> to vector<2x8x1xf32>
    %86 = arith.truncf %83 : vector<2x8x8xf32> to vector<2x8x8xbf16>
    "tpu.trace_start"() <{level = 10 : i32, message = "bqk,bkd->bqd"}> : () -> ()
    %cst_40 = arith.constant dense<0.000000e+00> : vector<2x8x16xf32>
    %87 = tpu.matmul %86, %71, %cst_40 {dimension_numbers = #tpu.dot_dimension_numbers<[2], [1], [1], [2], [0, 0, 0, 1, 1, 2], [0], [0]>} : vector<2x8x8xbf16>, vector<2x8x16xbf16>, vector<2x8x16xf32> -> vector<2x8x16xf32>
    "tpu.trace_stop"() : () -> ()
    %88 = tpu.reciprocal %85 {approx = true} : vector<2x8x1xf32> -> vector<2x8x1xf32>
    %89 = vector.broadcast %88 : vector<2x8x1xf32> to vector<2x8x16xf32>
    %90 = arith.mulf %87, %89 : vector<2x8x16xf32>
    %91 = vector.shape_cast %90 : vector<2x8x16xf32> to vector<16x16xf32>
    %92 = arith.truncf %91 : vector<16x16xf32> to vector<16x16xbf16>
    %c0_41 = arith.constant 0 : index
    %c32_42 = arith.constant 32 : index
    %93 = vector.load %arg9[%c0_41, %c32_42] : memref<16x64xbf16, #tpu.memory_space<vmem>>, vector<16x16xbf16>
    tpu.vector_store %arg9[%c0_41, %c32_42], %92 {strides = array<i32>} : memref<16x64xbf16, #tpu.memory_space<vmem>>, vector<16x16xbf16>,
    %c0_43 = arith.constant 0 : index
    %c48 = arith.constant 48 : index
    %94 = vector.load %arg8[%c0_43, %c48] : memref<16x192xbf16, #tpu.memory_space<vmem>>, vector<16x16xbf16>
    %95 = vector.shape_cast %94 : vector<16x16xbf16> to vector<2x8x16xbf16>
    %c0_44 = arith.constant 0 : index
    %c112 = arith.constant 112 : index
    %96 = vector.load %arg8[%c0_44, %c112] : memref<16x192xbf16, #tpu.memory_space<vmem>>, vector<16x16xbf16>
    %97 = vector.shape_cast %96 : vector<16x16xbf16> to vector<2x8x16xbf16>
    %c0_45 = arith.constant 0 : index
    %c176 = arith.constant 176 : index
    %98 = vector.load %arg8[%c0_45, %c176] : memref<16x192xbf16, #tpu.memory_space<vmem>>, vector<16x16xbf16>
    %99 = vector.shape_cast %98 : vector<16x16xbf16> to vector<2x8x16xbf16>
    "tpu.trace_start"() <{level = 10 : i32, message = "bqd,bkd->bqk"}> : () -> ()
    %cst_46 = arith.constant dense<0.000000e+00> : vector<2x8x8xf32>
    %100 = tpu.matmul %95, %97, %cst_46 {dimension_numbers = #tpu.dot_dimension_numbers<[2], [2], [1], [1], [0, 0, 0, 1, 1, 1], [0], [0]>} : vector<2x8x16xbf16>, vector<2x8x16xbf16>, vector<2x8x8xf32> -> vector<2x8x8xf32>
    "tpu.trace_stop"() : () -> ()
    %c3 = arith.constant 3 : index
    %c0_47 = arith.constant 0 : index
    %c0_48 = arith.constant 0 : index
    %101 = vector.load %arg6[%c3, %c0_47, %c0_48] : memref<4x8x8xbf16, #tpu.memory_space<vmem>>, vector<1x8x8xbf16>
    %102 = vector.shape_cast %101 : vector<1x8x8xbf16> to vector<8x8xbf16>
    %103 = arith.extf %102 : vector<8x8xbf16> to vector<8x8xf32>
    %104 = vector.shape_cast %103 : vector<8x8xf32> to vector<1x8x8xf32>
    %105 = vector.broadcast %104 : vector<1x8x8xf32> to vector<2x8x8xf32>
    %106 = arith.addf %100, %105 : vector<2x8x8xf32>
    %cst_49 = arith.constant dense<0xFF800000> : vector<2x8xf32>
    %107 = vector.multi_reduction <maximumf>, %106, %cst_49 [2] : vector<2x8x8xf32> to vector<2x8xf32>
    %108 = vector.shape_cast %107 : vector<2x8xf32> to vector<2x8x1xf32>
    %109 = vector.broadcast %108 : vector<2x8x1xf32> to vector<2x8x8xf32>
    %110 = arith.subf %106, %109 : vector<2x8x8xf32>
    %111 = math.exp %110 : vector<2x8x8xf32>
    %cst_50 = arith.constant dense<0.000000e+00> : vector<2x8xf32>
    %112 = vector.multi_reduction <add>, %111, %cst_50 [2] : vector<2x8x8xf32> to vector<2x8xf32>
    %113 = vector.shape_cast %112 : vector<2x8xf32> to vector<2x8x1xf32>
    %114 = arith.truncf %111 : vector<2x8x8xf32> to vector<2x8x8xbf16>
    "tpu.trace_start"() <{level = 10 : i32, message = "bqk,bkd->bqd"}> : () -> ()
    %cst_51 = arith.constant dense<0.000000e+00> : vector<2x8x16xf32>
    %115 = tpu.matmul %114, %99, %cst_51 {dimension_numbers = #tpu.dot_dimension_numbers<[2], [1], [1], [2], [0, 0, 0, 1, 1, 2], [0], [0]>} : vector<2x8x8xbf16>, vector<2x8x16xbf16>, vector<2x8x16xf32> -> vector<2x8x16xf32>
    "tpu.trace_stop"() : () -> ()
    %116 = tpu.reciprocal %113 {approx = true} : vector<2x8x1xf32> -> vector<2x8x1xf32>
    %117 = vector.broadcast %116 : vector<2x8x1xf32> to vector<2x8x16xf32>
    %118 = arith.mulf %115, %117 : vector<2x8x16xf32>
    %119 = vector.shape_cast %118 : vector<2x8x16xf32> to vector<16x16xf32>
    %120 = arith.truncf %119 : vector<16x16xf32> to vector<16x16xbf16>
    %c0_52 = arith.constant 0 : index
    %c48_53 = arith.constant 48 : index
    %121 = vector.load %arg9[%c0_52, %c48_53] : memref<16x64xbf16, #tpu.memory_space<vmem>>, vector<16x16xbf16>
    tpu.vector_store %arg9[%c0_52, %c48_53], %120 {strides = array<i32>} : memref<16x64xbf16, #tpu.memory_space<vmem>>, vector<16x16xbf16>,
    %c0_54 = arith.constant 0 : index
    %c0_55 = arith.constant 0 : index
    %122 = vector.load %arg9[%c0_54, %c0_55] : memref<16x64xbf16, #tpu.memory_space<vmem>>, vector<16x64xbf16>
    %c0_56 = arith.constant 0 : index
    %c0_57 = arith.constant 0 : index
    %123 = vector.load %arg4[%c0_56, %c0_57] : memref<64x128xbf16, #tpu.memory_space<vmem>>, vector<64x128xbf16>
    %cst_58 = arith.constant dense<0.000000e+00> : vector<16x128xf32>
    %124 = tpu.matmul %122, %123, %cst_58 {dimension_numbers = #tpu.dot_dimension_numbers<[1], [0], [0], [1], [0, 0, 1, 1], [], []>} : vector<16x64xbf16>, vector<64x128xbf16>, vector<16x128xf32> -> vector<16x128xf32>
    %c0_59 = arith.constant 0 : index
    %c0_60 = arith.constant 0 : index
    %125 = vector.load %arg5[%c0_59, %c0_60] : memref<1x128xf32, #tpu.memory_space<vmem>>, vector<1x128xf32>
    %126 = vector.broadcast %125 : vector<1x128xf32> to vector<16x128xf32>
    %127 = arith.addf %124, %126 : vector<16x128xf32>
    %128 = vector.shape_cast %127 : vector<16x128xf32> to vector<2x8x128xf32>
    %c0_61 = arith.constant 0 : index
    %c0_62 = arith.constant 0 : index
    %c0_63 = arith.constant 0 : index
    %129 = vector.load %arg7[%c0_61, %c0_62, %c0_63] : memref<2x8x128xf32, #tpu.memory_space<vmem>>, vector<2x8x128xf32>
    tpu.vector_store %arg7[%c0_61, %c0_62, %c0_63], %128 {strides = array<i32>} : memref<2x8x128xf32, #tpu.memory_space<vmem>>, vector<2x8x128xf32>,
    return
  }
  func.func @transform_0(%arg0: i32) -> (i32, i32, i32) {
    %c0_i32 = arith.constant 0 : i32
    %c0_i32_0 = arith.constant 0 : i32
    %c0_i32_1 = arith.constant 0 : i32
    return %arg0, %c0_i32, %c0_i32_0 : i32, i32, i32
  }
  func.func @transform_1(%arg0: i32) -> (i32, i32) {
    %c0_i32 = arith.constant 0 : i32
    %c0_i32_0 = arith.constant 0 : i32
    %c0_i32_1 = arith.constant 0 : i32
    return %c0_i32, %c0_i32_0 : i32, i32
  }
  func.func @transform_2(%arg0: i32) -> (i32, i32) {
    %c0_i32 = arith.constant 0 : i32
    %c0_i32_0 = arith.constant 0 : i32
    %c0_i32_1 = arith.constant 0 : i32
    return %c0_i32, %c0_i32_0 : i32, i32
  }
  func.func @transform_3(%arg0: i32) -> (i32, i32) {
    %c0_i32 = arith.constant 0 : i32
    %c0_i32_0 = arith.constant 0 : i32
    %c0_i32_1 = arith.constant 0 : i32
    return %c0_i32, %c0_i32_0 : i32, i32
  }
  func.func @transform_4(%arg0: i32) -> (i32, i32) {
    %c0_i32 = arith.constant 0 : i32
    %c0_i32_0 = arith.constant 0 : i32
    %c0_i32_1 = arith.constant 0 : i32
    return %c0_i32, %c0_i32_0 : i32, i32
  }
  func.func @transform_5(%arg0: i32) -> (i32, i32, i32) {
    %c0_i32 = arith.constant 0 : i32
    %c0_i32_0 = arith.constant 0 : i32
    %c0_i32_1 = arith.constant 0 : i32
    %c0_i32_2 = arith.constant 0 : i32
    return %c0_i32, %c0_i32_0, %c0_i32_1 : i32, i32, i32
  }
  func.func @transform_6(%arg0: i32) -> (i32, i32, i32) {
    %c0_i32 = arith.constant 0 : i32
    %c0_i32_0 = arith.constant 0 : i32
    %c0_i32_1 = arith.constant 0 : i32
    return %arg0, %c0_i32, %c0_i32_0 : i32, i32, i32
  }
}

module attributes {stable_mosaic.version = 11 : i64} {
  func.func @_t5_mhsa_kernel(%arg0: i32, %arg1: memref<2x8x32xf32, #tpu.memory_space<vmem>>, %arg2: memref<32x192xbf16, #tpu.memory_space<vmem>>, %arg3: memref<1x192xf32, #tpu.memory_space<vmem>>, %arg4: memref<64x128xbf16, #tpu.memory_space<vmem>>, %arg5: memref<1x128xf32, #tpu.memory_space<vmem>>, %arg6: memref<4x8x8xbf16, #tpu.memory_space<vmem>>, %arg7: memref<2x8x128xf32, #tpu.memory_space<vmem>>, %arg8: memref<16x192xbf16, #tpu.memory_space<vmem>>, %arg9: memref<16x64xbf16, #tpu.memory_space<vmem>>) attributes {dimension_semantics = [#tpu.dimension_semantics<parallel>], iteration_bounds = array<i64: 2>, scalar_prefetch = 0 : i64, scratch_operands = 2 : i64, tpu.core_type = #tpu.core_type<tc>, window_params = [{transform_indices = @transform_0, window_bounds = array<i64: 2, 8, 32>}, {pipeline_mode = #tpu.pipeline_mode<synchronous>, transform_indices = @transform_1, window_bounds = array<i64: 32, 192>}, {pipeline_mode = #tpu.pipeline_mode<synchronous>, transform_indices = @transform_2, window_bounds = array<i64: 1, 192>}, {pipeline_mode = #tpu.pipeline_mode<synchronous>, transform_indices = @transform_3, window_bounds = array<i64: 64, 128>}, {pipeline_mode = #tpu.pipeline_mode<synchronous>, transform_indices = @transform_4, window_bounds = array<i64: 1, 128>}, {pipeline_mode = #tpu.pipeline_mode<synchronous>, transform_indices = @transform_5, window_bounds = array<i64: 4, 8, 8>}, {transform_indices = @transform_6, window_bounds = array<i64: 2, 8, 128>}]} {
    %c0 = arith.constant 0 : index
    %c0_0 = arith.constant 0 : index
    %c0_1 = arith.constant 0 : index
    %0 = vector.load %arg1[%c0, %c0_0, %c0_1] : memref<2x8x32xf32, #tpu.memory_space<vmem>>, vector<2x8x32xf32>
    %1 = vector.shape_cast %0 : vector<2x8x32xf32> to vector<16x32xf32>
    %2 = arith.truncf %1 : vector<16x32xf32> to vector<16x32xbf16>
    %c0_2 = arith.constant 0 : index
    %c0_3 = arith.constant 0 : index
    %3 = vector.load %arg2[%c0_2, %c0_3] : memref<32x192xbf16, #tpu.memory_space<vmem>>, vector<32x192xbf16>
    %cst = arith.constant dense<0.000000e+00> : vector<16x192xf32>
    %4 = tpu.matmul %2, %3, %cst {dimension_numbers = #tpu.dot_dimension_numbers<[1], [0], [0], [1], [0, 0, 1, 1], [], []>} : vector<16x32xbf16>, vector<32x192xbf16>, vector<16x192xf32> -> vector<16x192xf32>
    %c0_4 = arith.constant 0 : index
    %c0_5 = arith.constant 0 : index
    %5 = vector.load %arg3[%c0_4, %c0_5] : memref<1x192xf32, #tpu.memory_space<vmem>>, vector<1x192xf32>
    %6 = vector.broadcast %5 : vector<1x192xf32> to vector<16x192xf32>
    %7 = arith.addf %4, %6 : vector<16x192xf32>
    %8 = arith.truncf %7 : vector<16x192xf32> to vector<16x192xbf16>
    %c0_6 = arith.constant 0 : index
    %c0_7 = arith.constant 0 : index
    %9 = vector.load %arg8[%c0_6, %c0_7] : memref<16x192xbf16, #tpu.memory_space<vmem>>, vector<16x192xbf16>
    tpu.vector_store %arg8[%c0_6, %c0_7], %8 {strides = array<i32>} : memref<16x192xbf16, #tpu.memory_space<vmem>>, vector<16x192xbf16>,
    %c0_8 = arith.constant 0 : index
    %c0_9 = arith.constant 0 : index
    %10 = vector.load %arg8[%c0_8, %c0_9] : memref<16x192xbf16, #tpu.memory_space<vmem>>, vector<16x16xbf16>
    %11 = vector.shape_cast %10 : vector<16x16xbf16> to vector<2x8x16xbf16>
    %c0_10 = arith.constant 0 : index
    %c64 = arith.constant 64 : index
    %12 = vector.load %arg8[%c0_10, %c64] : memref<16x192xbf16, #tpu.memory_space<vmem>>, vector<16x16xbf16>
    %13 = vector.shape_cast %12 : vector<16x16xbf16> to vector<2x8x16xbf16>
    %c0_11 = arith.constant 0 : index
    %c128 = arith.constant 128 : index
    %14 = vector.load %arg8[%c0_11, %c128] : memref<16x192xbf16, #tpu.memory_space<vmem>>, vector<16x16xbf16>
    %15 = vector.shape_cast %14 : vector<16x16xbf16> to vector<2x8x16xbf16>
    "tpu.trace_start"() <{level = 10 : i32, message = "bqd,bkd->bqk"}> : () -> ()
    %cst_12 = arith.constant dense<0.000000e+00> : vector<2x8x8xf32>
    %16 = tpu.matmul %11, %13, %cst_12 {dimension_numbers = #tpu.dot_dimension_numbers<[2], [2], [1], [1], [0, 0, 0, 1, 1, 1], [0], [0]>} : vector<2x8x16xbf16>, vector<2x8x16xbf16>, vector<2x8x8xf32> -> vector<2x8x8xf32>
    "tpu.trace_stop"() : () -> ()
    %c0_13 = arith.constant 0 : index
    %c0_14 = arith.constant 0 : index
    %c0_15 = arith.constant 0 : index
    %17 = vector.load %arg6[%c0_13, %c0_14, %c0_15] : memref<4x8x8xbf16, #tpu.memory_space<vmem>>, vector<1x8x8xbf16>
    %18 = vector.shape_cast %17 : vector<1x8x8xbf16> to vector<8x8xbf16>
    %19 = arith.extf %18 : vector<8x8xbf16> to vector<8x8xf32>
    %20 = vector.shape_cast %19 : vector<8x8xf32> to vector<1x8x8xf32>
    %21 = vector.broadcast %20 : vector<1x8x8xf32> to vector<2x8x8xf32>
    %22 = arith.addf %16, %21 : vector<2x8x8xf32>
    %cst_16 = arith.constant dense<0xFF800000> : vector<2x8xf32>
    %23 = vector.multi_reduction <maximumf>, %22, %cst_16 [2] : vector<2x8x8xf32> to vector<2x8xf32>
    %24 = vector.shape_cast %23 : vector<2x8xf32> to vector<2x8x1xf32>
    %25 = vector.broadcast %24 : vector<2x8x1xf32> to vector<2x8x8xf32>
    %26 = arith.subf %22, %25 : vector<2x8x8xf32>
    %27 = math.exp %26 : vector<2x8x8xf32>
    %cst_17 = arith.constant dense<0.000000e+00> : vector<2x8xf32>
    %28 = vector.multi_reduction <add>, %27, %cst_17 [2] : vector<2x8x8xf32> to vector<2x8xf32>
    %29 = vector.shape_cast %28 : vector<2x8xf32> to vector<2x8x1xf32>
    %30 = arith.truncf %27 : vector<2x8x8xf32> to vector<2x8x8xbf16>
    "tpu.trace_start"() <{level = 10 : i32, message = "bqk,bkd->bqd"}> : () -> ()
    %cst_18 = arith.constant dense<0.000000e+00> : vector<2x8x16xf32>
    %31 = tpu.matmul %30, %15, %cst_18 {dimension_numbers = #tpu.dot_dimension_numbers<[2], [1], [1], [2], [0, 0, 0, 1, 1, 2], [0], [0]>} : vector<2x8x8xbf16>, vector<2x8x16xbf16>, vector<2x8x16xf32> -> vector<2x8x16xf32>
    "tpu.trace_stop"() : () -> ()
    %32 = tpu.reciprocal %29 {approx = true} : vector<2x8x1xf32> -> vector<2x8x1xf32>
    %33 = vector.broadcast %32 : vector<2x8x1xf32> to vector<2x8x16xf32>
    %34 = arith.mulf %31, %33 : vector<2x8x16xf32>
    %35 = vector.shape_cast %34 : vector<2x8x16xf32> to vector<16x16xf32>
    %36 = arith.truncf %35 : vector<16x16xf32> to vector<16x16xbf16>
    %c0_19 = arith.constant 0 : index
    %c0_20 = arith.constant 0 : index
    %37 = vector.load %arg9[%c0_19, %c0_20] : memref<16x64xbf16, #tpu.memory_space<vmem>>, vector<16x16xbf16>
    tpu.vector_store %arg9[%c0_19, %c0_20], %36 {strides = array<i32>} : memref<16x64xbf16, #tpu.memory_space<vmem>>, vector<16x16xbf16>,
    %c0_21 = arith.constant 0 : index
    %c16 = arith.constant 16 : index
    %38 = vector.load %arg8[%c0_21, %c16] : memref<16x192xbf16, #tpu.memory_space<vmem>>, vector<16x16xbf16>
    %39 = vector.shape_cast %38 : vector<16x16xbf16> to vector<2x8x16xbf16>
    %c0_22 = arith.constant 0 : index
    %c80 = arith.constant 80 : index
    %40 = vector.load %arg8[%c0_22, %c80] : memref<16x192xbf16, #tpu.memory_space<vmem>>, vector<16x16xbf16>
    %41 = vector.shape_cast %40 : vector<16x16xbf16> to vector<2x8x16xbf16>
    %c0_23 = arith.constant 0 : index
    %c144 = arith.constant 144 : index
    %42 = vector.load %arg8[%c0_23, %c144] : memref<16x192xbf16, #tpu.memory_space<vmem>>, vector<16x16xbf16>
    %43 = vector.shape_cast %42 : vector<16x16xbf16> to vector<2x8x16xbf16>
    "tpu.trace_start"() <{level = 10 : i32, message = "bqd,bkd->bqk"}> : () -> ()
    %cst_24 = arith.constant dense<0.000000e+00> : vector<2x8x8xf32>
    %44 = tpu.matmul %39, %41, %cst_24 {dimension_numbers = #tpu.dot_dimension_numbers<[2], [2], [1], [1], [0, 0, 0, 1, 1, 1], [0], [0]>} : vector<2x8x16xbf16>, vector<2x8x16xbf16>, vector<2x8x8xf32> -> vector<2x8x8xf32>
    "tpu.trace_stop"() : () -> ()
    %c1 = arith.constant 1 : index
    %c0_25 = arith.constant 0 : index
    %c0_26 = arith.constant 0 : index
    %45 = vector.load %arg6[%c1, %c0_25, %c0_26] : memref<4x8x8xbf16, #tpu.memory_space<vmem>>, vector<1x8x8xbf16>
    %46 = vector.shape_cast %45 : vector<1x8x8xbf16> to vector<8x8xbf16>
    %47 = arith.extf %46 : vector<8x8xbf16> to vector<8x8xf32>
    %48 = vector.shape_cast %47 : vector<8x8xf32> to vector<1x8x8xf32>
    %49 = vector.broadcast %48 : vector<1x8x8xf32> to vector<2x8x8xf32>
    %50 = arith.addf %44, %49 : vector<2x8x8xf32>
    %cst_27 = arith.constant dense<0xFF800000> : vector<2x8xf32>
    %51 = vector.multi_reduction <maximumf>, %50, %cst_27 [2] : vector<2x8x8xf32> to vector<2x8xf32>
    %52 = vector.shape_cast %51 : vector<2x8xf32> to vector<2x8x1xf32>
    %53 = vector.broadcast %52 : vector<2x8x1xf32> to vector<2x8x8xf32>
    %54 = arith.subf %50, %53 : vector<2x8x8xf32>
    %55 = math.exp %54 : vector<2x8x8xf32>
    %cst_28 = arith.constant dense<0.000000e+00> : vector<2x8xf32>
    %56 = vector.multi_reduction <add>, %55, %cst_28 [2] : vector<2x8x8xf32> to vector<2x8xf32>
    %57 = vector.shape_cast %56 : vector<2x8xf32> to vector<2x8x1xf32>
    %58 = arith.truncf %55 : vector<2x8x8xf32> to vector<2x8x8xbf16>
    "tpu.trace_start"() <{level = 10 : i32, message = "bqk,bkd->bqd"}> : () -> ()
    %cst_29 = arith.constant dense<0.000000e+00> : vector<2x8x16xf32>
    %59 = tpu.matmul %58, %43, %cst_29 {dimension_numbers = #tpu.dot_dimension_numbers<[2], [1], [1], [2], [0, 0, 0, 1, 1, 2], [0], [0]>} : vector<2x8x8xbf16>, vector<2x8x16xbf16>, vector<2x8x16xf32> -> vector<2x8x16xf32>
    "tpu.trace_stop"() : () -> ()
    %60 = tpu.reciprocal %57 {approx = true} : vector<2x8x1xf32> -> vector<2x8x1xf32>
    %61 = vector.broadcast %60 : vector<2x8x1xf32> to vector<2x8x16xf32>
    %62 = arith.mulf %59, %61 : vector<2x8x16xf32>
    %63 = vector.shape_cast %62 : vector<2x8x16xf32> to vector<16x16xf32>
    %64 = arith.truncf %63 : vector<16x16xf32> to vector<16x16xbf16>
    %c0_30 = arith.constant 0 : index
    %c16_31 = arith.constant 16 : index
    %65 = vector.load %arg9[%c0_30, %c16_31] : memref<16x64xbf16, #tpu.memory_space<vmem>>, vector<16x16xbf16>
    tpu.vector_store %arg9[%c0_30, %c16_31], %64 {strides = array<i32>} : memref<16x64xbf16, #tpu.memory_space<vmem>>, vector<16x16xbf16>,
    %c0_32 = arith.constant 0 : index
    %c32 = arith.constant 32 : index
    %66 = vector.load %arg8[%c0_32, %c32] : memref<16x192xbf16, #tpu.memory_space<vmem>>, vector<16x16xbf16>
    %67 = vector.shape_cast %66 : vector<16x16xbf16> to vector<2x8x16xbf16>
    %c0_33 = arith.constant 0 : index
    %c96 = arith.constant 96 : index
    %68 = vector.load %arg8[%c0_33, %c96] : memref<16x192xbf16, #tpu.memory_space<vmem>>, vector<16x16xbf16>
    %69 = vector.shape_cast %68 : vector<16x16xbf16> to vector<2x8x16xbf16>
    %c0_34 = arith.constant 0 : index
    %c160 = arith.constant 160 : index
    %70 = vector.load %arg8[%c0_34, %c160] : memref<16x192xbf16, #tpu.memory_space<vmem>>, vector<16x16xbf16>
    %71 = vector.shape_cast %70 : vector<16x16xbf16> to vector<2x8x16xbf16>
    "tpu.trace_start"() <{level = 10 : i32, message = "bqd,bkd->bqk"}> : () -> ()
    %cst_35 = arith.constant dense<0.000000e+00> : vector<2x8x8xf32>
    %72 = tpu.matmul %67, %69, %cst_35 {dimension_numbers = #tpu.dot_dimension_numbers<[2], [2], [1], [1], [0, 0, 0, 1, 1, 1], [0], [0]>} : vector<2x8x16xbf16>, vector<2x8x16xbf16>, vector<2x8x8xf32> -> vector<2x8x8xf32>
    "tpu.trace_stop"() : () -> ()
    %c2 = arith.constant 2 : index
    %c0_36 = arith.constant 0 : index
    %c0_37 = arith.constant 0 : index
    %73 = vector.load %arg6[%c2, %c0_36, %c0_37] : memref<4x8x8xbf16, #tpu.memory_space<vmem>>, vector<1x8x8xbf16>
    %74 = vector.shape_cast %73 : vector<1x8x8xbf16> to vector<8x8xbf16>
    %75 = arith.extf %74 : vector<8x8xbf16> to vector<8x8xf32>
    %76 = vector.shape_cast %75 : vector<8x8xf32> to vector<1x8x8xf32>
    %77 = vector.broadcast %76 : vector<1x8x8xf32> to vector<2x8x8xf32>
    %78 = arith.addf %72, %77 : vector<2x8x8xf32>
    %cst_38 = arith.constant dense<0xFF800000> : vector<2x8xf32>
    %79 = vector.multi_reduction <maximumf>, %78, %cst_38 [2] : vector<2x8x8xf32> to vector<2x8xf32>
    %80 = vector.shape_cast %79 : vector<2x8xf32> to vector<2x8x1xf32>
    %81 = vector.broadcast %80 : vector<2x8x1xf32> to vector<2x8x8xf32>
    %82 = arith.subf %78, %81 : vector<2x8x8xf32>
    %83 = math.exp %82 : vector<2x8x8xf32>
    %cst_39 = arith.constant dense<0.000000e+00> : vector<2x8xf32>
    %84 = vector.multi_reduction <add>, %83, %cst_39 [2] : vector<2x8x8xf32> to vector<2x8xf32>
    %85 = vector.shape_cast %84 : vector<2x8xf32> to vector<2x8x1xf32>
    %86 = arith.truncf %83 : vector<2x8x8xf32> to vector<2x8x8xbf16>
    "tpu.trace_start"() <{level = 10 : i32, message = "bqk,bkd->bqd"}> : () -> ()
    %cst_40 = arith.constant dense<0.000000e+00> : vector<2x8x16xf32>
    %87 = tpu.matmul %86, %71, %cst_40 {dimension_numbers = #tpu.dot_dimension_numbers<[2], [1], [1], [2], [0, 0, 0, 1, 1, 2], [0], [0]>} : vector<2x8x8xbf16>, vector<2x8x16xbf16>, vector<2x8x16xf32> -> vector<2x8x16xf32>
    "tpu.trace_stop"() : () -> ()
    %88 = tpu.reciprocal %85 {approx = true} : vector<2x8x1xf32> -> vector<2x8x1xf32>
    %89 = vector.broadcast %88 : vector<2x8x1xf32> to vector<2x8x16xf32>
    %90 = arith.mulf %87, %89 : vector<2x8x16xf32>
    %91 = vector.shape_cast %90 : vector<2x8x16xf32> to vector<16x16xf32>
    %92 = arith.truncf %91 : vector<16x16xf32> to vector<16x16xbf16>
    %c0_41 = arith.constant 0 : index
    %c32_42 = arith.constant 32 : index
    %93 = vector.load %arg9[%c0_41, %c32_42] : memref<16x64xbf16, #tpu.memory_space<vmem>>, vector<16x16xbf16>
    tpu.vector_store %arg9[%c0_41, %c32_42], %92 {strides = array<i32>} : memref<16x64xbf16, #tpu.memory_space<vmem>>, vector<16x16xbf16>,
    %c0_43 = arith.constant 0 : index
    %c48 = arith.constant 48 : index
    %94 = vector.load %arg8[%c0_43, %c48] : memref<16x192xbf16, #tpu.memory_space<vmem>>, vector<16x16xbf16>
    %95 = vector.shape_cast %94 : vector<16x16xbf16> to vector<2x8x16xbf16>
    %c0_44 = arith.constant 0 : index
    %c112 = arith.constant 112 : index
    %96 = vector.load %arg8[%c0_44, %c112] : memref<16x192xbf16, #tpu.memory_space<vmem>>, vector<16x16xbf16>
    %97 = vector.shape_cast %96 : vector<16x16xbf16> to vector<2x8x16xbf16>
    %c0_45 = arith.constant 0 : index
    %c176 = arith.constant 176 : index
    %98 = vector.load %arg8[%c0_45, %c176] : memref<16x192xbf16, #tpu.memory_space<vmem>>, vector<16x16xbf16>
    %99 = vector.shape_cast %98 : vector<16x16xbf16> to vector<2x8x16xbf16>
    "tpu.trace_start"() <{level = 10 : i32, message = "bqd,bkd->bqk"}> : () -> ()
    %cst_46 = arith.constant dense<0.000000e+00> : vector<2x8x8xf32>
    %100 = tpu.matmul %95, %97, %cst_46 {dimension_numbers = #tpu.dot_dimension_numbers<[2], [2], [1], [1], [0, 0, 0, 1, 1, 1], [0], [0]>} : vector<2x8x16xbf16>, vector<2x8x16xbf16>, vector<2x8x8xf32> -> vector<2x8x8xf32>
    "tpu.trace_stop"() : () -> ()
    %c3 = arith.constant 3 : index
    %c0_47 = arith.constant 0 : index
    %c0_48 = arith.constant 0 : index
    %101 = vector.load %arg6[%c3, %c0_47, %c0_48] : memref<4x8x8xbf16, #tpu.memory_space<vmem>>, vector<1x8x8xbf16>
    %102 = vector.shape_cast %101 : vector<1x8x8xbf16> to vector<8x8xbf16>
    %103 = arith.extf %102 : vector<8x8xbf16> to vector<8x8xf32>
    %104 = vector.shape_cast %103 : vector<8x8xf32> to vector<1x8x8xf32>
    %105 = vector.broadcast %104 : vector<1x8x8xf32> to vector<2x8x8xf32>
    %106 = arith.addf %100, %105 : vector<2x8x8xf32>
    %cst_49 = arith.constant dense<0xFF800000> : vector<2x8xf32>
    %107 = vector.multi_reduction <maximumf>, %106, %cst_49 [2] : vector<2x8x8xf32> to vector<2x8xf32>
    %108 = vector.shape_cast %107 : vector<2x8xf32> to vector<2x8x1xf32>
    %109 = vector.broadcast %108 : vector<2x8x1xf32> to vector<2x8x8xf32>
    %110 = arith.subf %106, %109 : vector<2x8x8xf32>
    %111 = math.exp %110 : vector<2x8x8xf32>
    %cst_50 = arith.constant dense<0.000000e+00> : vector<2x8xf32>
    %112 = vector.multi_reduction <add>, %111, %cst_50 [2] : vector<2x8x8xf32> to vector<2x8xf32>
    %113 = vector.shape_cast %112 : vector<2x8xf32> to vector<2x8x1xf32>
    %114 = arith.truncf %111 : vector<2x8x8xf32> to vector<2x8x8xbf16>
    "tpu.trace_start"() <{level = 10 : i32, message = "bqk,bkd->bqd"}> : () -> ()
    %cst_51 = arith.constant dense<0.000000e+00> : vector<2x8x16xf32>
    %115 = tpu.matmul %114, %99, %cst_51 {dimension_numbers = #tpu.dot_dimension_numbers<[2], [1], [1], [2], [0, 0, 0, 1, 1, 2], [0], [0]>} : vector<2x8x8xbf16>, vector<2x8x16xbf16>, vector<2x8x16xf32> -> vector<2x8x16xf32>
    "tpu.trace_stop"() : () -> ()
    %116 = tpu.reciprocal %113 {approx = true} : vector<2x8x1xf32> -> vector<2x8x1xf32>
    %117 = vector.broadcast %116 : vector<2x8x1xf32> to vector<2x8x16xf32>
    %118 = arith.mulf %115, %117 : vector<2x8x16xf32>
    %119 = vector.shape_cast %118 : vector<2x8x16xf32> to vector<16x16xf32>
    %120 = arith.truncf %119 : vector<16x16xf32> to vector<16x16xbf16>
    %c0_52 = arith.constant 0 : index
    %c48_53 = arith.constant 48 : index
    %121 = vector.load %arg9[%c0_52, %c48_53] : memref<16x64xbf16, #tpu.memory_space<vmem>>, vector<16x16xbf16>
    tpu.vector_store %arg9[%c0_52, %c48_53], %120 {strides = array<i32>} : memref<16x64xbf16, #tpu.memory_space<vmem>>, vector<16x16xbf16>,
    %c0_54 = arith.constant 0 : index
    %c0_55 = arith.constant 0 : index
    %122 = vector.load %arg9[%c0_54, %c0_55] : memref<16x64xbf16, #tpu.memory_space<vmem>>, vector<16x64xbf16>
    %c0_56 = arith.constant 0 : index
    %c0_57 = arith.constant 0 : index
    %123 = vector.load %arg4[%c0_56, %c0_57] : memref<64x128xbf16, #tpu.memory_space<vmem>>, vector<64x128xbf16>
    %cst_58 = arith.constant dense<0.000000e+00> : vector<16x128xf32>
    %124 = tpu.matmul %122, %123, %cst_58 {dimension_numbers = #tpu.dot_dimension_numbers<[1], [0], [0], [1], [0, 0, 1, 1], [], []>} : vector<16x64xbf16>, vector<64x128xbf16>, vector<16x128xf32> -> vector<16x128xf32>
    %c0_59 = arith.constant 0 : index
    %c0_60 = arith.constant 0 : index
    %125 = vector.load %arg5[%c0_59, %c0_60] : memref<1x128xf32, #tpu.memory_space<vmem>>, vector<1x128xf32>
    %126 = vector.broadcast %125 : vector<1x128xf32> to vector<16x128xf32>
    %127 = arith.addf %124, %126 : vector<16x128xf32>
    %128 = vector.shape_cast %127 : vector<16x128xf32> to vector<2x8x128xf32>
    %c0_61 = arith.constant 0 : index
    %c0_62 = arith.constant 0 : index
    %c0_63 = arith.constant 0 : index
    %129 = vector.load %arg7[%c0_61, %c0_62, %c0_63] : memref<2x8x128xf32, #tpu.memory_space<vmem>>, vector<2x8x128xf32>
    tpu.vector_store %arg7[%c0_61, %c0_62, %c0_63], %128 {strides = array<i32>} : memref<2x8x128xf32, #tpu.memory_space<vmem>>, vector<2x8x128xf32>,
    return
  }
  func.func @transform_0(%arg0: i32) -> (i32, i32, i32) {
    %c0_i32 = arith.constant 0 : i32
    %c0_i32_0 = arith.constant 0 : i32
    %c0_i32_1 = arith.constant 0 : i32
    return %arg0, %c0_i32, %c0_i32_0 : i32, i32, i32
  }
  func.func @transform_1(%arg0: i32) -> (i32, i32) {
    %c0_i32 = arith.constant 0 : i32
    %c0_i32_0 = arith.constant 0 : i32
    %c0_i32_1 = arith.constant 0 : i32
    return %c0_i32, %c0_i32_0 : i32, i32
  }
  func.func @transform_2(%arg0: i32) -> (i32, i32) {
    %c0_i32 = arith.constant 0 : i32
    %c0_i32_0 = arith.constant 0 : i32
    %c0_i32_1 = arith.constant 0 : i32
    return %c0_i32, %c0_i32_0 : i32, i32
  }
  func.func @transform_3(%arg0: i32) -> (i32, i32) {
    %c0_i32 = arith.constant 0 : i32
    %c0_i32_0 = arith.constant 0 : i32
    %c0_i32_1 = arith.constant 0 : i32
    return %c0_i32, %c0_i32_0 : i32, i32
  }
  func.func @transform_4(%arg0: i32) -> (i32, i32) {
    %c0_i32 = arith.constant 0 : i32
    %c0_i32_0 = arith.constant 0 : i32
    %c0_i32_1 = arith.constant 0 : i32
    return %c0_i32, %c0_i32_0 : i32, i32
  }
  func.func @transform_5(%arg0: i32) -> (i32, i32, i32) {
    %c0_i32 = arith.constant 0 : i32
    %c0_i32_0 = arith.constant 0 : i32
    %c0_i32_1 = arith.constant 0 : i32
    %c0_i32_2 = arith.constant 0 : i32
    return %c0_i32, %c0_i32_0, %c0_i32_1 : i32, i32, i32
  }
  func.func @transform_6(%arg0: i32) -> (i32, i32, i32) {
    %c0_i32 = arith.constant 0 : i32
    %c0_i32_0 = arith.constant 0 : i32
    %c0_i32_1 = arith.constant 0 : i32
    return %arg0, %c0_i32, %c0_i32_0 : i32, i32, i32
  }
}

</mosaic_0001>

<llo_original>
// kernel: tpu_custom_call.1
$region0: #{tpu_custom_call.1}
  #allocation0 [shape = 'u32[]', space=smem, size = 0x4, offset = 0x4, fixed_abs, tag = 'smem constant byte address 0x4 - core index']
  #allocation1 [shape = 'u32[144,128]{1,0:T(1,128)}', space=vmem, size = 0x12000, scoped, tag = 'internal scratch']
  #allocation2 [shape = 'bf16[16,192]{1,0:T(8,128)(2,1)}', space=vmem, size = 0x2000, scoped, tag = 'scratch operand']
  #allocation3 [shape = 'bf16[16,64]{1,0:T(8,128)(2,1)}', space=vmem, size = 0x1000, scoped, tag = 'scratch operand']
  %s0 = inlined_call_operand.hbm [shape: f32[4,8,32], index: 0, kind: input, shape index: {}]
  %s1 = inlined_call_operand.hbm [shape: bf16[32,192], index: 1, kind: input, shape index: {}]
  %s2 = inlined_call_operand.vmem [shape: f32[1,192], index: 2, kind: input, shape index: {}]
  %s3 = inlined_call_operand.hbm [shape: bf16[64,128], index: 3, kind: input, shape index: {}]
  %s4 = inlined_call_operand.vmem [shape: f32[1,128], index: 4, kind: input, shape index: {}]
  %s5 = inlined_call_operand.hbm [shape: bf16[4,8,8], index: 5, kind: input, shape index: {}]
  %s6 = inlined_call_operand.hbm [shape: f32[4,8,128], index: 6, kind: output, shape index: {}]
  %s7 = sld [smem:[#allocation0]]
  $region73: #{tpu_custom_call.1} parent=0
    _
  %s9 = ssub.s32 1, %s7
  %s10 = scalar_select 0, %s9, %s7
  $region1: #{tpu_custom_call.1} parent=0
    #allocation4 [shape = 'u8[16384]{0}', space=vmem, size = 0x4000, scoped, tag = 'input window, operand 0']
    #allocation5 [shape = 's32[2]{0}', space=sflag, size = 0x8, scoped, tag = 'scoped memory for tpu_custom_call.1']
    #allocation6 [shape = 's32[2]{0}', space=sflag, size = 0x8, scoped, tag = 'scoped memory for tpu_custom_call.1']
    #allocation7 [shape = 'u8[16384]{0}', space=vmem, size = 0x4000, scoped, tag = 'input window, operand 1, single buffered']
    #allocation8 [shape = 's32[1]{0}', space=sflag, size = 0x4, scoped, tag = 'scoped memory for tpu_custom_call.1']
    #allocation9 [shape = 'u8[16384]{0}', space=vmem, size = 0x4000, scoped, tag = 'input window, operand 3, single buffered']
    #allocation10 [shape = 'u8[8192]{0}', space=vmem, size = 0x2000, scoped, tag = 'input window, operand 5, single buffered']
    #allocation11 [shape = 's32[1]{0}', space=sflag, size = 0x4, scoped, tag = 'scoped memory for tpu_custom_call.1']
    #allocation12 [shape = 'u8[16384]{0}', space=vmem, size = 0x4000, scoped, tag = 'output window, operand 0']
    %11 = vsyncpa [#allocation5], 0
    %s12 = scalar_lea.sflag [#allocation5], 1
    %13 = vsyncpa %s12, 0
    %14 = vsyncpa [#allocation8], 0
    %15 = vsyncpa [#allocation11], 0
    %16 = vsyncpa [#allocation6], 0
    %s17 = scalar_lea.sflag [#allocation6], 1
    %18 = vsyncpa %s17, 0
    loop: start=0, step=1, limit=4
    $region2: #{tpu_custom_call.1} parent=1 // loop_pre_header
      _
    $region3: #{tpu_custom_call.1} parent=1 // loop_header
      %s20 = sphi 0, %s24
      %p21 = scmp.ge.s32.totalorder %s20, 4
      %s30 = sphi 0, %s32
      %s33 = sphi 0, %s30
      %s34 = sphi 0, %s33
      %s50 = sphi 0, %s34
      %s54 = sphi 0, %s54
      %s56 = sphi 0, %s54
      %s57 = sphi 0, %s56
      %s71 = sphi 0, %s57
      %s75 = sphi 0, %s75
      %s77 = sphi 0, %s75
      %s78 = sphi 0, %s77
      %s92 = sphi 0, %s78
      %s96 = sphi 0, %s96
      %s98 = sphi 0, %s96
      %s99 = sphi 0, %s98
      %s113 = sphi 0, %s99
      %s117 = sphi 0, %s117
      %s119 = sphi 0, %s117
      %s120 = sphi 0, %s119
      %s134 = sphi 0, %s120
      %s138 = sphi 0, %s138
      %s140 = sphi 0, %s138
      %s141 = sphi 0, %s140
      %s155 = sphi 0, %s141
      %s161 = sphi 0, %s163
      %s164 = sphi 0, %s161
      %s165 = sphi 0, %s164
      %s181 = sphi 0, %s165
    $region4: #{tpu_custom_call.1} parent=1 // loop_header_branch
      %23 = sbr.rel (%p21) target = $region8
    $region5: #{tpu_custom_call.1} parent=1 // loop_body
      %s25 = ssub.s32 %s20, 1
      %s26 = ssub.s32 %s20, 2
      %s27 = sadd.s32 %s20, 1
      %s28 = ssub.s32 %s20, %s27
      %p29 = scmp.eq.s32.totalorder %s28, 0
      %s31 = sadd.s32 %s30, 1
      %s32 = scalar_select %p29, %s30, %s31
      %p35 = pneg %p29
      %p36 = scmp.eq.s32.totalorder %s20, 1
      %p37 = por %p35, %p36
      %p38 = scmp.ne.s32.totalorder %s30, %s33
      %p39 = scmp.eq.s32.totalorder %s20, 0
      %p40 = por %p38, %p39
      %p41 = scmp.ne.s32.totalorder %s30, %s33
      %p42 = scmp.eq.s32.totalorder %s25, 1
      %p43 = por %p41, %p42
      %p44 = scmp.ne.s32.totalorder %s33, %s34
      %p45 = scmp.eq.s32.totalorder %s25, 0
      %p46 = por %p44, %p45
      %p47 = scmp.ne.s32.totalorder %s33, %s34
      %p48 = scmp.eq.s32.totalorder %s26, 1
      %p49 = por %p47, %p48
      %p51 = scmp.ne.s32.totalorder %s34, %s50
      %p52 = scmp.eq.s32.totalorder %s26, 0
      %p53 = por %p51, %p52
      %s55 = sadd.s32 %s54, 1
      %p58 = scmp.eq.s32.totalorder %s20, 1
      %p59 = scmp.ne.s32.totalorder %s54, %s56
      %p60 = scmp.eq.s32.totalorder %s20, 0
      %p61 = por %p59, %p60
      %p62 = scmp.ne.s32.totalorder %s54, %s56
      %p63 = scmp.eq.s32.totalorder %s25, 1
      %p64 = por %p62, %p63
      %p65 = scmp.ne.s32.totalorder %s56, %s57
      %p66 = scmp.eq.s32.totalorder %s25, 0
      %p67 = por %p65, %p66
      %p68 = scmp.ne.s32.totalorder %s56, %s57
      %p69 = scmp.eq.s32.totalorder %s26, 1
      %p70 = por %p68, %p69
      %p72 = scmp.ne.s32.totalorder %s57, %s71
      %p73 = scmp.eq.s32.totalorder %s26, 0
      %p74 = por %p72, %p73
      %s76 = sadd.s32 %s75, 1
      %p79 = scmp.eq.s32.totalorder %s20, 1
      %p80 = scmp.ne.s32.totalorder %s75, %s77
      %p81 = scmp.eq.s32.totalorder %s20, 0
      %p82 = por %p80, %p81
      %p83 = scmp.ne.s32.totalorder %s75, %s77
      %p84 = scmp.eq.s32.totalorder %s25, 1
      %p85 = por %p83, %p84
      %p86 = scmp.ne.s32.totalorder %s77, %s78
      %p87 = scmp.eq.s32.totalorder %s25, 0
      %p88 = por %p86, %p87
      %p89 = scmp.ne.s32.totalorder %s77, %s78
      %p90 = scmp.eq.s32.totalorder %s26, 1
      %p91 = por %p89, %p90
      %p93 = scmp.ne.s32.totalorder %s78, %s92
      %p94 = scmp.eq.s32.totalorder %s26, 0
      %p95 = por %p93, %p94
      %s97 = sadd.s32 %s96, 1
      %p100 = scmp.eq.s32.totalorder %s20, 1
      %p101 = scmp.ne.s32.totalorder %s96, %s98
      %p102 = scmp.eq.s32.totalorder %s20, 0
      %p103 = por %p101, %p102
      %p104 = scmp.ne.s32.totalorder %s96, %s98
      %p105 = scmp.eq.s32.totalorder %s25, 1
      %p106 = por %p104, %p105
      %p107 = scmp.ne.s32.totalorder %s98, %s99
      %p108 = scmp.eq.s32.totalorder %s25, 0
      %p109 = por %p107, %p108
      %p110 = scmp.ne.s32.totalorder %s98, %s99
      %p111 = scmp.eq.s32.totalorder %s26, 1
      %p112 = por %p110, %p111
      %p114 = scmp.ne.s32.totalorder %s99, %s113
      %p115 = scmp.eq.s32.totalorder %s26, 0
      %p116 = por %p114, %p115
      %s118 = sadd.s32 %s117, 1
      %p121 = scmp.eq.s32.totalorder %s20, 1
      %p122 = scmp.ne.s32.totalorder %s117, %s119
      %p123 = scmp.eq.s32.totalorder %s20, 0
      %p124 = por %p122, %p123
      %p125 = scmp.ne.s32.totalorder %s117, %s119
      %p126 = scmp.eq.s32.totalorder %s25, 1
      %p127 = por %p125, %p126
      %p128 = scmp.ne.s32.totalorder %s119, %s120
      %p129 = scmp.eq.s32.totalorder %s25, 0
      %p130 = por %p128, %p129
      %p131 = scmp.ne.s32.totalorder %s119, %s120
      %p132 = scmp.eq.s32.totalorder %s26, 1
      %p133 = por %p131, %p132
      %p135 = scmp.ne.s32.totalorder %s120, %s134
      %p136 = scmp.eq.s32.totalorder %s26, 0
      %p137 = por %p135, %p136
      %s139 = sadd.s32 %s138, 1
      %p142 = scmp.eq.s32.totalorder %s20, 1
      %p143 = scmp.ne.s32.totalorder %s138, %s140
      %p144 = scmp.eq.s32.totalorder %s20, 0
      %p145 = por %p143, %p144
      %p146 = scmp.ne.s32.totalorder %s138, %s140
      %p147 = scmp.eq.s32.totalorder %s25, 1
      %p148 = por %p146, %p147
      %p149 = scmp.ne.s32.totalorder %s140, %s141
      %p150 = scmp.eq.s32.totalorder %s25, 0
      %p151 = por %p149, %p150
      %p152 = scmp.ne.s32.totalorder %s140, %s141
      %p153 = scmp.eq.s32.totalorder %s26, 1
      %p154 = por %p152, %p153
      %p156 = scmp.ne.s32.totalorder %s141, %s155
      %p157 = scmp.eq.s32.totalorder %s26, 0
      %p158 = por %p156, %p157
      %s159 = ssub.s32 %s20, %s27
      %p160 = scmp.eq.s32.totalorder %s159, 0
      %s162 = sadd.s32 %s161, 1
      %s163 = scalar_select %p160, %s161, %s162
      %p166 = pneg %p160
      %p167 = scmp.eq.s32.totalorder %s20, 1
      %p168 = por %p166, %p167
      %p169 = scmp.ne.s32.totalorder %s161, %s164
      %p170 = scmp.eq.s32.totalorder %s20, 0
      %p171 = por %p169, %p170
      %p172 = scmp.ne.s32.totalorder %s161, %s164
      %p173 = scmp.eq.s32.totalorder %s25, 1
      %p174 = por %p172, %p173
      %p175 = scmp.ne.s32.totalorder %s164, %s165
      %p176 = scmp.eq.s32.totalorder %s25, 0
      %p177 = por %p175, %p176
      %p178 = scmp.ne.s32.totalorder %s164, %s165
      %p179 = scmp.eq.s32.totalorder %s26, 1
      %p180 = por %p178, %p179
      %p182 = scmp.ne.s32.totalorder %s165, %s181
      %p183 = scmp.eq.s32.totalorder %s26, 0
      %p184 = por %p182, %p183
      %p185 = scmp.le.s32.totalorder 1, %s20
      %p186 = scmp.lt.s32.totalorder %s20, 3
      %p187 = pnand %p185, %p186
      %p188 = pneg %p187
      // Predicated region
      $region9: #{tpu_custom_call.1} parent=5 // pred_check
        _
      $region10: #{tpu_custom_call.1} parent=5 // pred_check_branch
        %190 = sbr.rel (%p187) target = $region12
      $region11: #{tpu_custom_call.1} parent=5 // pred_region
        %s191 = ssub.s32 %s20, 1
        // Predicated region
        $region13: #{tpu_custom_call.1} parent=11 // pred_check
          %p192 = pneg %p67
        $region14: #{tpu_custom_call.1} parent=11 // pred_check_branch
          %194 = sbr.rel (%p192) target = $region16
        $region15: #{tpu_custom_call.1} parent=11 // pred_region
          %s196 = ssub.s32 512, 512
          %197 = vsyncadd [#allocation8], %s196
          %s198 = sshll.u32 [#allocation7], 4
          %s199 = int_to_ptr.vmem [resolvable:$true] %s198
          %204 = dma.hbm_to_vmem [thread:$0]  %s1, 512, %s199, [#allocation8], 128, 128, 8
        $region16: #{tpu_custom_call.1} parent=11 // pred_fallthru
          _
        // Predicated region
        $region17: #{tpu_custom_call.1} parent=11 // pred_check
          %p205 = pneg %p88
        $region18: #{tpu_custom_call.1} parent=11 // pred_check_branch
          %207 = sbr.rel (%p205) target = $region20
        $region19: #{tpu_custom_call.1} parent=11 // pred_region
          _
        $region20: #{tpu_custom_call.1} parent=11 // pred_fallthru
          _
        // Predicated region
        $region21: #{tpu_custom_call.1} parent=11 // pred_check
          %p208 = pneg %p109
        $region22: #{tpu_custom_call.1} parent=11 // pred_check_branch
          %210 = sbr.rel (%p208) target = $region24
        $region23: #{tpu_custom_call.1} parent=11 // pred_region
          %s212 = ssub.s32 512, 512
          %213 = vsyncadd [#allocation8], %s212
          %s214 = sshll.u32 [#allocation9], 4
          %s215 = int_to_ptr.vmem [resolvable:$true] %s214
          %220 = dma.hbm_to_vmem [thread:$0]  %s3, 512, %s215, [#allocation8], 64, 64, 4
        $region24: #{tpu_custom_call.1} parent=11 // pred_fallthru
          _
        // Predicated region
        $region25: #{tpu_custom_call.1} parent=11 // pred_check
          %p221 = pneg %p130
        $region26: #{tpu_custom_call.1} parent=11 // pred_check_branch
          %223 = sbr.rel (%p221) target = $region28
        $region27: #{tpu_custom_call.1} parent=11 // pred_region
          _
        $region28: #{tpu_custom_call.1} parent=11 // pred_fallthru
          _
        // Predicated region
        $region29: #{tpu_custom_call.1} parent=11 // pred_check
          %p224 = pneg %p151
        $region30: #{tpu_custom_call.1} parent=11 // pred_check_branch
          %226 = sbr.rel (%p224) target = $region32
        $region31: #{tpu_custom_call.1} parent=11 // pred_region
          %s228 = ssub.s32 256, 256
          %229 = vsyncadd [#allocation11], %s228
          %s230 = sshll.u32 [#allocation10], 4
          %s231 = int_to_ptr.vmem [resolvable:$true] %s230
          %236 = dma.hbm_to_vmem [thread:$0]  %s5, 256, %s231, [#allocation11], 64, 64, 4
        $region32: #{tpu_custom_call.1} parent=11 // pred_fallthru
          _
      $region12: #{tpu_custom_call.1} parent=5 // pred_fallthru
        _
      %p237 = scmp.lt.s32.totalorder %s20, 2
      // Predicated region
      $region33: #{tpu_custom_call.1} parent=5 // pred_check
        %p238 = pneg %p237
      $region34: #{tpu_custom_call.1} parent=5 // pred_check_branch
        %240 = sbr.rel (%p238) target = $region36
      $region35: #{tpu_custom_call.1} parent=5 // pred_region
        // Predicated region
        $region37: #{tpu_custom_call.1} parent=35 // pred_check
          %p241 = pneg %p40
        $region38: #{tpu_custom_call.1} parent=35 // pred_check_branch
          %243 = sbr.rel (%p241) target = $region40
        $region39: #{tpu_custom_call.1} parent=35 // pred_region
          %s244 = sand.u32 %s30, 1
          %s245 = scalar_lea.sflag [#allocation5], %s244
          %s246 = sand.u32 %s30, 1
          %s247 = smul.addr %s246, 16
          %s248 = scalar_lea.vmem [#allocation4], %s247
          %s249 = smul.u32 2, %s20
          %s251 = ssub.s32 256, 256
          %252 = vsyncadd %s245, %s251
          %s253 = smul.addr %s249, 128
          %s254 = scalar_lea.hbm %s0, %s253
          %s255 = sshll.u32 %s248, 4
          %s256 = int_to_ptr.vmem [resolvable:$true] %s255
          %261 = dma.hbm_to_vmem [thread:$0]  %s254, 256, %s256, %s245, 128, 128, 8
        $region40: #{tpu_custom_call.1} parent=35 // pred_fallthru
          _
      $region36: #{tpu_custom_call.1} parent=5 // pred_fallthru
        _
      %p262 = scmp.le.s32.totalorder 1, %s20
      %p263 = scmp.lt.s32.totalorder %s20, 3
      %p264 = pnand %p262, %p263
      %p265 = pneg %p264
      // Predicated region
      $region41: #{tpu_custom_call.1} parent=5 // pred_check
        _
      $region42: #{tpu_custom_call.1} parent=5 // pred_check_branch
        %267 = sbr.rel (%p264) target = $region44
      $region43: #{tpu_custom_call.1} parent=5 // pred_region
        %s268 = ssub.s32 %s20, 1
        %s269 = sand.u32 %s33, 1
        %s270 = scalar_lea.sflag [#allocation5], %s269
        %s271 = sand.u32 %s33, 1
        %s272 = smul.addr %s271, 16
        %s273 = scalar_lea.vmem [#allocation4], %s272
        // Predicated region
        $region45: #{tpu_custom_call.1} parent=43 // pred_check
          %p274 = pneg %p46
        $region46: #{tpu_custom_call.1} parent=43 // pred_check_branch
          %276 = sbr.rel (%p274) target = $region48
        $region47: #{tpu_custom_call.1} parent=43 // pred_region
          %277 = dma.done %s270, 256
        $region48: #{tpu_custom_call.1} parent=43 // pred_fallthru
          _
        // Predicated region
        $region49: #{tpu_custom_call.1} parent=43 // pred_check
          %p278 = pneg %p67
        $region50: #{tpu_custom_call.1} parent=43 // pred_check_branch
          %280 = sbr.rel (%p278) target = $region52
        $region51: #{tpu_custom_call.1} parent=43 // pred_region
          %281 = dma.done [#allocation8], 512
        $region52: #{tpu_custom_call.1} parent=43 // pred_fallthru
          _
        // Predicated region
        $region53: #{tpu_custom_call.1} parent=43 // pred_check
          %p282 = pneg %p109
        $region54: #{tpu_custom_call.1} parent=43 // pred_check_branch
          %284 = sbr.rel (%p282) target = $region56
        $region55: #{tpu_custom_call.1} parent=43 // pred_region
          %285 = dma.done [#allocation8], 512
        $region56: #{tpu_custom_call.1} parent=43 // pred_fallthru
          _
        // Predicated region
        $region57: #{tpu_custom_call.1} parent=43 // pred_check
          %p286 = pneg %p151
        $region58: #{tpu_custom_call.1} parent=43 // pred_check_branch
          %288 = sbr.rel (%p286) target = $region60
        $region59: #{tpu_custom_call.1} parent=43 // pred_region
          %289 = dma.done [#allocation11], 256
        $region60: #{tpu_custom_call.1} parent=43 // pred_fallthru
          _
        %s290 = sand.u32 %s33, 1
        %s291 = scalar_lea.sflag [#allocation5], %s290
        %s292 = sand.u32 %s33, 1
        %s293 = smul.addr %s292, 16
        %s294 = scalar_lea.vmem [#allocation4], %s293
        %p295 = pneg %p46
        %p296 = pneg %p43
        %p297 = pneg %p67
        %p298 = pneg %p64
        %p299 = pneg %p88
        %p300 = pneg %p85
        %p301 = pneg %p109
        %p302 = pneg %p106
        %p303 = pneg %p130
        %p304 = pneg %p127
        %p305 = pneg %p151
        %p306 = pneg %p148
        %p307 = pneg %p177
        %p308 = pneg %p174
        %s309 = sand.u32 %s164, 1
        %s310 = scalar_lea.sflag [#allocation6], %s309
        %s311 = sand.u32 %s164, 1
        %s312 = smul.addr %s311, 16
        %s313 = scalar_lea.vmem [#allocation12], %s312
        %s314 = smul.u32 2, %s25
        %s315 = smul.u32 2, %s25
        %v317 = vld [vmem:[%s273] sm:$0xff]
        %v318 = vld [vmem:[%s273 + $0x8] sm:$0xff]
        %v319 = vpack.c.bf16 %v318, %v317
        %v320 = vld [vmem:[#allocation7] sm:$0xff]
        %v321 = vld [vmem:[#allocation7 + $0x8] sm:$0xff]
        %v322 = vld [vmem:[#allocation7 + $0x10] sm:$0xff]
        %v323 = vld [vmem:[#allocation7 + $0x18] sm:$0xff]
        %v324 = vld [vmem:[%s2] sm:$0x3]
        %v326 = vlaneseq
        %v327 = vshrl.u32 %v326, 7
        %v328 = vsub.s32 0, %v327
        %v329 = vrot.slane %v324, %v328
        %v330 = vlaneseq
        %v331 = vshrl.u32 %v330, 7
        %v332 = vsub.s32 1, %v331
        %v333 = vrot.slane %v324, %v332
        %v340 = vunpack.c.l.b16 %v320
        %v341 = vunpack.c.h.b16 %v320
        %v342 = vunpack.c.l.b16 %v321
        %v343 = vunpack.c.h.b16 %v321
        %v344 = vunpack.c.l.b16 %v322
        %v345 = vunpack.c.h.b16 %v322
        %v346 = vunpack.c.l.b16 %v323
        %v347 = vunpack.c.h.b16 %v323
        %v348 = vpack.c.b16 %v342, %v340
        %v349 = vpack.c.b16 %v343, %v341
        %v350 = vpack.c.b16 %v346, %v344
        %v351 = vpack.c.b16 %v347, %v345
        %vm356 = vcmask 261120
        %v358 = vsel %vm356, %v319, 0
        %360 = vmatprep.subr.bf16.mxu0 0
        %361 = vmatpush1.bf16.msra.mxu0 0
        %362 = vmatprep.subr.bf16.mxu0 0
        %363 = vmatpush1.bf16.msra.mxu0 0
        %364 = vmatprep.subr.bf16.mxu0 0
        %365 = vmatpush1.bf16.msra.mxu0 0
        %366 = vmatprep.subr.bf16.mxu0 0
        %367 = vmatpush1.bf16.msra.mxu0 0
        %368 = vmatprep.subr.bf16.mxu0 0
        %369 = vmatpush1.bf16.msra.mxu0 0
        %370 = vmatprep.subr.bf16.mxu0 0
        %371 = vmatpush1.bf16.msra.mxu0 0
        %372 = vmatprep.subr.bf16.mxu0 %v351
        %373 = vmatpush1.bf16.msra.mxu0 %v350
        %374 = vmatprep.subr.bf16.mxu0 %v349
        %375 = vmatpush1.bf16.msra.mxu0 %v348
        %376 = vmatprep.subr.bf16.mxu0 0
        %377 = vmatpush2.bf16.msra.mxu0 0
        %378 = vmatprep.subr.bf16.mxu0 0
        %379 = vmatpush2.bf16.msra.mxu0 0
        %380 = vmatprep.subr.bf16.mxu0 0
        %381 = vmatpush2.bf16.msra.mxu0 0
        %382 = vmatprep.subr.bf16.mxu0 0
        %383 = vmatpush2.bf16.msra.mxu0 0
        %384 = vmatprep.subr.bf16.mxu0 0
        %385 = vmatpush2.bf16.msra.mxu0 0
        %386 = vmatprep.subr.bf16.mxu0 0
        %387 = vmatpush2.bf16.msra.mxu0 0
        %388 = vmatprep.subr.bf16.mxu0 0
        %389 = vmatpush2.bf16.msra.mxu0 0
        %390 = vmatprep.subr.bf16.mxu0 0
        %391 = vmatpush2.bf16.msra.mxu0 0
        %392 = vmatprep.mubr.bf16.mxu0 0
        %393 = vmatmul.mubr.bf16.gmra.mxu0 %v358
        %v394 = vpop.f32.mrf.mxu0
        %v395 = vadd.f32 %v329, %v394
        %v396 = vpop.f32.mrf.mxu0
        %v397 = vadd.f32 %v333, %v396
        %v398 = vpop.f32.mrf.mxu0
        %v399 = vadd.f32 %v329, %v398
        %v400 = vpop.f32.mrf.mxu0
        %v401 = vadd.f32 %v333, %v400
        %402 = vdwg.mxu0
        %v403 = vpack.c.bf16 %v399, %v395
        %v404 = vpack.c.bf16 %v401, %v397
        %v407 = vunpack.c.l.b16 %v403
        %v408 = vunpack.c.l.b16 %v404
        %v409 = vunpack.c.h.b16 %v403
        %v410 = vunpack.c.h.b16 %v404
        %v411 = vpack.c.b16 %v408, %v407
        %v412 = vpack.c.b16 %v410, %v409
        %vm415 = vcmask 1043456
        %vm416 = vcmask 523268
        %vm417 = vmor %vm416, %vm415
        %418 = vst.msk [vmem:[#allocation2] sm:$0xff] %vm417, %v411
        %419 = vst.msk [vmem:[#allocation2 + $0x8] sm:$0xff] %vm417, %v412
        %v420 = vld [vmem:[#allocation2] sm:$0xf]
        %v421 = vld [vmem:[#allocation2 + $0x8] sm:$0xf]
        %v422 = vld [vmem:[#allocation2 + $0x4] sm:$0xf]
        %v423 = vld [vmem:[#allocation2 + $0xc] sm:$0xf]
        %v424 = vld [vmem:[#allocation10] sm:$0xf]
        %v425 = vunpack.c.l.bf16 %v424
        %v427 = vunpack.c.l.b16 %v420
        %v428 = vpack.c.b16 %v427, %v427
        %429 = vrot.lane.b32.xlu0 %v428, 64
        %v430 = vpop.permute.xlu0 %429
        %vm431 = vcmask 130048
        %v433 = vsel %vm431, %v420, 0
        %v436 = vsel %vm431, %v430, 0
        %438 = vmatprep.subr.bf16.mxu0 0
        %439 = vmatpush1.bf16.xpose.msra.mxu0 0
        %440 = vmatprep.subr.bf16.mxu0 0
        %441 = vmatpush1.bf16.xpose.msra.mxu0 0
        %442 = vmatprep.subr.bf16.mxu0 0
        %443 = vmatpush1.bf16.xpose.msra.mxu0 0
        %444 = vmatprep.subr.bf16.mxu0 0
        %445 = vmatpush1.bf16.xpose.msra.mxu0 0
        %446 = vmatprep.subr.bf16.mxu0 0
        %447 = vmatpush1.bf16.xpose.msra.mxu0 0
        %448 = vmatprep.subr.bf16.mxu0 0
        %449 = vmatpush1.bf16.xpose.msra.mxu0 0
        %450 = vmatprep.subr.bf16.mxu0 0
        %451 = vmatpush1.bf16.xpose.msra.mxu0 0
        %452 = vmatprep.subr.bf16.mxu0 0
        %453 = vmatpush1.bf16.xpose.msra.mxu0 %v436
        %454 = vmatprep.subr.bf16.mxu0 0
        %455 = vmatpush2.bf16.xpose.msra.mxu0 0
        %456 = vmatprep.subr.bf16.mxu0 0
        %457 = vmatpush2.bf16.xpose.msra.mxu0 0
        %458 = vmatprep.subr.bf16.mxu0 0
        %459 = vmatpush2.bf16.xpose.msra.mxu0 0
        %460 = vmatprep.subr.bf16.mxu0 0
        %461 = vmatpush2.bf16.xpose.msra.mxu0 0
        %462 = vmatprep.subr.bf16.mxu0 0
        %463 = vmatpush2.bf16.xpose.msra.mxu0 0
        %464 = vmatprep.subr.bf16.mxu0 0
        %465 = vmatpush2.bf16.xpose.msra.mxu0 0
        %466 = vmatprep.subr.bf16.mxu0 0
        %467 = vmatpush2.bf16.xpose.msra.mxu0 0
        %468 = vmatprep.subr.bf16.mxu0 0
        %469 = vmatpush2.bf16.xpose.msra.mxu0 0
        %470 = vmatprep.mubr.bf16.mxu0 0
        %471 = vmatmul.mubr.bf16.gmra.mxu0 %v433
        %v472 = vpop.f32.mrf.mxu0
        %v473 = vadd.f32 %v425, %v472
        %v474 = vpop.f32.mrf.mxu0
        %v475 = vpop.f32.mrf.mxu0
        %v476 = vpop.f32.mrf.mxu0
        %477 = vdwg.mxu0
        %v479 = vunpack.c.l.b16 %v421
        %v480 = vpack.c.b16 %v479, %v479
        %481 = vrot.lane.b32.xlu0 %v480, 64
        %v482 = vpop.permute.xlu0 %481
        %v484 = vsel %vm431, %v421, 0
        %v487 = vsel %vm431, %v482, 0
        %489 = vmatprep.subr.bf16.mxu0 0
        %490 = vmatpush1.bf16.xpose.msra.mxu0 0
        %491 = vmatprep.subr.bf16.mxu0 0
        %492 = vmatpush1.bf16.xpose.msra.mxu0 0
        %493 = vmatprep.subr.bf16.mxu0 0
        %494 = vmatpush1.bf16.xpose.msra.mxu0 0
        %495 = vmatprep.subr.bf16.mxu0 0
        %496 = vmatpush1.bf16.xpose.msra.mxu0 0
        %497 = vmatprep.subr.bf16.mxu0 0
        %498 = vmatpush1.bf16.xpose.msra.mxu0 0
        %499 = vmatprep.subr.bf16.mxu0 0
        %500 = vmatpush1.bf16.xpose.msra.mxu0 0
        %501 = vmatprep.subr.bf16.mxu0 0
        %502 = vmatpush1.bf16.xpose.msra.mxu0 0
        %503 = vmatprep.subr.bf16.mxu0 0
        %504 = vmatpush1.bf16.xpose.msra.mxu0 %v487
        %505 = vmatprep.subr.bf16.mxu0 0
        %506 = vmatpush2.bf16.xpose.msra.mxu0 0
        %507 = vmatprep.subr.bf16.mxu0 0
        %508 = vmatpush2.bf16.xpose.msra.mxu0 0
        %509 = vmatprep.subr.bf16.mxu0 0
        %510 = vmatpush2.bf16.xpose.msra.mxu0 0
        %511 = vmatprep.subr.bf16.mxu0 0
        %512 = vmatpush2.bf16.xpose.msra.mxu0 0
        %513 = vmatprep.subr.bf16.mxu0 0
        %514 = vmatpush2.bf16.xpose.msra.mxu0 0
        %515 = vmatprep.subr.bf16.mxu0 0
        %516 = vmatpush2.bf16.xpose.msra.mxu0 0
        %517 = vmatprep.subr.bf16.mxu0 0
        %518 = vmatpush2.bf16.xpose.msra.mxu0 0
        %519 = vmatprep.subr.bf16.mxu0 0
        %520 = vmatpush2.bf16.xpose.msra.mxu0 0
        %521 = vmatprep.mubr.bf16.mxu0 0
        %522 = vmatmul.mubr.bf16.gmra.mxu0 %v484
        %v523 = vpop.f32.mrf.mxu0
        %v524 = vadd.f32 %v425, %v523
        %v525 = vpop.f32.mrf.mxu0
        %v526 = vpop.f32.mrf.mxu0
        %v527 = vpop.f32.mrf.mxu0
        %528 = vdwg.mxu0
        %vm529 = vcmask 64512
        %v530 = vsel %vm529, %v473, -inf
        %531 = vmax.xlane.f32.xlu0 %v530
        %v532 = vpop.xlane.xlu0 %531
        %v533 = vsel %vm529, %v524, -inf
        %534 = vmax.xlane.f32.xlu0 %v533
        %v535 = vpop.xlane.xlu0 %534
        %v536 = vsub.f32 %v473, %v532
        %v537 = vsub.f32 %v524, %v535
        %v538 = vmul.f32 %v536, 1.442695
        %v539 = vpow.pop %v538
        %v540 = vmul.f32 %v537, 1.442695
        %v541 = vpow.pop %v540
        %v542 = vsel %vm529, %v539, 0.0
        %543 = vadd.xlane.f32.xlu0 %v542
        %v544 = vpop.xlane.xlu0 %543
        %v545 = vsel %vm529, %v541, 0.0
        %546 = vadd.xlane.f32.xlu0 %v545
        %v547 = vpop.xlane.xlu0 %546
        %v548 = vpack.c.bf16 %v539, %v539
        %v549 = vpack.c.bf16 %v541, %v541
        %v551 = vsel %vm529, %v548, 0
        %v554 = vsel %vm415, %v422, 0
        %556 = vmatprep.subr.bf16.mxu0 0
        %557 = vmatpush1.bf16.msra.mxu0 0
        %558 = vmatprep.subr.bf16.mxu0 0
        %559 = vmatpush1.bf16.msra.mxu0 0
        %560 = vmatprep.subr.bf16.mxu0 0
        %561 = vmatpush1.bf16.msra.mxu0 0
        %562 = vmatprep.subr.bf16.mxu0 0
        %563 = vmatpush1.bf16.msra.mxu0 0
        %564 = vmatprep.subr.bf16.mxu0 0
        %565 = vmatpush1.bf16.msra.mxu0 0
        %566 = vmatprep.subr.bf16.mxu0 0
        %567 = vmatpush1.bf16.msra.mxu0 0
        %568 = vmatprep.subr.bf16.mxu0 0
        %569 = vmatpush1.bf16.msra.mxu0 0
        %570 = vmatprep.subr.bf16.mxu0 0
        %571 = vmatpush1.bf16.msra.mxu0 %v554
        %572 = vmatprep.subr.bf16.mxu0 0
        %573 = vmatpush2.bf16.msra.mxu0 0
        %574 = vmatprep.subr.bf16.mxu0 0
        %575 = vmatpush2.bf16.msra.mxu0 0
        %576 = vmatprep.subr.bf16.mxu0 0
        %577 = vmatpush2.bf16.msra.mxu0 0
        %578 = vmatprep.subr.bf16.mxu0 0
        %579 = vmatpush2.bf16.msra.mxu0 0
        %580 = vmatprep.subr.bf16.mxu0 0
        %581 = vmatpush2.bf16.msra.mxu0 0
        %582 = vmatprep.subr.bf16.mxu0 0
        %583 = vmatpush2.bf16.msra.mxu0 0
        %584 = vmatprep.subr.bf16.mxu0 0
        %585 = vmatpush2.bf16.msra.mxu0 0
        %586 = vmatprep.subr.bf16.mxu0 0
        %587 = vmatpush2.bf16.msra.mxu0 0
        %588 = vmatprep.mubr.bf16.mxu0 0
        %589 = vmatmul.mubr.bf16.gmra.mxu0 %v551
        %v590 = vpop.f32.mrf.mxu0
        %v591 = vadd.f32 0.0, %v590
        %v592 = vpop.f32.mrf.mxu0
        %v593 = vpop.f32.mrf.mxu0
        %v594 = vpop.f32.mrf.mxu0
        %595 = vdwg.mxu0
        %v597 = vsel %vm529, %v549, 0
        %v600 = vsel %vm415, %v423, 0
        %602 = vmatprep.subr.bf16.mxu0 0
        %603 = vmatpush1.bf16.msra.mxu0 0
        %604 = vmatprep.subr.bf16.mxu0 0
        %605 = vmatpush1.bf16.msra.mxu0 0
        %606 = vmatprep.subr.bf16.mxu0 0
        %607 = vmatpush1.bf16.msra.mxu0 0
        %608 = vmatprep.subr.bf16.mxu0 0
        %609 = vmatpush1.bf16.msra.mxu0 0
        %610 = vmatprep.subr.bf16.mxu0 0
        %611 = vmatpush1.bf16.msra.mxu0 0
        %612 = vmatprep.subr.bf16.mxu0 0
        %613 = vmatpush1.bf16.msra.mxu0 0
        %614 = vmatprep.subr.bf16.mxu0 0
        %615 = vmatpush1.bf16.msra.mxu0 0
        %616 = vmatprep.subr.bf16.mxu0 0
        %617 = vmatpush1.bf16.msra.mxu0 %v600
        %618 = vmatprep.subr.bf16.mxu0 0
        %619 = vmatpush2.bf16.msra.mxu0 0
        %620 = vmatprep.subr.bf16.mxu0 0
        %621 = vmatpush2.bf16.msra.mxu0 0
        %622 = vmatprep.subr.bf16.mxu0 0
        %623 = vmatpush2.bf16.msra.mxu0 0
        %624 = vmatprep.subr.bf16.mxu0 0
        %625 = vmatpush2.bf16.msra.mxu0 0
        %626 = vmatprep.subr.bf16.mxu0 0
        %627 = vmatpush2.bf16.msra.mxu0 0
        %628 = vmatprep.subr.bf16.mxu0 0
        %629 = vmatpush2.bf16.msra.mxu0 0
        %630 = vmatprep.subr.bf16.mxu0 0
        %631 = vmatpush2.bf16.msra.mxu0 0
        %632 = vmatprep.subr.bf16.mxu0 0
        %633 = vmatpush2.bf16.msra.mxu0 0
        %634 = vmatprep.mubr.bf16.mxu0 0
        %635 = vmatmul.mubr.bf16.gmra.mxu0 %v597
        %v636 = vpop.f32.mrf.mxu0
        %v637 = vadd.f32 0.0, %v636
        %v638 = vpop.f32.mrf.mxu0
        %v639 = vpop.f32.mrf.mxu0
        %v640 = vpop.f32.mrf.mxu0
        %641 = vdwg.mxu0
        %v642 = vrcp.pop %v544
        %v643 = vrcp.pop %v547
        %v644 = vmul.f32 %v591, %v642
        %v645 = vmul.f32 %v637, %v643
        %v646 = vpack.c.bf16 %v645, %v644
        %v648 = vunpack.c.l.b16 %v646
        %v649 = vunpack.c.h.b16 %v646
        %v650 = vpack.c.b16 %v648, %v648
        %v651 = vpack.c.b16 %v649, %v649
        %vm654 = vcmask 125952
        %655 = vst.msk [vmem:[#allocation3] sm:$0xf] %vm654, %v650
        %656 = vst.msk [vmem:[#allocation3 + $0x4] sm:$0xf] %vm654, %v651
        %v657 = vld [vmem:[#allocation2] sm:$0xf]
        %v658 = vld [vmem:[#allocation2 + $0x8] sm:$0xf]
        %v659 = vld [vmem:[#allocation2 + $0x4] sm:$0xf]
        %v660 = vld [vmem:[#allocation2 + $0xc] sm:$0xf]
        %s661 = scalar_lea.vmem [#allocation10], 4
        %v662 = vld [vmem:[%s661] sm:$0xf]
        %v663 = vunpack.c.l.bf16 %v662
        %v665 = vunpack.c.l.b16 %v657
        %v666 = vpack.c.b16 %v665, %v665
        %667 = vrot.lane.b32.xlu0 %v666, 112
        %v668 = vpop.permute.xlu0 %667
        %669 = vrot.lane.b32.xlu0 %v666, 48
        %v670 = vpop.permute.xlu0 %669
        %v672 = vsel %vm431, %v668, 0
        %v675 = vsel %vm431, %v670, 0
        %677 = vmatprep.subr.bf16.mxu0 0
        %678 = vmatpush1.bf16.xpose.msra.mxu0 0
        %679 = vmatprep.subr.bf16.mxu0 0
        %680 = vmatpush1.bf16.xpose.msra.mxu0 0
        %681 = vmatprep.subr.bf16.mxu0 0
        %682 = vmatpush1.bf16.xpose.msra.mxu0 0
        %683 = vmatprep.subr.bf16.mxu0 0
        %684 = vmatpush1.bf16.xpose.msra.mxu0 0
        %685 = vmatprep.subr.bf16.mxu0 0
        %686 = vmatpush1.bf16.xpose.msra.mxu0 0
        %687 = vmatprep.subr.bf16.mxu0 0
        %688 = vmatpush1.bf16.xpose.msra.mxu0 0
        %689 = vmatprep.subr.bf16.mxu0 0
        %690 = vmatpush1.bf16.xpose.msra.mxu0 0
        %691 = vmatprep.subr.bf16.mxu0 0
        %692 = vmatpush1.bf16.xpose.msra.mxu0 %v675
        %693 = vmatprep.subr.bf16.mxu0 0
        %694 = vmatpush2.bf16.xpose.msra.mxu0 0
        %695 = vmatprep.subr.bf16.mxu0 0
        %696 = vmatpush2.bf16.xpose.msra.mxu0 0
        %697 = vmatprep.subr.bf16.mxu0 0
        %698 = vmatpush2.bf16.xpose.msra.mxu0 0
        %699 = vmatprep.subr.bf16.mxu0 0
        %700 = vmatpush2.bf16.xpose.msra.mxu0 0
        %701 = vmatprep.subr.bf16.mxu0 0
        %702 = vmatpush2.bf16.xpose.msra.mxu0 0
        %703 = vmatprep.subr.bf16.mxu0 0
        %704 = vmatpush2.bf16.xpose.msra.mxu0 0
        %705 = vmatprep.subr.bf16.mxu0 0
        %706 = vmatpush2.bf16.xpose.msra.mxu0 0
        %707 = vmatprep.subr.bf16.mxu0 0
        %708 = vmatpush2.bf16.xpose.msra.mxu0 0
        %709 = vmatprep.mubr.bf16.mxu0 0
        %710 = vmatmul.mubr.bf16.gmra.mxu0 %v672
        %v711 = vpop.f32.mrf.mxu0
        %v712 = vadd.f32 %v663, %v711
        %v713 = vpop.f32.mrf.mxu0
        %v714 = vpop.f32.mrf.mxu0
        %v715 = vpop.f32.mrf.mxu0
        %716 = vdwg.mxu0
        %v718 = vunpack.c.l.b16 %v658
        %v719 = vpack.c.b16 %v718, %v718
        %720 = vrot.lane.b32.xlu0 %v719, 112
        %v721 = vpop.permute.xlu0 %720
        %722 = vrot.lane.b32.xlu0 %v719, 48
        %v723 = vpop.permute.xlu0 %722
        %v725 = vsel %vm431, %v721, 0
        %v728 = vsel %vm431, %v723, 0
        %730 = vmatprep.subr.bf16.mxu0 0
        %731 = vmatpush1.bf16.xpose.msra.mxu0 0
        %732 = vmatprep.subr.bf16.mxu0 0
        %733 = vmatpush1.bf16.xpose.msra.mxu0 0
        %734 = vmatprep.subr.bf16.mxu0 0
        %735 = vmatpush1.bf16.xpose.msra.mxu0 0
        %736 = vmatprep.subr.bf16.mxu0 0
        %737 = vmatpush1.bf16.xpose.msra.mxu0 0
        %738 = vmatprep.subr.bf16.mxu0 0
        %739 = vmatpush1.bf16.xpose.msra.mxu0 0
        %740 = vmatprep.subr.bf16.mxu0 0
        %741 = vmatpush1.bf16.xpose.msra.mxu0 0
        %742 = vmatprep.subr.bf16.mxu0 0
        %743 = vmatpush1.bf16.xpose.msra.mxu0 0
        %744 = vmatprep.subr.bf16.mxu0 0
        %745 = vmatpush1.bf16.xpose.msra.mxu0 %v728
        %746 = vmatprep.subr.bf16.mxu0 0
        %747 = vmatpush2.bf16.xpose.msra.mxu0 0
        %748 = vmatprep.subr.bf16.mxu0 0
        %749 = vmatpush2.bf16.xpose.msra.mxu0 0
        %750 = vmatprep.subr.bf16.mxu0 0
        %751 = vmatpush2.bf16.xpose.msra.mxu0 0
        %752 = vmatprep.subr.bf16.mxu0 0
        %753 = vmatpush2.bf16.xpose.msra.mxu0 0
        %754 = vmatprep.subr.bf16.mxu0 0
        %755 = vmatpush2.bf16.xpose.msra.mxu0 0
        %756 = vmatprep.subr.bf16.mxu0 0
        %757 = vmatpush2.bf16.xpose.msra.mxu0 0
        %758 = vmatprep.subr.bf16.mxu0 0
        %759 = vmatpush2.bf16.xpose.msra.mxu0 0
        %760 = vmatprep.subr.bf16.mxu0 0
        %761 = vmatpush2.bf16.xpose.msra.mxu0 0
        %762 = vmatprep.mubr.bf16.mxu0 0
        %763 = vmatmul.mubr.bf16.gmra.mxu0 %v725
        %v764 = vpop.f32.mrf.mxu0
        %v765 = vadd.f32 %v663, %v764
        %v766 = vpop.f32.mrf.mxu0
        %v767 = vpop.f32.mrf.mxu0
        %v768 = vpop.f32.mrf.mxu0
        %769 = vdwg.mxu0
        %v770 = vsel %vm529, %v712, -inf
        %771 = vmax.xlane.f32.xlu0 %v770
        %v772 = vpop.xlane.xlu0 %771
        %v773 = vsel %vm529, %v765, -inf
        %774 = vmax.xlane.f32.xlu0 %v773
        %v775 = vpop.xlane.xlu0 %774
        %v776 = vsub.f32 %v712, %v772
        %v777 = vsub.f32 %v765, %v775
        %v778 = vmul.f32 %v776, 1.442695
        %v779 = vpow.pop %v778
        %v780 = vmul.f32 %v777, 1.442695
        %v781 = vpow.pop %v780
        %v782 = vsel %vm529, %v779, 0.0
        %783 = vadd.xlane.f32.xlu0 %v782
        %v784 = vpop.xlane.xlu0 %783
        %v785 = vsel %vm529, %v781, 0.0
        %786 = vadd.xlane.f32.xlu0 %v785
        %v787 = vpop.xlane.xlu0 %786
        %v788 = vpack.c.bf16 %v779, %v779
        %v789 = vpack.c.bf16 %v781, %v781
        %v791 = vunpack.c.l.b16 %v659
        %v792 = vpack.c.b16 %v791, %v791
        %793 = vrot.lane.b32.xlu0 %v792, 112
        %v794 = vpop.permute.xlu0 %793
        %v796 = vsel %vm529, %v788, 0
        %v799 = vsel %vm415, %v794, 0
        %801 = vmatprep.subr.bf16.mxu0 0
        %802 = vmatpush1.bf16.msra.mxu0 0
        %803 = vmatprep.subr.bf16.mxu0 0
        %804 = vmatpush1.bf16.msra.mxu0 0
        %805 = vmatprep.subr.bf16.mxu0 0
        %806 = vmatpush1.bf16.msra.mxu0 0
        %807 = vmatprep.subr.bf16.mxu0 0
        %808 = vmatpush1.bf16.msra.mxu0 0
        %809 = vmatprep.subr.bf16.mxu0 0
        %810 = vmatpush1.bf16.msra.mxu0 0
        %811 = vmatprep.subr.bf16.mxu0 0
        %812 = vmatpush1.bf16.msra.mxu0 0
        %813 = vmatprep.subr.bf16.mxu0 0
        %814 = vmatpush1.bf16.msra.mxu0 0
        %815 = vmatprep.subr.bf16.mxu0 0
        %816 = vmatpush1.bf16.msra.mxu0 %v799
        %817 = vmatprep.subr.bf16.mxu0 0
        %818 = vmatpush2.bf16.msra.mxu0 0
        %819 = vmatprep.subr.bf16.mxu0 0
        %820 = vmatpush2.bf16.msra.mxu0 0
        %821 = vmatprep.subr.bf16.mxu0 0
        %822 = vmatpush2.bf16.msra.mxu0 0
        %823 = vmatprep.subr.bf16.mxu0 0
        %824 = vmatpush2.bf16.msra.mxu0 0
        %825 = vmatprep.subr.bf16.mxu0 0
        %826 = vmatpush2.bf16.msra.mxu0 0
        %827 = vmatprep.subr.bf16.mxu0 0
        %828 = vmatpush2.bf16.msra.mxu0 0
        %829 = vmatprep.subr.bf16.mxu0 0
        %830 = vmatpush2.bf16.msra.mxu0 0
        %831 = vmatprep.subr.bf16.mxu0 0
        %832 = vmatpush2.bf16.msra.mxu0 0
        %833 = vmatprep.mubr.bf16.mxu0 0
        %834 = vmatmul.mubr.bf16.gmra.mxu0 %v796
        %v835 = vpop.f32.mrf.mxu0
        %v836 = vadd.f32 0.0, %v835
        %v837 = vpop.f32.mrf.mxu0
        %v838 = vpop.f32.mrf.mxu0
        %v839 = vpop.f32.mrf.mxu0
        %840 = vdwg.mxu0
        %v842 = vunpack.c.l.b16 %v660
        %v843 = vpack.c.b16 %v842, %v842
        %844 = vrot.lane.b32.xlu0 %v843, 112
        %v845 = vpop.permute.xlu0 %844
        %v847 = vsel %vm529, %v789, 0
        %v850 = vsel %vm415, %v845, 0
        %852 = vmatprep.subr.bf16.mxu0 0
        %853 = vmatpush1.bf16.msra.mxu0 0
        %854 = vmatprep.subr.bf16.mxu0 0
        %855 = vmatpush1.bf16.msra.mxu0 0
        %856 = vmatprep.subr.bf16.mxu0 0
        %857 = vmatpush1.bf16.msra.mxu0 0
        %858 = vmatprep.subr.bf16.mxu0 0
        %859 = vmatpush1.bf16.msra.mxu0 0
        %860 = vmatprep.subr.bf16.mxu0 0
        %861 = vmatpush1.bf16.msra.mxu0 0
        %862 = vmatprep.subr.bf16.mxu0 0
        %863 = vmatpush1.bf16.msra.mxu0 0
        %864 = vmatprep.subr.bf16.mxu0 0
        %865 = vmatpush1.bf16.msra.mxu0 0
        %866 = vmatprep.subr.bf16.mxu0 0
        %867 = vmatpush1.bf16.msra.mxu0 %v850
        %868 = vmatprep.subr.bf16.mxu0 0
        %869 = vmatpush2.bf16.msra.mxu0 0
        %870 = vmatprep.subr.bf16.mxu0 0
        %871 = vmatpush2.bf16.msra.mxu0 0
        %872 = vmatprep.subr.bf16.mxu0 0
        %873 = vmatpush2.bf16.msra.mxu0 0
        %874 = vmatprep.subr.bf16.mxu0 0
        %875 = vmatpush2.bf16.msra.mxu0 0
        %876 = vmatprep.subr.bf16.mxu0 0
        %877 = vmatpush2.bf16.msra.mxu0 0
        %878 = vmatprep.subr.bf16.mxu0 0
        %879 = vmatpush2.bf16.msra.mxu0 0
        %880 = vmatprep.subr.bf16.mxu0 0
        %881 = vmatpush2.bf16.msra.mxu0 0
        %882 = vmatprep.subr.bf16.mxu0 0
        %883 = vmatpush2.bf16.msra.mxu0 0
        %884 = vmatprep.mubr.bf16.mxu0 0
        %885 = vmatmul.mubr.bf16.gmra.mxu0 %v847
        %v886 = vpop.f32.mrf.mxu0
        %v887 = vadd.f32 0.0, %v886
        %v888 = vpop.f32.mrf.mxu0
        %v889 = vpop.f32.mrf.mxu0
        %v890 = vpop.f32.mrf.mxu0
        %891 = vdwg.mxu0
        %v892 = vrcp.pop %v784
        %v893 = vrcp.pop %v787
        %v894 = vmul.f32 %v836, %v892
        %v895 = vmul.f32 %v887, %v893
        %v896 = vpack.c.bf16 %v895, %v894
        %v898 = vunpack.c.l.b16 %v896
        %v899 = vunpack.c.h.b16 %v896
        %v900 = vpack.c.b16 %v898, %v898
        %v901 = vpack.c.b16 %v899, %v899
        %902 = vrot.lane.b32.xlu0 %v900, 16
        %v903 = vpop.permute.xlu0 %902
        %904 = vrot.lane.b32.xlu0 %v901, 16
        %v905 = vpop.permute.xlu0 %904
        %vm908 = vcmask 257152
        %909 = vst.msk [vmem:[#allocation3] sm:$0xf] %vm908, %v903
        %910 = vst.msk [vmem:[#allocation3 + $0x4] sm:$0xf] %vm908, %v905
        %v911 = vld [vmem:[#allocation2] sm:$0xf]
        %v912 = vld [vmem:[#allocation2 + $0x8] sm:$0xf]
        %v913 = vld [vmem:[#allocation2 + $0x4] sm:$0xf]
        %v914 = vld [vmem:[#allocation2 + $0xc] sm:$0xf]
        %s915 = scalar_lea.vmem [#allocation10], 8
        %v916 = vld [vmem:[%s915] sm:$0xf]
        %v917 = vunpack.c.l.bf16 %v916
        %v919 = vunpack.c.l.b16 %v911
        %v920 = vpack.c.b16 %v919, %v919
        %921 = vrot.lane.b32.xlu0 %v920, 96
        %v922 = vpop.permute.xlu0 %921
        %923 = vrot.lane.b32.xlu0 %v920, 32
        %v924 = vpop.permute.xlu0 %923
        %v926 = vsel %vm431, %v922, 0
        %v929 = vsel %vm431, %v924, 0
        %931 = vmatprep.subr.bf16.mxu0 0
        %932 = vmatpush1.bf16.xpose.msra.mxu0 0
        %933 = vmatprep.subr.bf16.mxu0 0
        %934 = vmatpush1.bf16.xpose.msra.mxu0 0
        %935 = vmatprep.subr.bf16.mxu0 0
        %936 = vmatpush1.bf16.xpose.msra.mxu0 0
        %937 = vmatprep.subr.bf16.mxu0 0
        %938 = vmatpush1.bf16.xpose.msra.mxu0 0
        %939 = vmatprep.subr.bf16.mxu0 0
        %940 = vmatpush1.bf16.xpose.msra.mxu0 0
        %941 = vmatprep.subr.bf16.mxu0 0
        %942 = vmatpush1.bf16.xpose.msra.mxu0 0
        %943 = vmatprep.subr.bf16.mxu0 0
        %944 = vmatpush1.bf16.xpose.msra.mxu0 0
        %945 = vmatprep.subr.bf16.mxu0 0
        %946 = vmatpush1.bf16.xpose.msra.mxu0 %v929
        %947 = vmatprep.subr.bf16.mxu0 0
        %948 = vmatpush2.bf16.xpose.msra.mxu0 0
        %949 = vmatprep.subr.bf16.mxu0 0
        %950 = vmatpush2.bf16.xpose.msra.mxu0 0
        %951 = vmatprep.subr.bf16.mxu0 0
        %952 = vmatpush2.bf16.xpose.msra.mxu0 0
        %953 = vmatprep.subr.bf16.mxu0 0
        %954 = vmatpush2.bf16.xpose.msra.mxu0 0
        %955 = vmatprep.subr.bf16.mxu0 0
        %956 = vmatpush2.bf16.xpose.msra.mxu0 0
        %957 = vmatprep.subr.bf16.mxu0 0
        %958 = vmatpush2.bf16.xpose.msra.mxu0 0
        %959 = vmatprep.subr.bf16.mxu0 0
        %960 = vmatpush2.bf16.xpose.msra.mxu0 0
        %961 = vmatprep.subr.bf16.mxu0 0
        %962 = vmatpush2.bf16.xpose.msra.mxu0 0
        %963 = vmatprep.mubr.bf16.mxu0 0
        %964 = vmatmul.mubr.bf16.gmra.mxu0 %v926
        %v965 = vpop.f32.mrf.mxu0
        %v966 = vadd.f32 %v917, %v965
        %v967 = vpop.f32.mrf.mxu0
        %v968 = vpop.f32.mrf.mxu0
        %v969 = vpop.f32.mrf.mxu0
        %970 = vdwg.mxu0
        %v972 = vunpack.c.l.b16 %v912
        %v973 = vpack.c.b16 %v972, %v972
        %974 = vrot.lane.b32.xlu0 %v973, 96
        %v975 = vpop.permute.xlu0 %974
        %976 = vrot.lane.b32.xlu0 %v973, 32
        %v977 = vpop.permute.xlu0 %976
        %v979 = vsel %vm431, %v975, 0
        %v982 = vsel %vm431, %v977, 0
        %984 = vmatprep.subr.bf16.mxu0 0
        %985 = vmatpush1.bf16.xpose.msra.mxu0 0
        %986 = vmatprep.subr.bf16.mxu0 0
        %987 = vmatpush1.bf16.xpose.msra.mxu0 0
        %988 = vmatprep.subr.bf16.mxu0 0
        %989 = vmatpush1.bf16.xpose.msra.mxu0 0
        %990 = vmatprep.subr.bf16.mxu0 0
        %991 = vmatpush1.bf16.xpose.msra.mxu0 0
        %992 = vmatprep.subr.bf16.mxu0 0
        %993 = vmatpush1.bf16.xpose.msra.mxu0 0
        %994 = vmatprep.subr.bf16.mxu0 0
        %995 = vmatpush1.bf16.xpose.msra.mxu0 0
        %996 = vmatprep.subr.bf16.mxu0 0
        %997 = vmatpush1.bf16.xpose.msra.mxu0 0
        %998 = vmatprep.subr.bf16.mxu0 0
        %999 = vmatpush1.bf16.xpose.msra.mxu0 %v982
        %1000 = vmatprep.subr.bf16.mxu0 0
        %1001 = vmatpush2.bf16.xpose.msra.mxu0 0
        %1002 = vmatprep.subr.bf16.mxu0 0
        %1003 = vmatpush2.bf16.xpose.msra.mxu0 0
        %1004 = vmatprep.subr.bf16.mxu0 0
        %1005 = vmatpush2.bf16.xpose.msra.mxu0 0
        %1006 = vmatprep.subr.bf16.mxu0 0
        %1007 = vmatpush2.bf16.xpose.msra.mxu0 0
        %1008 = vmatprep.subr.bf16.mxu0 0
        %1009 = vmatpush2.bf16.xpose.msra.mxu0 0
        %1010 = vmatprep.subr.bf16.mxu0 0
        %1011 = vmatpush2.bf16.xpose.msra.mxu0 0
        %1012 = vmatprep.subr.bf16.mxu0 0
        %1013 = vmatpush2.bf16.xpose.msra.mxu0 0
        %1014 = vmatprep.subr.bf16.mxu0 0
        %1015 = vmatpush2.bf16.xpose.msra.mxu0 0
        %1016 = vmatprep.mubr.bf16.mxu0 0
        %1017 = vmatmul.mubr.bf16.gmra.mxu0 %v979
        %v1018 = vpop.f32.mrf.mxu0
        %v1019 = vadd.f32 %v917, %v1018
        %v1020 = vpop.f32.mrf.mxu0
        %v1021 = vpop.f32.mrf.mxu0
        %v1022 = vpop.f32.mrf.mxu0
        %1023 = vdwg.mxu0
        %v1024 = vsel %vm529, %v966, -inf
        %1025 = vmax.xlane.f32.xlu0 %v1024
        %v1026 = vpop.xlane.xlu0 %1025
        %v1027 = vsel %vm529, %v1019, -inf
        %1028 = vmax.xlane.f32.xlu0 %v1027
        %v1029 = vpop.xlane.xlu0 %1028
        %v1030 = vsub.f32 %v966, %v1026
        %v1031 = vsub.f32 %v1019, %v1029
        %v1032 = vmul.f32 %v1030, 1.442695
        %v1033 = vpow.pop %v1032
        %v1034 = vmul.f32 %v1031, 1.442695
        %v1035 = vpow.pop %v1034
        %v1036 = vsel %vm529, %v1033, 0.0
        %1037 = vadd.xlane.f32.xlu0 %v1036
        %v1038 = vpop.xlane.xlu0 %1037
        %v1039 = vsel %vm529, %v1035, 0.0
        %1040 = vadd.xlane.f32.xlu0 %v1039
        %v1041 = vpop.xlane.xlu0 %1040
        %v1042 = vpack.c.bf16 %v1033, %v1033
        %v1043 = vpack.c.bf16 %v1035, %v1035
        %v1045 = vunpack.c.l.b16 %v913
        %v1046 = vpack.c.b16 %v1045, %v1045
        %1047 = vrot.lane.b32.xlu0 %v1046, 96
        %v1048 = vpop.permute.xlu0 %1047
        %v1050 = vsel %vm529, %v1042, 0
        %v1053 = vsel %vm415, %v1048, 0
        %1055 = vmatprep.subr.bf16.mxu0 0
        %1056 = vmatpush1.bf16.msra.mxu0 0
        %1057 = vmatprep.subr.bf16.mxu0 0
        %1058 = vmatpush1.bf16.msra.mxu0 0
        %1059 = vmatprep.subr.bf16.mxu0 0
        %1060 = vmatpush1.bf16.msra.mxu0 0
        %1061 = vmatprep.subr.bf16.mxu0 0
        %1062 = vmatpush1.bf16.msra.mxu0 0
        %1063 = vmatprep.subr.bf16.mxu0 0
        %1064 = vmatpush1.bf16.msra.mxu0 0
        %1065 = vmatprep.subr.bf16.mxu0 0
        %1066 = vmatpush1.bf16.msra.mxu0 0
        %1067 = vmatprep.subr.bf16.mxu0 0
        %1068 = vmatpush1.bf16.msra.mxu0 0
        %1069 = vmatprep.subr.bf16.mxu0 0
        %1070 = vmatpush1.bf16.msra.mxu0 %v1053
        %1071 = vmatprep.subr.bf16.mxu0 0
        %1072 = vmatpush2.bf16.msra.mxu0 0
        %1073 = vmatprep.subr.bf16.mxu0 0
        %1074 = vmatpush2.bf16.msra.mxu0 0
        %1075 = vmatprep.subr.bf16.mxu0 0
        %1076 = vmatpush2.bf16.msra.mxu0 0
        %1077 = vmatprep.subr.bf16.mxu0 0
        %1078 = vmatpush2.bf16.msra.mxu0 0
        %1079 = vmatprep.subr.bf16.mxu0 0
        %1080 = vmatpush2.bf16.msra.mxu0 0
        %1081 = vmatprep.subr.bf16.mxu0 0
        %1082 = vmatpush2.bf16.msra.mxu0 0
        %1083 = vmatprep.subr.bf16.mxu0 0
        %1084 = vmatpush2.bf16.msra.mxu0 0
        %1085 = vmatprep.subr.bf16.mxu0 0
        %1086 = vmatpush2.bf16.msra.mxu0 0
        %1087 = vmatprep.mubr.bf16.mxu0 0
        %1088 = vmatmul.mubr.bf16.gmra.mxu0 %v1050
        %v1089 = vpop.f32.mrf.mxu0
        %v1090 = vadd.f32 0.0, %v1089
        %v1091 = vpop.f32.mrf.mxu0
        %v1092 = vpop.f32.mrf.mxu0
        %v1093 = vpop.f32.mrf.mxu0
        %1094 = vdwg.mxu0
        %v1096 = vunpack.c.l.b16 %v914
        %v1097 = vpack.c.b16 %v1096, %v1096
        %1098 = vrot.lane.b32.xlu0 %v1097, 96
        %v1099 = vpop.permute.xlu0 %1098
        %v1101 = vsel %vm529, %v1043, 0
        %v1104 = vsel %vm415, %v1099, 0
        %1106 = vmatprep.subr.bf16.mxu0 0
        %1107 = vmatpush1.bf16.msra.mxu0 0
        %1108 = vmatprep.subr.bf16.mxu0 0
        %1109 = vmatpush1.bf16.msra.mxu0 0
        %1110 = vmatprep.subr.bf16.mxu0 0
        %1111 = vmatpush1.bf16.msra.mxu0 0
        %1112 = vmatprep.subr.bf16.mxu0 0
        %1113 = vmatpush1.bf16.msra.mxu0 0
        %1114 = vmatprep.subr.bf16.mxu0 0
        %1115 = vmatpush1.bf16.msra.mxu0 0
        %1116 = vmatprep.subr.bf16.mxu0 0
        %1117 = vmatpush1.bf16.msra.mxu0 0
        %1118 = vmatprep.subr.bf16.mxu0 0
        %1119 = vmatpush1.bf16.msra.mxu0 0
        %1120 = vmatprep.subr.bf16.mxu0 0
        %1121 = vmatpush1.bf16.msra.mxu0 %v1104
        %1122 = vmatprep.subr.bf16.mxu0 0
        %1123 = vmatpush2.bf16.msra.mxu0 0
        %1124 = vmatprep.subr.bf16.mxu0 0
        %1125 = vmatpush2.bf16.msra.mxu0 0
        %1126 = vmatprep.subr.bf16.mxu0 0
        %1127 = vmatpush2.bf16.msra.mxu0 0
        %1128 = vmatprep.subr.bf16.mxu0 0
        %1129 = vmatpush2.bf16.msra.mxu0 0
        %1130 = vmatprep.subr.bf16.mxu0 0
        %1131 = vmatpush2.bf16.msra.mxu0 0
        %1132 = vmatprep.subr.bf16.mxu0 0
        %1133 = vmatpush2.bf16.msra.mxu0 0
        %1134 = vmatprep.subr.bf16.mxu0 0
        %1135 = vmatpush2.bf16.msra.mxu0 0
        %1136 = vmatprep.subr.bf16.mxu0 0
        %1137 = vmatpush2.bf16.msra.mxu0 0
        %1138 = vmatprep.mubr.bf16.mxu0 0
        %1139 = vmatmul.mubr.bf16.gmra.mxu0 %v1101
        %v1140 = vpop.f32.mrf.mxu0
        %v1141 = vadd.f32 0.0, %v1140
        %v1142 = vpop.f32.mrf.mxu0
        %v1143 = vpop.f32.mrf.mxu0
        %v1144 = vpop.f32.mrf.mxu0
        %1145 = vdwg.mxu0
        %v1146 = vrcp.pop %v1038
        %v1147 = vrcp.pop %v1041
        %v1148 = vmul.f32 %v1090, %v1146
        %v1149 = vmul.f32 %v1141, %v1147
        %v1150 = vpack.c.bf16 %v1149, %v1148
        %v1152 = vunpack.c.l.b16 %v1150
        %v1153 = vunpack.c.h.b16 %v1150
        %v1154 = vpack.c.b16 %v1152, %v1152
        %v1155 = vpack.c.b16 %v1153, %v1153
        %1156 = vrot.lane.b32.xlu0 %v1154, 32
        %v1157 = vpop.permute.xlu0 %1156
        %1158 = vrot.lane.b32.xlu0 %v1155, 32
        %v1159 = vpop.permute.xlu0 %1158
        %vm1162 = vcmask 388352
        %1163 = vst.msk [vmem:[#allocation3] sm:$0xf] %vm1162, %v1157
        %1164 = vst.msk [vmem:[#allocation3 + $0x4] sm:$0xf] %vm1162, %v1159
        %v1165 = vld [vmem:[#allocation2] sm:$0xf]
        %v1166 = vld [vmem:[#allocation2 + $0x8] sm:$0xf]
        %v1167 = vld [vmem:[#allocation2 + $0x4] sm:$0xf]
        %v1168 = vld [vmem:[#allocation2 + $0xc] sm:$0xf]
        %s1169 = scalar_lea.vmem [#allocation10], 12
        %v1170 = vld [vmem:[%s1169] sm:$0xf]
        %v1171 = vunpack.c.l.bf16 %v1170
        %v1173 = vunpack.c.l.b16 %v1165
        %v1174 = vpack.c.b16 %v1173, %v1173
        %1175 = vrot.lane.b32.xlu0 %v1174, 80
        %v1176 = vpop.permute.xlu0 %1175
        %1177 = vrot.lane.b32.xlu0 %v1174, 16
        %v1178 = vpop.permute.xlu0 %1177
        %v1180 = vsel %vm431, %v1176, 0
        %v1183 = vsel %vm431, %v1178, 0
        %1185 = vmatprep.subr.bf16.mxu0 0
        %1186 = vmatpush1.bf16.xpose.msra.mxu0 0
        %1187 = vmatprep.subr.bf16.mxu0 0
        %1188 = vmatpush1.bf16.xpose.msra.mxu0 0
        %1189 = vmatprep.subr.bf16.mxu0 0
        %1190 = vmatpush1.bf16.xpose.msra.mxu0 0
        %1191 = vmatprep.subr.bf16.mxu0 0
        %1192 = vmatpush1.bf16.xpose.msra.mxu0 0
        %1193 = vmatprep.subr.bf16.mxu0 0
        %1194 = vmatpush1.bf16.xpose.msra.mxu0 0
        %1195 = vmatprep.subr.bf16.mxu0 0
        %1196 = vmatpush1.bf16.xpose.msra.mxu0 0
        %1197 = vmatprep.subr.bf16.mxu0 0
        %1198 = vmatpush1.bf16.xpose.msra.mxu0 0
        %1199 = vmatprep.subr.bf16.mxu0 0
        %1200 = vmatpush1.bf16.xpose.msra.mxu0 %v1183
        %1201 = vmatprep.subr.bf16.mxu0 0
        %1202 = vmatpush2.bf16.xpose.msra.mxu0 0
        %1203 = vmatprep.subr.bf16.mxu0 0
        %1204 = vmatpush2.bf16.xpose.msra.mxu0 0
        %1205 = vmatprep.subr.bf16.mxu0 0
        %1206 = vmatpush2.bf16.xpose.msra.mxu0 0
        %1207 = vmatprep.subr.bf16.mxu0 0
        %1208 = vmatpush2.bf16.xpose.msra.mxu0 0
        %1209 = vmatprep.subr.bf16.mxu0 0
        %1210 = vmatpush2.bf16.xpose.msra.mxu0 0
        %1211 = vmatprep.subr.bf16.mxu0 0
        %1212 = vmatpush2.bf16.xpose.msra.mxu0 0
        %1213 = vmatprep.subr.bf16.mxu0 0
        %1214 = vmatpush2.bf16.xpose.msra.mxu0 0
        %1215 = vmatprep.subr.bf16.mxu0 0
        %1216 = vmatpush2.bf16.xpose.msra.mxu0 0
        %1217 = vmatprep.mubr.bf16.mxu0 0
        %1218 = vmatmul.mubr.bf16.gmra.mxu0 %v1180
        %v1219 = vpop.f32.mrf.mxu0
        %v1220 = vadd.f32 %v1171, %v1219
        %v1221 = vpop.f32.mrf.mxu0
        %v1222 = vpop.f32.mrf.mxu0
        %v1223 = vpop.f32.mrf.mxu0
        %1224 = vdwg.mxu0
        %v1226 = vunpack.c.l.b16 %v1166
        %v1227 = vpack.c.b16 %v1226, %v1226
        %1228 = vrot.lane.b32.xlu0 %v1227, 80
        %v1229 = vpop.permute.xlu0 %1228
        %1230 = vrot.lane.b32.xlu0 %v1227, 16
        %v1231 = vpop.permute.xlu0 %1230
        %v1233 = vsel %vm431, %v1229, 0
        %v1236 = vsel %vm431, %v1231, 0
        %1238 = vmatprep.subr.bf16.mxu0 0
        %1239 = vmatpush1.bf16.xpose.msra.mxu0 0
        %1240 = vmatprep.subr.bf16.mxu0 0
        %1241 = vmatpush1.bf16.xpose.msra.mxu0 0
        %1242 = vmatprep.subr.bf16.mxu0 0
        %1243 = vmatpush1.bf16.xpose.msra.mxu0 0
        %1244 = vmatprep.subr.bf16.mxu0 0
        %1245 = vmatpush1.bf16.xpose.msra.mxu0 0
        %1246 = vmatprep.subr.bf16.mxu0 0
        %1247 = vmatpush1.bf16.xpose.msra.mxu0 0
        %1248 = vmatprep.subr.bf16.mxu0 0
        %1249 = vmatpush1.bf16.xpose.msra.mxu0 0
        %1250 = vmatprep.subr.bf16.mxu0 0
        %1251 = vmatpush1.bf16.xpose.msra.mxu0 0
        %1252 = vmatprep.subr.bf16.mxu0 0
        %1253 = vmatpush1.bf16.xpose.msra.mxu0 %v1236
        %1254 = vmatprep.subr.bf16.mxu0 0
        %1255 = vmatpush2.bf16.xpose.msra.mxu0 0
        %1256 = vmatprep.subr.bf16.mxu0 0
        %1257 = vmatpush2.bf16.xpose.msra.mxu0 0
        %1258 = vmatprep.subr.bf16.mxu0 0
        %1259 = vmatpush2.bf16.xpose.msra.mxu0 0
        %1260 = vmatprep.subr.bf16.mxu0 0
        %1261 = vmatpush2.bf16.xpose.msra.mxu0 0
        %1262 = vmatprep.subr.bf16.mxu0 0
        %1263 = vmatpush2.bf16.xpose.msra.mxu0 0
        %1264 = vmatprep.subr.bf16.mxu0 0
        %1265 = vmatpush2.bf16.xpose.msra.mxu0 0
        %1266 = vmatprep.subr.bf16.mxu0 0
        %1267 = vmatpush2.bf16.xpose.msra.mxu0 0
        %1268 = vmatprep.subr.bf16.mxu0 0
        %1269 = vmatpush2.bf16.xpose.msra.mxu0 0
        %1270 = vmatprep.mubr.bf16.mxu0 0
        %1271 = vmatmul.mubr.bf16.gmra.mxu0 %v1233
        %v1272 = vpop.f32.mrf.mxu0
        %v1273 = vadd.f32 %v1171, %v1272
        %v1274 = vpop.f32.mrf.mxu0
        %v1275 = vpop.f32.mrf.mxu0
        %v1276 = vpop.f32.mrf.mxu0
        %1277 = vdwg.mxu0
        %v1278 = vsel %vm529, %v1220, -inf
        %1279 = vmax.xlane.f32.xlu0 %v1278
        %v1280 = vpop.xlane.xlu0 %1279
        %v1281 = vsel %vm529, %v1273, -inf
        %1282 = vmax.xlane.f32.xlu0 %v1281
        %v1283 = vpop.xlane.xlu0 %1282
        %v1284 = vsub.f32 %v1220, %v1280
        %v1285 = vsub.f32 %v1273, %v1283
        %v1286 = vmul.f32 %v1284, 1.442695
        %v1287 = vpow.pop %v1286
        %v1288 = vmul.f32 %v1285, 1.442695
        %v1289 = vpow.pop %v1288
        %v1290 = vsel %vm529, %v1287, 0.0
        %1291 = vadd.xlane.f32.xlu0 %v1290
        %v1292 = vpop.xlane.xlu0 %1291
        %v1293 = vsel %vm529, %v1289, 0.0
        %1294 = vadd.xlane.f32.xlu0 %v1293
        %v1295 = vpop.xlane.xlu0 %1294
        %v1296 = vpack.c.bf16 %v1287, %v1287
        %v1297 = vpack.c.bf16 %v1289, %v1289
        %v1299 = vunpack.c.l.b16 %v1167
        %v1300 = vpack.c.b16 %v1299, %v1299
        %1301 = vrot.lane.b32.xlu0 %v1300, 80
        %v1302 = vpop.permute.xlu0 %1301
        %v1304 = vsel %vm529, %v1296, 0
        %v1307 = vsel %vm415, %v1302, 0
        %1309 = vmatprep.subr.bf16.mxu0 0
        %1310 = vmatpush1.bf16.msra.mxu0 0
        %1311 = vmatprep.subr.bf16.mxu0 0
        %1312 = vmatpush1.bf16.msra.mxu0 0
        %1313 = vmatprep.subr.bf16.mxu0 0
        %1314 = vmatpush1.bf16.msra.mxu0 0
        %1315 = vmatprep.subr.bf16.mxu0 0
        %1316 = vmatpush1.bf16.msra.mxu0 0
        %1317 = vmatprep.subr.bf16.mxu0 0
        %1318 = vmatpush1.bf16.msra.mxu0 0
        %1319 = vmatprep.subr.bf16.mxu0 0
        %1320 = vmatpush1.bf16.msra.mxu0 0
        %1321 = vmatprep.subr.bf16.mxu0 0
        %1322 = vmatpush1.bf16.msra.mxu0 0
        %1323 = vmatprep.subr.bf16.mxu0 0
        %1324 = vmatpush1.bf16.msra.mxu0 %v1307
        %1325 = vmatprep.subr.bf16.mxu0 0
        %1326 = vmatpush2.bf16.msra.mxu0 0
        %1327 = vmatprep.subr.bf16.mxu0 0
        %1328 = vmatpush2.bf16.msra.mxu0 0
        %1329 = vmatprep.subr.bf16.mxu0 0
        %1330 = vmatpush2.bf16.msra.mxu0 0
        %1331 = vmatprep.subr.bf16.mxu0 0
        %1332 = vmatpush2.bf16.msra.mxu0 0
        %1333 = vmatprep.subr.bf16.mxu0 0
        %1334 = vmatpush2.bf16.msra.mxu0 0
        %1335 = vmatprep.subr.bf16.mxu0 0
        %1336 = vmatpush2.bf16.msra.mxu0 0
        %1337 = vmatprep.subr.bf16.mxu0 0
        %1338 = vmatpush2.bf16.msra.mxu0 0
        %1339 = vmatprep.subr.bf16.mxu0 0
        %1340 = vmatpush2.bf16.msra.mxu0 0
        %1341 = vmatprep.mubr.bf16.mxu0 0
        %1342 = vmatmul.mubr.bf16.gmra.mxu0 %v1304
        %v1343 = vpop.f32.mrf.mxu0
        %v1344 = vadd.f32 0.0, %v1343
        %v1345 = vpop.f32.mrf.mxu0
        %v1346 = vpop.f32.mrf.mxu0
        %v1347 = vpop.f32.mrf.mxu0
        %1348 = vdwg.mxu0
        %v1350 = vunpack.c.l.b16 %v1168
        %v1351 = vpack.c.b16 %v1350, %v1350
        %1352 = vrot.lane.b32.xlu0 %v1351, 80
        %v1353 = vpop.permute.xlu0 %1352
        %v1355 = vsel %vm529, %v1297, 0
        %v1358 = vsel %vm415, %v1353, 0
        %1360 = vmatprep.subr.bf16.mxu0 0
        %1361 = vmatpush1.bf16.msra.mxu0 0
        %1362 = vmatprep.subr.bf16.mxu0 0
        %1363 = vmatpush1.bf16.msra.mxu0 0
        %1364 = vmatprep.subr.bf16.mxu0 0
        %1365 = vmatpush1.bf16.msra.mxu0 0
        %1366 = vmatprep.subr.bf16.mxu0 0
        %1367 = vmatpush1.bf16.msra.mxu0 0
        %1368 = vmatprep.subr.bf16.mxu0 0
        %1369 = vmatpush1.bf16.msra.mxu0 0
        %1370 = vmatprep.subr.bf16.mxu0 0
        %1371 = vmatpush1.bf16.msra.mxu0 0
        %1372 = vmatprep.subr.bf16.mxu0 0
        %1373 = vmatpush1.bf16.msra.mxu0 0
        %1374 = vmatprep.subr.bf16.mxu0 0
        %1375 = vmatpush1.bf16.msra.mxu0 %v1358
        %1376 = vmatprep.subr.bf16.mxu0 0
        %1377 = vmatpush2.bf16.msra.mxu0 0
        %1378 = vmatprep.subr.bf16.mxu0 0
        %1379 = vmatpush2.bf16.msra.mxu0 0
        %1380 = vmatprep.subr.bf16.mxu0 0
        %1381 = vmatpush2.bf16.msra.mxu0 0
        %1382 = vmatprep.subr.bf16.mxu0 0
        %1383 = vmatpush2.bf16.msra.mxu0 0
        %1384 = vmatprep.subr.bf16.mxu0 0
        %1385 = vmatpush2.bf16.msra.mxu0 0
        %1386 = vmatprep.subr.bf16.mxu0 0
        %1387 = vmatpush2.bf16.msra.mxu0 0
        %1388 = vmatprep.subr.bf16.mxu0 0
        %1389 = vmatpush2.bf16.msra.mxu0 0
        %1390 = vmatprep.subr.bf16.mxu0 0
        %1391 = vmatpush2.bf16.msra.mxu0 0
        %1392 = vmatprep.mubr.bf16.mxu0 0
        %1393 = vmatmul.mubr.bf16.gmra.mxu0 %v1355
        %v1394 = vpop.f32.mrf.mxu0
        %v1395 = vadd.f32 0.0, %v1394
        %v1396 = vpop.f32.mrf.mxu0
        %v1397 = vpop.f32.mrf.mxu0
        %v1398 = vpop.f32.mrf.mxu0
        %1399 = vdwg.mxu0
        %v1400 = vrcp.pop %v1292
        %v1401 = vrcp.pop %v1295
        %v1402 = vmul.f32 %v1344, %v1400
        %v1403 = vmul.f32 %v1395, %v1401
        %v1404 = vpack.c.bf16 %v1403, %v1402
        %v1406 = vunpack.c.l.b16 %v1404
        %v1407 = vunpack.c.h.b16 %v1404
        %v1408 = vpack.c.b16 %v1406, %v1406
        %v1409 = vpack.c.b16 %v1407, %v1407
        %1410 = vrot.lane.b32.xlu0 %v1408, 48
        %v1411 = vpop.permute.xlu0 %1410
        %1412 = vrot.lane.b32.xlu0 %v1409, 48
        %v1413 = vpop.permute.xlu0 %1412
        %vm1416 = vcmask 519552
        %1417 = vst.msk [vmem:[#allocation3] sm:$0xf] %vm1416, %v1411
        %1418 = vst.msk [vmem:[#allocation3 + $0x4] sm:$0xf] %vm1416, %v1413
        %v1419 = vld [vmem:[#allocation3] sm:$0xf]
        %v1420 = vld [vmem:[#allocation3 + $0x4] sm:$0xf]
        %v1421 = vld [vmem:[#allocation9] sm:$0xf]
        %v1422 = vld [vmem:[#allocation9 + $0x4] sm:$0xf]
        %v1423 = vld [vmem:[#allocation9 + $0x8] sm:$0xf]
        %v1424 = vld [vmem:[#allocation9 + $0xc] sm:$0xf]
        %v1425 = vld [vmem:[#allocation9 + $0x10] sm:$0xf]
        %v1426 = vld [vmem:[#allocation9 + $0x14] sm:$0xf]
        %v1427 = vld [vmem:[#allocation9 + $0x18] sm:$0xf]
        %v1428 = vld [vmem:[#allocation9 + $0x1c] sm:$0xf]
        %v1429 = vld [vmem:[%s4] sm:$0x1]
        %v1431 = vlaneseq
        %v1432 = vshrl.u32 %v1431, 7
        %v1433 = vsub.s32 0, %v1432
        %v1434 = vrot.slane %v1429, %v1433
        %v1438 = vunpack.c.l.b16 %v1419
        %v1439 = vunpack.c.l.b16 %v1420
        %v1440 = vpack.c.b16 %v1439, %v1438
        %v1449 = vunpack.c.l.b16 %v1421
        %v1450 = vunpack.c.l.b16 %v1422
        %v1451 = vunpack.c.l.b16 %v1423
        %v1452 = vunpack.c.l.b16 %v1424
        %v1453 = vunpack.c.l.b16 %v1425
        %v1454 = vunpack.c.l.b16 %v1426
        %v1455 = vunpack.c.l.b16 %v1427
        %v1456 = vunpack.c.l.b16 %v1428
        %v1457 = vpack.c.b16 %v1450, %v1449
        %v1458 = vpack.c.b16 %v1452, %v1451
        %v1459 = vpack.c.b16 %v1454, %v1453
        %v1460 = vpack.c.b16 %v1456, %v1455
        %vm1465 = vcmask 523264
        %v1467 = vsel %vm1465, %v1440, 0
        %1469 = vmatprep.subr.bf16.mxu0 0
        %1470 = vmatpush1.bf16.msra.mxu0 0
        %1471 = vmatprep.subr.bf16.mxu0 0
        %1472 = vmatpush1.bf16.msra.mxu0 0
        %1473 = vmatprep.subr.bf16.mxu0 0
        %1474 = vmatpush1.bf16.msra.mxu0 0
        %1475 = vmatprep.subr.bf16.mxu0 0
        %1476 = vmatpush1.bf16.msra.mxu0 0
        %1477 = vmatprep.subr.bf16.mxu0 0
        %1478 = vmatpush1.bf16.msra.mxu0 %v1460
        %1479 = vmatprep.subr.bf16.mxu0 0
        %1480 = vmatpush1.bf16.msra.mxu0 %v1459
        %1481 = vmatprep.subr.bf16.mxu0 0
        %1482 = vmatpush1.bf16.msra.mxu0 %v1458
        %1483 = vmatprep.subr.bf16.mxu0 0
        %1484 = vmatpush1.bf16.msra.mxu0 %v1457
        %1485 = vmatprep.subr.bf16.mxu0 0
        %1486 = vmatpush2.bf16.msra.mxu0 0
        %1487 = vmatprep.subr.bf16.mxu0 0
        %1488 = vmatpush2.bf16.msra.mxu0 0
        %1489 = vmatprep.subr.bf16.mxu0 0
        %1490 = vmatpush2.bf16.msra.mxu0 0
        %1491 = vmatprep.subr.bf16.mxu0 0
        %1492 = vmatpush2.bf16.msra.mxu0 0
        %1493 = vmatprep.subr.bf16.mxu0 0
        %1494 = vmatpush2.bf16.msra.mxu0 0
        %1495 = vmatprep.subr.bf16.mxu0 0
        %1496 = vmatpush2.bf16.msra.mxu0 0
        %1497 = vmatprep.subr.bf16.mxu0 0
        %1498 = vmatpush2.bf16.msra.mxu0 0
        %1499 = vmatprep.subr.bf16.mxu0 0
        %1500 = vmatpush2.bf16.msra.mxu0 0
        %1501 = vmatprep.mubr.bf16.mxu0 0
        %1502 = vmatmul.mubr.bf16.gmra.mxu0 %v1467
        %v1503 = vpop.f32.mrf.mxu0
        %v1504 = vadd.f32 %v1434, %v1503
        %v1505 = vpop.f32.mrf.mxu0
        %v1506 = vpop.f32.mrf.mxu0
        %v1507 = vadd.f32 %v1434, %v1506
        %v1508 = vpop.f32.mrf.mxu0
        %1509 = vdwg.mxu0
        %1510 = vst [vmem:[%s313] sm:$0xff] %v1504
        %1511 = vst [vmem:[%s313 + $0x8] sm:$0xff] %v1507
        %s1512 = sand.u32 %s164, 1
        %s1513 = scalar_lea.sflag [#allocation6], %s1512
        %s1514 = sand.u32 %s164, 1
        %s1515 = smul.addr %s1514, 16
        %s1516 = scalar_lea.vmem [#allocation12], %s1515
        // Predicated region
        $region61: #{tpu_custom_call.1} parent=43 // pred_check
          %p1517 = pneg %p174
        $region62: #{tpu_custom_call.1} parent=43 // pred_check_branch
          %1519 = sbr.rel (%p1517) target = $region64
        $region63: #{tpu_custom_call.1} parent=43 // pred_region
          %s1520 = smul.u32 2, %s25
          %s1522 = ssub.s32 256, 256
          %1523 = vsyncadd %s1513, %s1522
          %s1524 = smul.addr %s1520, 128
          %s1525 = scalar_lea.hbm %s6, %s1524
          %s1526 = sshll.u32 %s1516, 4
          %s1527 = int_to_ptr.vmem [resolvable:$true] %s1526
          %1532 = dma.vmem_to_hbm [thread:$0]  %s1527, 256, %s1525, %s1513, 128, 128, 8
        $region64: #{tpu_custom_call.1} parent=43 // pred_fallthru
          _
      $region44: #{tpu_custom_call.1} parent=5 // pred_fallthru
        _
      %p1533 = scmp.le.s32.totalorder 2, %s20
      // Predicated region
      $region65: #{tpu_custom_call.1} parent=5 // pred_check
        %p1534 = pneg %p1533
      $region66: #{tpu_custom_call.1} parent=5 // pred_check_branch
        %1536 = sbr.rel (%p1534) target = $region68
      $region67: #{tpu_custom_call.1} parent=5 // pred_region
        %s1537 = ssub.s32 %s20, 2
        // Predicated region
        $region69: #{tpu_custom_call.1} parent=67 // pred_check
          %p1538 = pneg %p180
        $region70: #{tpu_custom_call.1} parent=67 // pred_check_branch
          %1540 = sbr.rel (%p1538) target = $region72
        $region71: #{tpu_custom_call.1} parent=67 // pred_region
          %s1541 = sand.u32 %s165, 1
          %s1542 = scalar_lea.sflag [#allocation6], %s1541
          %s1543 = sand.u32 %s165, 1
          %s1544 = smul.addr %s1543, 16
          %s1545 = scalar_lea.vmem [#allocation12], %s1544
          %1546 = dma.done %s1542, 256
        $region72: #{tpu_custom_call.1} parent=67 // pred_fallthru
          _
      $region68: #{tpu_custom_call.1} parent=5 // pred_fallthru
        _
    $region6: #{tpu_custom_call.1} parent=1 // loop_footer
      %s24 = sadd.s32 1, %s20
    $region7: #{tpu_custom_call.1} parent=1 // loop_footer_branch
      %19 = sbr.rel target = $region3
    $region8: #{tpu_custom_call.1} parent=1 // loop_exit
      _
    %1547 = vsyncpa [#allocation5], 1
    %s1548 = scalar_lea.sflag [#allocation5], 1
    %1549 = vsyncpa %s1548, 1
    %1550 = vsyncpa [#allocation8], 1
    %1551 = vsyncpa [#allocation11], 1
    %1552 = vsyncpa [#allocation6], 1
    %s1553 = scalar_lea.sflag [#allocation6], 1
    %1554 = vsyncpa %s1553, 1

// kernel: tpu_custom_call.1
$region0: #{tpu_custom_call.1}
  #allocation0 [shape = 'u32[]', space=smem, size = 0x4, offset = 0x4, fixed_abs, tag = 'smem constant byte address 0x4 - core index']
  #allocation1 [shape = 'u32[144,128]{1,0:T(1,128)}', space=vmem, size = 0x12000, scoped, tag = 'internal scratch']
  #allocation2 [shape = 'bf16[16,192]{1,0:T(8,128)(2,1)}', space=vmem, size = 0x2000, scoped, tag = 'scratch operand']
  #allocation3 [shape = 'bf16[16,64]{1,0:T(8,128)(2,1)}', space=vmem, size = 0x1000, scoped, tag = 'scratch operand']
  %s0 = inlined_call_operand.hbm [shape: f32[4,8,32], index: 0, kind: input, shape index: {}]
  %s1 = inlined_call_operand.hbm [shape: bf16[32,192], index: 1, kind: input, shape index: {}]
  %s2 = inlined_call_operand.vmem [shape: f32[1,192], index: 2, kind: input, shape index: {}]
  %s3 = inlined_call_operand.hbm [shape: bf16[64,128], index: 3, kind: input, shape index: {}]
  %s4 = inlined_call_operand.vmem [shape: f32[1,128], index: 4, kind: input, shape index: {}]
  %s5 = inlined_call_operand.hbm [shape: bf16[4,8,8], index: 5, kind: input, shape index: {}]
  %s6 = inlined_call_operand.hbm [shape: f32[4,8,128], index: 6, kind: output, shape index: {}]
  %s7 = sld [smem:[#allocation0]]
  $region73: #{tpu_custom_call.1} parent=0
    _
  %s9 = ssub.s32 1, %s7
  %s10 = scalar_select 0, %s9, %s7
  $region1: #{tpu_custom_call.1} parent=0
    #allocation4 [shape = 'u8[16384]{0}', space=vmem, size = 0x4000, scoped, tag = 'input window, operand 0']
    #allocation5 [shape = 's32[2]{0}', space=sflag, size = 0x8, scoped, tag = 'scoped memory for tpu_custom_call.1']
    #allocation6 [shape = 's32[2]{0}', space=sflag, size = 0x8, scoped, tag = 'scoped memory for tpu_custom_call.1']
    #allocation7 [shape = 'u8[16384]{0}', space=vmem, size = 0x4000, scoped, tag = 'input window, operand 1, single buffered']
    #allocation8 [shape = 's32[1]{0}', space=sflag, size = 0x4, scoped, tag = 'scoped memory for tpu_custom_call.1']
    #allocation9 [shape = 'u8[16384]{0}', space=vmem, size = 0x4000, scoped, tag = 'input window, operand 3, single buffered']
    #allocation10 [shape = 'u8[8192]{0}', space=vmem, size = 0x2000, scoped, tag = 'input window, operand 5, single buffered']
    #allocation11 [shape = 's32[1]{0}', space=sflag, size = 0x4, scoped, tag = 'scoped memory for tpu_custom_call.1']
    #allocation12 [shape = 'u8[16384]{0}', space=vmem, size = 0x4000, scoped, tag = 'output window, operand 0']
    %11 = vsyncpa [#allocation5], 0
    %s12 = scalar_lea.sflag [#allocation5], 1
    %13 = vsyncpa %s12, 0
    %14 = vsyncpa [#allocation8], 0
    %15 = vsyncpa [#allocation11], 0
    %16 = vsyncpa [#allocation6], 0
    %s17 = scalar_lea.sflag [#allocation6], 1
    %18 = vsyncpa %s17, 0
    loop: start=0, step=1, limit=4
    $region2: #{tpu_custom_call.1} parent=1 // loop_pre_header
      _
    $region3: #{tpu_custom_call.1} parent=1 // loop_header
      %s20 = sphi 0, %s24
      %p21 = scmp.ge.s32.totalorder %s20, 4
      %s30 = sphi 0, %s32
      %s33 = sphi 0, %s30
      %s34 = sphi 0, %s33
      %s50 = sphi 0, %s34
      %s54 = sphi 0, %s54
      %s56 = sphi 0, %s54
      %s57 = sphi 0, %s56
      %s71 = sphi 0, %s57
      %s75 = sphi 0, %s75
      %s77 = sphi 0, %s75
      %s78 = sphi 0, %s77
      %s92 = sphi 0, %s78
      %s96 = sphi 0, %s96
      %s98 = sphi 0, %s96
      %s99 = sphi 0, %s98
      %s113 = sphi 0, %s99
      %s117 = sphi 0, %s117
      %s119 = sphi 0, %s117
      %s120 = sphi 0, %s119
      %s134 = sphi 0, %s120
      %s138 = sphi 0, %s138
      %s140 = sphi 0, %s138
      %s141 = sphi 0, %s140
      %s155 = sphi 0, %s141
      %s161 = sphi 0, %s163
      %s164 = sphi 0, %s161
      %s165 = sphi 0, %s164
      %s181 = sphi 0, %s165
    $region4: #{tpu_custom_call.1} parent=1 // loop_header_branch
      %23 = sbr.rel (%p21) target = $region8
    $region5: #{tpu_custom_call.1} parent=1 // loop_body
      %s25 = ssub.s32 %s20, 1
      %s26 = ssub.s32 %s20, 2
      %s27 = sadd.s32 %s20, 1
      %s28 = ssub.s32 %s20, %s27
      %p29 = scmp.eq.s32.totalorder %s28, 0
      %s31 = sadd.s32 %s30, 1
      %s32 = scalar_select %p29, %s30, %s31
      %p35 = pneg %p29
      %p36 = scmp.eq.s32.totalorder %s20, 1
      %p37 = por %p35, %p36
      %p38 = scmp.ne.s32.totalorder %s30, %s33
      %p39 = scmp.eq.s32.totalorder %s20, 0
      %p40 = por %p38, %p39
      %p41 = scmp.ne.s32.totalorder %s30, %s33
      %p42 = scmp.eq.s32.totalorder %s25, 1
      %p43 = por %p41, %p42
      %p44 = scmp.ne.s32.totalorder %s33, %s34
      %p45 = scmp.eq.s32.totalorder %s25, 0
      %p46 = por %p44, %p45
      %p47 = scmp.ne.s32.totalorder %s33, %s34
      %p48 = scmp.eq.s32.totalorder %s26, 1
      %p49 = por %p47, %p48
      %p51 = scmp.ne.s32.totalorder %s34, %s50
      %p52 = scmp.eq.s32.totalorder %s26, 0
      %p53 = por %p51, %p52
      %s55 = sadd.s32 %s54, 1
      %p58 = scmp.eq.s32.totalorder %s20, 1
      %p59 = scmp.ne.s32.totalorder %s54, %s56
      %p60 = scmp.eq.s32.totalorder %s20, 0
      %p61 = por %p59, %p60
      %p62 = scmp.ne.s32.totalorder %s54, %s56
      %p63 = scmp.eq.s32.totalorder %s25, 1
      %p64 = por %p62, %p63
      %p65 = scmp.ne.s32.totalorder %s56, %s57
      %p66 = scmp.eq.s32.totalorder %s25, 0
      %p67 = por %p65, %p66
      %p68 = scmp.ne.s32.totalorder %s56, %s57
      %p69 = scmp.eq.s32.totalorder %s26, 1
      %p70 = por %p68, %p69
      %p72 = scmp.ne.s32.totalorder %s57, %s71
      %p73 = scmp.eq.s32.totalorder %s26, 0
      %p74 = por %p72, %p73
      %s76 = sadd.s32 %s75, 1
      %p79 = scmp.eq.s32.totalorder %s20, 1
      %p80 = scmp.ne.s32.totalorder %s75, %s77
      %p81 = scmp.eq.s32.totalorder %s20, 0
      %p82 = por %p80, %p81
      %p83 = scmp.ne.s32.totalorder %s75, %s77
      %p84 = scmp.eq.s32.totalorder %s25, 1
      %p85 = por %p83, %p84
      %p86 = scmp.ne.s32.totalorder %s77, %s78
      %p87 = scmp.eq.s32.totalorder %s25, 0
      %p88 = por %p86, %p87
      %p89 = scmp.ne.s32.totalorder %s77, %s78
      %p90 = scmp.eq.s32.totalorder %s26, 1
      %p91 = por %p89, %p90
      %p93 = scmp.ne.s32.totalorder %s78, %s92
      %p94 = scmp.eq.s32.totalorder %s26, 0
      %p95 = por %p93, %p94
      %s97 = sadd.s32 %s96, 1
      %p100 = scmp.eq.s32.totalorder %s20, 1
      %p101 = scmp.ne.s32.totalorder %s96, %s98
      %p102 = scmp.eq.s32.totalorder %s20, 0
      %p103 = por %p101, %p102
      %p104 = scmp.ne.s32.totalorder %s96, %s98
      %p105 = scmp.eq.s32.totalorder %s25, 1
      %p106 = por %p104, %p105
      %p107 = scmp.ne.s32.totalorder %s98, %s99
      %p108 = scmp.eq.s32.totalorder %s25, 0
      %p109 = por %p107, %p108
      %p110 = scmp.ne.s32.totalorder %s98, %s99
      %p111 = scmp.eq.s32.totalorder %s26, 1
      %p112 = por %p110, %p111
      %p114 = scmp.ne.s32.totalorder %s99, %s113
      %p115 = scmp.eq.s32.totalorder %s26, 0
      %p116 = por %p114, %p115
      %s118 = sadd.s32 %s117, 1
      %p121 = scmp.eq.s32.totalorder %s20, 1
      %p122 = scmp.ne.s32.totalorder %s117, %s119
      %p123 = scmp.eq.s32.totalorder %s20, 0
      %p124 = por %p122, %p123
      %p125 = scmp.ne.s32.totalorder %s117, %s119
      %p126 = scmp.eq.s32.totalorder %s25, 1
      %p127 = por %p125, %p126
      %p128 = scmp.ne.s32.totalorder %s119, %s120
      %p129 = scmp.eq.s32.totalorder %s25, 0
      %p130 = por %p128, %p129
      %p131 = scmp.ne.s32.totalorder %s119, %s120
      %p132 = scmp.eq.s32.totalorder %s26, 1
      %p133 = por %p131, %p132
      %p135 = scmp.ne.s32.totalorder %s120, %s134
      %p136 = scmp.eq.s32.totalorder %s26, 0
      %p137 = por %p135, %p136
      %s139 = sadd.s32 %s138, 1
      %p142 = scmp.eq.s32.totalorder %s20, 1
      %p143 = scmp.ne.s32.totalorder %s138, %s140
      %p144 = scmp.eq.s32.totalorder %s20, 0
      %p145 = por %p143, %p144
      %p146 = scmp.ne.s32.totalorder %s138, %s140
      %p147 = scmp.eq.s32.totalorder %s25, 1
      %p148 = por %p146, %p147
      %p149 = scmp.ne.s32.totalorder %s140, %s141
      %p150 = scmp.eq.s32.totalorder %s25, 0
      %p151 = por %p149, %p150
      %p152 = scmp.ne.s32.totalorder %s140, %s141
      %p153 = scmp.eq.s32.totalorder %s26, 1
      %p154 = por %p152, %p153
      %p156 = scmp.ne.s32.totalorder %s141, %s155
      %p157 = scmp.eq.s32.totalorder %s26, 0
      %p158 = por %p156, %p157
      %s159 = ssub.s32 %s20, %s27
      %p160 = scmp.eq.s32.totalorder %s159, 0
      %s162 = sadd.s32 %s161, 1
      %s163 = scalar_select %p160, %s161, %s162
      %p166 = pneg %p160
      %p167 = scmp.eq.s32.totalorder %s20, 1
      %p168 = por %p166, %p167
      %p169 = scmp.ne.s32.totalorder %s161, %s164
      %p170 = scmp.eq.s32.totalorder %s20, 0
      %p171 = por %p169, %p170
      %p172 = scmp.ne.s32.totalorder %s161, %s164
      %p173 = scmp.eq.s32.totalorder %s25, 1
      %p174 = por %p172, %p173
      %p175 = scmp.ne.s32.totalorder %s164, %s165
      %p176 = scmp.eq.s32.totalorder %s25, 0
      %p177 = por %p175, %p176
      %p178 = scmp.ne.s32.totalorder %s164, %s165
      %p179 = scmp.eq.s32.totalorder %s26, 1
      %p180 = por %p178, %p179
      %p182 = scmp.ne.s32.totalorder %s165, %s181
      %p183 = scmp.eq.s32.totalorder %s26, 0
      %p184 = por %p182, %p183
      %p185 = scmp.le.s32.totalorder 1, %s20
      %p186 = scmp.lt.s32.totalorder %s20, 3
      %p187 = pnand %p185, %p186
      %p188 = pneg %p187
      // Predicated region
      $region9: #{tpu_custom_call.1} parent=5 // pred_check
        _
      $region10: #{tpu_custom_call.1} parent=5 // pred_check_branch
        %190 = sbr.rel (%p187) target = $region12
      $region11: #{tpu_custom_call.1} parent=5 // pred_region
        %s191 = ssub.s32 %s20, 1
        // Predicated region
        $region13: #{tpu_custom_call.1} parent=11 // pred_check
          %p192 = pneg %p67
        $region14: #{tpu_custom_call.1} parent=11 // pred_check_branch
          %194 = sbr.rel (%p192) target = $region16
        $region15: #{tpu_custom_call.1} parent=11 // pred_region
          %s196 = ssub.s32 512, 512
          %197 = vsyncadd [#allocation8], %s196
          %s198 = sshll.u32 [#allocation7], 4
          %s199 = int_to_ptr.vmem [resolvable:$true] %s198
          %204 = dma.hbm_to_vmem [thread:$0]  %s1, 512, %s199, [#allocation8], 128, 128, 8
        $region16: #{tpu_custom_call.1} parent=11 // pred_fallthru
          _
        // Predicated region
        $region17: #{tpu_custom_call.1} parent=11 // pred_check
          %p205 = pneg %p88
        $region18: #{tpu_custom_call.1} parent=11 // pred_check_branch
          %207 = sbr.rel (%p205) target = $region20
        $region19: #{tpu_custom_call.1} parent=11 // pred_region
          _
        $region20: #{tpu_custom_call.1} parent=11 // pred_fallthru
          _
        // Predicated region
        $region21: #{tpu_custom_call.1} parent=11 // pred_check
          %p208 = pneg %p109
        $region22: #{tpu_custom_call.1} parent=11 // pred_check_branch
          %210 = sbr.rel (%p208) target = $region24
        $region23: #{tpu_custom_call.1} parent=11 // pred_region
          %s212 = ssub.s32 512, 512
          %213 = vsyncadd [#allocation8], %s212
          %s214 = sshll.u32 [#allocation9], 4
          %s215 = int_to_ptr.vmem [resolvable:$true] %s214
          %220 = dma.hbm_to_vmem [thread:$0]  %s3, 512, %s215, [#allocation8], 64, 64, 4
        $region24: #{tpu_custom_call.1} parent=11 // pred_fallthru
          _
        // Predicated region
        $region25: #{tpu_custom_call.1} parent=11 // pred_check
          %p221 = pneg %p130
        $region26: #{tpu_custom_call.1} parent=11 // pred_check_branch
          %223 = sbr.rel (%p221) target = $region28
        $region27: #{tpu_custom_call.1} parent=11 // pred_region
          _
        $region28: #{tpu_custom_call.1} parent=11 // pred_fallthru
          _
        // Predicated region
        $region29: #{tpu_custom_call.1} parent=11 // pred_check
          %p224 = pneg %p151
        $region30: #{tpu_custom_call.1} parent=11 // pred_check_branch
          %226 = sbr.rel (%p224) target = $region32
        $region31: #{tpu_custom_call.1} parent=11 // pred_region
          %s228 = ssub.s32 256, 256
          %229 = vsyncadd [#allocation11], %s228
          %s230 = sshll.u32 [#allocation10], 4
          %s231 = int_to_ptr.vmem [resolvable:$true] %s230
          %236 = dma.hbm_to_vmem [thread:$0]  %s5, 256, %s231, [#allocation11], 64, 64, 4
        $region32: #{tpu_custom_call.1} parent=11 // pred_fallthru
          _
      $region12: #{tpu_custom_call.1} parent=5 // pred_fallthru
        _
      %p237 = scmp.lt.s32.totalorder %s20, 2
      // Predicated region
      $region33: #{tpu_custom_call.1} parent=5 // pred_check
        %p238 = pneg %p237
      $region34: #{tpu_custom_call.1} parent=5 // pred_check_branch
        %240 = sbr.rel (%p238) target = $region36
      $region35: #{tpu_custom_call.1} parent=5 // pred_region
        // Predicated region
        $region37: #{tpu_custom_call.1} parent=35 // pred_check
          %p241 = pneg %p40
        $region38: #{tpu_custom_call.1} parent=35 // pred_check_branch
          %243 = sbr.rel (%p241) target = $region40
        $region39: #{tpu_custom_call.1} parent=35 // pred_region
          %s244 = sand.u32 %s30, 1
          %s245 = scalar_lea.sflag [#allocation5], %s244
          %s246 = sand.u32 %s30, 1
          %s247 = smul.addr %s246, 16
          %s248 = scalar_lea.vmem [#allocation4], %s247
          %s249 = smul.u32 2, %s20
          %s251 = ssub.s32 256, 256
          %252 = vsyncadd %s245, %s251
          %s253 = smul.addr %s249, 128
          %s254 = scalar_lea.hbm %s0, %s253
          %s255 = sshll.u32 %s248, 4
          %s256 = int_to_ptr.vmem [resolvable:$true] %s255
          %261 = dma.hbm_to_vmem [thread:$0]  %s254, 256, %s256, %s245, 128, 128, 8
        $region40: #{tpu_custom_call.1} parent=35 // pred_fallthru
          _
      $region36: #{tpu_custom_call.1} parent=5 // pred_fallthru
        _
      %p262 = scmp.le.s32.totalorder 1, %s20
      %p263 = scmp.lt.s32.totalorder %s20, 3
      %p264 = pnand %p262, %p263
      %p265 = pneg %p264
      // Predicated region
      $region41: #{tpu_custom_call.1} parent=5 // pred_check
        _
      $region42: #{tpu_custom_call.1} parent=5 // pred_check_branch
        %267 = sbr.rel (%p264) target = $region44
      $region43: #{tpu_custom_call.1} parent=5 // pred_region
        %s268 = ssub.s32 %s20, 1
        %s269 = sand.u32 %s33, 1
        %s270 = scalar_lea.sflag [#allocation5], %s269
        %s271 = sand.u32 %s33, 1
        %s272 = smul.addr %s271, 16
        %s273 = scalar_lea.vmem [#allocation4], %s272
        // Predicated region
        $region45: #{tpu_custom_call.1} parent=43 // pred_check
          %p274 = pneg %p46
        $region46: #{tpu_custom_call.1} parent=43 // pred_check_branch
          %276 = sbr.rel (%p274) target = $region48
        $region47: #{tpu_custom_call.1} parent=43 // pred_region
          %277 = dma.done %s270, 256
        $region48: #{tpu_custom_call.1} parent=43 // pred_fallthru
          _
        // Predicated region
        $region49: #{tpu_custom_call.1} parent=43 // pred_check
          %p278 = pneg %p67
        $region50: #{tpu_custom_call.1} parent=43 // pred_check_branch
          %280 = sbr.rel (%p278) target = $region52
        $region51: #{tpu_custom_call.1} parent=43 // pred_region
          %281 = dma.done [#allocation8], 512
        $region52: #{tpu_custom_call.1} parent=43 // pred_fallthru
          _
        // Predicated region
        $region53: #{tpu_custom_call.1} parent=43 // pred_check
          %p282 = pneg %p109
        $region54: #{tpu_custom_call.1} parent=43 // pred_check_branch
          %284 = sbr.rel (%p282) target = $region56
        $region55: #{tpu_custom_call.1} parent=43 // pred_region
          %285 = dma.done [#allocation8], 512
        $region56: #{tpu_custom_call.1} parent=43 // pred_fallthru
          _
        // Predicated region
        $region57: #{tpu_custom_call.1} parent=43 // pred_check
          %p286 = pneg %p151
        $region58: #{tpu_custom_call.1} parent=43 // pred_check_branch
          %288 = sbr.rel (%p286) target = $region60
        $region59: #{tpu_custom_call.1} parent=43 // pred_region
          %289 = dma.done [#allocation11], 256
        $region60: #{tpu_custom_call.1} parent=43 // pred_fallthru
          _
        %s290 = sand.u32 %s33, 1
        %s291 = scalar_lea.sflag [#allocation5], %s290
        %s292 = sand.u32 %s33, 1
        %s293 = smul.addr %s292, 16
        %s294 = scalar_lea.vmem [#allocation4], %s293
        %p295 = pneg %p46
        %p296 = pneg %p43
        %p297 = pneg %p67
        %p298 = pneg %p64
        %p299 = pneg %p88
        %p300 = pneg %p85
        %p301 = pneg %p109
        %p302 = pneg %p106
        %p303 = pneg %p130
        %p304 = pneg %p127
        %p305 = pneg %p151
        %p306 = pneg %p148
        %p307 = pneg %p177
        %p308 = pneg %p174
        %s309 = sand.u32 %s164, 1
        %s310 = scalar_lea.sflag [#allocation6], %s309
        %s311 = sand.u32 %s164, 1
        %s312 = smul.addr %s311, 16
        %s313 = scalar_lea.vmem [#allocation12], %s312
        %s314 = smul.u32 2, %s25
        %s315 = smul.u32 2, %s25
        %v317 = vld [vmem:[%s273] sm:$0xff]
        %v318 = vld [vmem:[%s273 + $0x8] sm:$0xff]
        %v319 = vpack.c.bf16 %v318, %v317
        %v320 = vld [vmem:[#allocation7] sm:$0xff]
        %v321 = vld [vmem:[#allocation7 + $0x8] sm:$0xff]
        %v322 = vld [vmem:[#allocation7 + $0x10] sm:$0xff]
        %v323 = vld [vmem:[#allocation7 + $0x18] sm:$0xff]
        %v324 = vld [vmem:[%s2] sm:$0x3]
        %v326 = vlaneseq
        %v327 = vshrl.u32 %v326, 7
        %v328 = vsub.s32 0, %v327
        %v329 = vrot.slane %v324, %v328
        %v330 = vlaneseq
        %v331 = vshrl.u32 %v330, 7
        %v332 = vsub.s32 1, %v331
        %v333 = vrot.slane %v324, %v332
        %v340 = vunpack.c.l.b16 %v320
        %v341 = vunpack.c.h.b16 %v320
        %v342 = vunpack.c.l.b16 %v321
        %v343 = vunpack.c.h.b16 %v321
        %v344 = vunpack.c.l.b16 %v322
        %v345 = vunpack.c.h.b16 %v322
        %v346 = vunpack.c.l.b16 %v323
        %v347 = vunpack.c.h.b16 %v323
        %v348 = vpack.c.b16 %v342, %v340
        %v349 = vpack.c.b16 %v343, %v341
        %v350 = vpack.c.b16 %v346, %v344
        %v351 = vpack.c.b16 %v347, %v345
        %vm356 = vcmask 261120
        %v358 = vsel %vm356, %v319, 0
        %360 = vmatprep.subr.bf16.mxu0 0
        %361 = vmatpush1.bf16.msra.mxu0 0
        %362 = vmatprep.subr.bf16.mxu0 0
        %363 = vmatpush1.bf16.msra.mxu0 0
        %364 = vmatprep.subr.bf16.mxu0 0
        %365 = vmatpush1.bf16.msra.mxu0 0
        %366 = vmatprep.subr.bf16.mxu0 0
        %367 = vmatpush1.bf16.msra.mxu0 0
        %368 = vmatprep.subr.bf16.mxu0 0
        %369 = vmatpush1.bf16.msra.mxu0 0
        %370 = vmatprep.subr.bf16.mxu0 0
        %371 = vmatpush1.bf16.msra.mxu0 0
        %372 = vmatprep.subr.bf16.mxu0 %v351
        %373 = vmatpush1.bf16.msra.mxu0 %v350
        %374 = vmatprep.subr.bf16.mxu0 %v349
        %375 = vmatpush1.bf16.msra.mxu0 %v348
        %376 = vmatprep.subr.bf16.mxu0 0
        %377 = vmatpush2.bf16.msra.mxu0 0
        %378 = vmatprep.subr.bf16.mxu0 0
        %379 = vmatpush2.bf16.msra.mxu0 0
        %380 = vmatprep.subr.bf16.mxu0 0
        %381 = vmatpush2.bf16.msra.mxu0 0
        %382 = vmatprep.subr.bf16.mxu0 0
        %383 = vmatpush2.bf16.msra.mxu0 0
        %384 = vmatprep.subr.bf16.mxu0 0
        %385 = vmatpush2.bf16.msra.mxu0 0
        %386 = vmatprep.subr.bf16.mxu0 0
        %387 = vmatpush2.bf16.msra.mxu0 0
        %388 = vmatprep.subr.bf16.mxu0 0
        %389 = vmatpush2.bf16.msra.mxu0 0
        %390 = vmatprep.subr.bf16.mxu0 0
        %391 = vmatpush2.bf16.msra.mxu0 0
        %392 = vmatprep.mubr.bf16.mxu0 0
        %393 = vmatmul.mubr.bf16.gmra.mxu0 %v358
        %v394 = vpop.f32.mrf.mxu0
        %v395 = vadd.f32 %v329, %v394
        %v396 = vpop.f32.mrf.mxu0
        %v397 = vadd.f32 %v333, %v396
        %v398 = vpop.f32.mrf.mxu0
        %v399 = vadd.f32 %v329, %v398
        %v400 = vpop.f32.mrf.mxu0
        %v401 = vadd.f32 %v333, %v400
        %402 = vdwg.mxu0
        %v403 = vpack.c.bf16 %v399, %v395
        %v404 = vpack.c.bf16 %v401, %v397
        %v407 = vunpack.c.l.b16 %v403
        %v408 = vunpack.c.l.b16 %v404
        %v409 = vunpack.c.h.b16 %v403
        %v410 = vunpack.c.h.b16 %v404
        %v411 = vpack.c.b16 %v408, %v407
        %v412 = vpack.c.b16 %v410, %v409
        %vm415 = vcmask 1043456
        %vm416 = vcmask 523268
        %vm417 = vmor %vm416, %vm415
        %418 = vst.msk [vmem:[#allocation2] sm:$0xff] %vm417, %v411
        %419 = vst.msk [vmem:[#allocation2 + $0x8] sm:$0xff] %vm417, %v412
        %v420 = vld [vmem:[#allocation2] sm:$0xf]
        %v421 = vld [vmem:[#allocation2 + $0x8] sm:$0xf]
        %v422 = vld [vmem:[#allocation2 + $0x4] sm:$0xf]
        %v423 = vld [vmem:[#allocation2 + $0xc] sm:$0xf]
        %v424 = vld [vmem:[#allocation10] sm:$0xf]
        %v425 = vunpack.c.l.bf16 %v424
        %v427 = vunpack.c.l.b16 %v420
        %v428 = vpack.c.b16 %v427, %v427
        %429 = vrot.lane.b32.xlu0 %v428, 64
        %v430 = vpop.permute.xlu0 %429
        %vm431 = vcmask 130048
        %v433 = vsel %vm431, %v420, 0
        %v436 = vsel %vm431, %v430, 0
        %438 = vmatprep.subr.bf16.mxu0 0
        %439 = vmatpush1.bf16.xpose.msra.mxu0 0
        %440 = vmatprep.subr.bf16.mxu0 0
        %441 = vmatpush1.bf16.xpose.msra.mxu0 0
        %442 = vmatprep.subr.bf16.mxu0 0
        %443 = vmatpush1.bf16.xpose.msra.mxu0 0
        %444 = vmatprep.subr.bf16.mxu0 0
        %445 = vmatpush1.bf16.xpose.msra.mxu0 0
        %446 = vmatprep.subr.bf16.mxu0 0
        %447 = vmatpush1.bf16.xpose.msra.mxu0 0
        %448 = vmatprep.subr.bf16.mxu0 0
        %449 = vmatpush1.bf16.xpose.msra.mxu0 0
        %450 = vmatprep.subr.bf16.mxu0 0
        %451 = vmatpush1.bf16.xpose.msra.mxu0 0
        %452 = vmatprep.subr.bf16.mxu0 0
        %453 = vmatpush1.bf16.xpose.msra.mxu0 %v436
        %454 = vmatprep.subr.bf16.mxu0 0
        %455 = vmatpush2.bf16.xpose.msra.mxu0 0
        %456 = vmatprep.subr.bf16.mxu0 0
        %457 = vmatpush2.bf16.xpose.msra.mxu0 0
        %458 = vmatprep.subr.bf16.mxu0 0
        %459 = vmatpush2.bf16.xpose.msra.mxu0 0
        %460 = vmatprep.subr.bf16.mxu0 0
        %461 = vmatpush2.bf16.xpose.msra.mxu0 0
        %462 = vmatprep.subr.bf16.mxu0 0
        %463 = vmatpush2.bf16.xpose.msra.mxu0 0
        %464 = vmatprep.subr.bf16.mxu0 0
        %465 = vmatpush2.bf16.xpose.msra.mxu0 0
        %466 = vmatprep.subr.bf16.mxu0 0
        %467 = vmatpush2.bf16.xpose.msra.mxu0 0
        %468 = vmatprep.subr.bf16.mxu0 0
        %469 = vmatpush2.bf16.xpose.msra.mxu0 0
        %470 = vmatprep.mubr.bf16.mxu0 0
        %471 = vmatmul.mubr.bf16.gmra.mxu0 %v433
        %v472 = vpop.f32.mrf.mxu0
        %v473 = vadd.f32 %v425, %v472
        %v474 = vpop.f32.mrf.mxu0
        %v475 = vpop.f32.mrf.mxu0
        %v476 = vpop.f32.mrf.mxu0
        %477 = vdwg.mxu0
        %v479 = vunpack.c.l.b16 %v421
        %v480 = vpack.c.b16 %v479, %v479
        %481 = vrot.lane.b32.xlu0 %v480, 64
        %v482 = vpop.permute.xlu0 %481
        %v484 = vsel %vm431, %v421, 0
        %v487 = vsel %vm431, %v482, 0
        %489 = vmatprep.subr.bf16.mxu0 0
        %490 = vmatpush1.bf16.xpose.msra.mxu0 0
        %491 = vmatprep.subr.bf16.mxu0 0
        %492 = vmatpush1.bf16.xpose.msra.mxu0 0
        %493 = vmatprep.subr.bf16.mxu0 0
        %494 = vmatpush1.bf16.xpose.msra.mxu0 0
        %495 = vmatprep.subr.bf16.mxu0 0
        %496 = vmatpush1.bf16.xpose.msra.mxu0 0
        %497 = vmatprep.subr.bf16.mxu0 0
        %498 = vmatpush1.bf16.xpose.msra.mxu0 0
        %499 = vmatprep.subr.bf16.mxu0 0
        %500 = vmatpush1.bf16.xpose.msra.mxu0 0
        %501 = vmatprep.subr.bf16.mxu0 0
        %502 = vmatpush1.bf16.xpose.msra.mxu0 0
        %503 = vmatprep.subr.bf16.mxu0 0
        %504 = vmatpush1.bf16.xpose.msra.mxu0 %v487
        %505 = vmatprep.subr.bf16.mxu0 0
        %506 = vmatpush2.bf16.xpose.msra.mxu0 0
        %507 = vmatprep.subr.bf16.mxu0 0
        %508 = vmatpush2.bf16.xpose.msra.mxu0 0
        %509 = vmatprep.subr.bf16.mxu0 0
        %510 = vmatpush2.bf16.xpose.msra.mxu0 0
        %511 = vmatprep.subr.bf16.mxu0 0
        %512 = vmatpush2.bf16.xpose.msra.mxu0 0
        %513 = vmatprep.subr.bf16.mxu0 0
        %514 = vmatpush2.bf16.xpose.msra.mxu0 0
        %515 = vmatprep.subr.bf16.mxu0 0
        %516 = vmatpush2.bf16.xpose.msra.mxu0 0
        %517 = vmatprep.subr.bf16.mxu0 0
        %518 = vmatpush2.bf16.xpose.msra.mxu0 0
        %519 = vmatprep.subr.bf16.mxu0 0
        %520 = vmatpush2.bf16.xpose.msra.mxu0 0
        %521 = vmatprep.mubr.bf16.mxu0 0
        %522 = vmatmul.mubr.bf16.gmra.mxu0 %v484
        %v523 = vpop.f32.mrf.mxu0
        %v524 = vadd.f32 %v425, %v523
        %v525 = vpop.f32.mrf.mxu0
        %v526 = vpop.f32.mrf.mxu0
        %v527 = vpop.f32.mrf.mxu0
        %528 = vdwg.mxu0
        %vm529 = vcmask 64512
        %v530 = vsel %vm529, %v473, -inf
        %531 = vmax.xlane.f32.xlu0 %v530
        %v532 = vpop.xlane.xlu0 %531
        %v533 = vsel %vm529, %v524, -inf
        %534 = vmax.xlane.f32.xlu0 %v533
        %v535 = vpop.xlane.xlu0 %534
        %v536 = vsub.f32 %v473, %v532
        %v537 = vsub.f32 %v524, %v535
        %v538 = vmul.f32 %v536, 1.442695
        %v539 = vpow.pop %v538
        %v540 = vmul.f32 %v537, 1.442695
        %v541 = vpow.pop %v540
        %v542 = vsel %vm529, %v539, 0.0
        %543 = vadd.xlane.f32.xlu0 %v542
        %v544 = vpop.xlane.xlu0 %543
        %v545 = vsel %vm529, %v541, 0.0
        %546 = vadd.xlane.f32.xlu0 %v545
        %v547 = vpop.xlane.xlu0 %546
        %v548 = vpack.c.bf16 %v539, %v539
        %v549 = vpack.c.bf16 %v541, %v541
        %v551 = vsel %vm529, %v548, 0
        %v554 = vsel %vm415, %v422, 0
        %556 = vmatprep.subr.bf16.mxu0 0
        %557 = vmatpush1.bf16.msra.mxu0 0
        %558 = vmatprep.subr.bf16.mxu0 0
        %559 = vmatpush1.bf16.msra.mxu0 0
        %560 = vmatprep.subr.bf16.mxu0 0
        %561 = vmatpush1.bf16.msra.mxu0 0
        %562 = vmatprep.subr.bf16.mxu0 0
        %563 = vmatpush1.bf16.msra.mxu0 0
        %564 = vmatprep.subr.bf16.mxu0 0
        %565 = vmatpush1.bf16.msra.mxu0 0
        %566 = vmatprep.subr.bf16.mxu0 0
        %567 = vmatpush1.bf16.msra.mxu0 0
        %568 = vmatprep.subr.bf16.mxu0 0
        %569 = vmatpush1.bf16.msra.mxu0 0
        %570 = vmatprep.subr.bf16.mxu0 0
        %571 = vmatpush1.bf16.msra.mxu0 %v554
        %572 = vmatprep.subr.bf16.mxu0 0
        %573 = vmatpush2.bf16.msra.mxu0 0
        %574 = vmatprep.subr.bf16.mxu0 0
        %575 = vmatpush2.bf16.msra.mxu0 0
        %576 = vmatprep.subr.bf16.mxu0 0
        %577 = vmatpush2.bf16.msra.mxu0 0
        %578 = vmatprep.subr.bf16.mxu0 0
        %579 = vmatpush2.bf16.msra.mxu0 0
        %580 = vmatprep.subr.bf16.mxu0 0
        %581 = vmatpush2.bf16.msra.mxu0 0
        %582 = vmatprep.subr.bf16.mxu0 0
        %583 = vmatpush2.bf16.msra.mxu0 0
        %584 = vmatprep.subr.bf16.mxu0 0
        %585 = vmatpush2.bf16.msra.mxu0 0
        %586 = vmatprep.subr.bf16.mxu0 0
        %587 = vmatpush2.bf16.msra.mxu0 0
        %588 = vmatprep.mubr.bf16.mxu0 0
        %589 = vmatmul.mubr.bf16.gmra.mxu0 %v551
        %v590 = vpop.f32.mrf.mxu0
        %v591 = vadd.f32 0.0, %v590
        %v592 = vpop.f32.mrf.mxu0
        %v593 = vpop.f32.mrf.mxu0
        %v594 = vpop.f32.mrf.mxu0
        %595 = vdwg.mxu0
        %v597 = vsel %vm529, %v549, 0
        %v600 = vsel %vm415, %v423, 0
        %602 = vmatprep.subr.bf16.mxu0 0
        %603 = vmatpush1.bf16.msra.mxu0 0
        %604 = vmatprep.subr.bf16.mxu0 0
        %605 = vmatpush1.bf16.msra.mxu0 0
        %606 = vmatprep.subr.bf16.mxu0 0
        %607 = vmatpush1.bf16.msra.mxu0 0
        %608 = vmatprep.subr.bf16.mxu0 0
        %609 = vmatpush1.bf16.msra.mxu0 0
        %610 = vmatprep.subr.bf16.mxu0 0
        %611 = vmatpush1.bf16.msra.mxu0 0
        %612 = vmatprep.subr.bf16.mxu0 0
        %613 = vmatpush1.bf16.msra.mxu0 0
        %614 = vmatprep.subr.bf16.mxu0 0
        %615 = vmatpush1.bf16.msra.mxu0 0
        %616 = vmatprep.subr.bf16.mxu0 0
        %617 = vmatpush1.bf16.msra.mxu0 %v600
        %618 = vmatprep.subr.bf16.mxu0 0
        %619 = vmatpush2.bf16.msra.mxu0 0
        %620 = vmatprep.subr.bf16.mxu0 0
        %621 = vmatpush2.bf16.msra.mxu0 0
        %622 = vmatprep.subr.bf16.mxu0 0
        %623 = vmatpush2.bf16.msra.mxu0 0
        %624 = vmatprep.subr.bf16.mxu0 0
        %625 = vmatpush2.bf16.msra.mxu0 0
        %626 = vmatprep.subr.bf16.mxu0 0
        %627 = vmatpush2.bf16.msra.mxu0 0
        %628 = vmatprep.subr.bf16.mxu0 0
        %629 = vmatpush2.bf16.msra.mxu0 0
        %630 = vmatprep.subr.bf16.mxu0 0
        %631 = vmatpush2.bf16.msra.mxu0 0
        %632 = vmatprep.subr.bf16.mxu0 0
        %633 = vmatpush2.bf16.msra.mxu0 0
        %634 = vmatprep.mubr.bf16.mxu0 0
        %635 = vmatmul.mubr.bf16.gmra.mxu0 %v597
        %v636 = vpop.f32.mrf.mxu0
        %v637 = vadd.f32 0.0, %v636
        %v638 = vpop.f32.mrf.mxu0
        %v639 = vpop.f32.mrf.mxu0
        %v640 = vpop.f32.mrf.mxu0
        %641 = vdwg.mxu0
        %v642 = vrcp.pop %v544
        %v643 = vrcp.pop %v547
        %v644 = vmul.f32 %v591, %v642
        %v645 = vmul.f32 %v637, %v643
        %v646 = vpack.c.bf16 %v645, %v644
        %v648 = vunpack.c.l.b16 %v646
        %v649 = vunpack.c.h.b16 %v646
        %v650 = vpack.c.b16 %v648, %v648
        %v651 = vpack.c.b16 %v649, %v649
        %vm654 = vcmask 125952
        %655 = vst.msk [vmem:[#allocation3] sm:$0xf] %vm654, %v650
        %656 = vst.msk [vmem:[#allocation3 + $0x4] sm:$0xf] %vm654, %v651
        %v657 = vld [vmem:[#allocation2] sm:$0xf]
        %v658 = vld [vmem:[#allocation2 + $0x8] sm:$0xf]
        %v659 = vld [vmem:[#allocation2 + $0x4] sm:$0xf]
        %v660 = vld [vmem:[#allocation2 + $0xc] sm:$0xf]
        %s661 = scalar_lea.vmem [#allocation10], 4
        %v662 = vld [vmem:[%s661] sm:$0xf]
        %v663 = vunpack.c.l.bf16 %v662
        %v665 = vunpack.c.l.b16 %v657
        %v666 = vpack.c.b16 %v665, %v665
        %667 = vrot.lane.b32.xlu0 %v666, 112
        %v668 = vpop.permute.xlu0 %667
        %669 = vrot.lane.b32.xlu0 %v666, 48
        %v670 = vpop.permute.xlu0 %669
        %v672 = vsel %vm431, %v668, 0
        %v675 = vsel %vm431, %v670, 0
        %677 = vmatprep.subr.bf16.mxu0 0
        %678 = vmatpush1.bf16.xpose.msra.mxu0 0
        %679 = vmatprep.subr.bf16.mxu0 0
        %680 = vmatpush1.bf16.xpose.msra.mxu0 0
        %681 = vmatprep.subr.bf16.mxu0 0
        %682 = vmatpush1.bf16.xpose.msra.mxu0 0
        %683 = vmatprep.subr.bf16.mxu0 0
        %684 = vmatpush1.bf16.xpose.msra.mxu0 0
        %685 = vmatprep.subr.bf16.mxu0 0
        %686 = vmatpush1.bf16.xpose.msra.mxu0 0
        %687 = vmatprep.subr.bf16.mxu0 0
        %688 = vmatpush1.bf16.xpose.msra.mxu0 0
        %689 = vmatprep.subr.bf16.mxu0 0
        %690 = vmatpush1.bf16.xpose.msra.mxu0 0
        %691 = vmatprep.subr.bf16.mxu0 0
        %692 = vmatpush1.bf16.xpose.msra.mxu0 %v675
        %693 = vmatprep.subr.bf16.mxu0 0
        %694 = vmatpush2.bf16.xpose.msra.mxu0 0
        %695 = vmatprep.subr.bf16.mxu0 0
        %696 = vmatpush2.bf16.xpose.msra.mxu0 0
        %697 = vmatprep.subr.bf16.mxu0 0
        %698 = vmatpush2.bf16.xpose.msra.mxu0 0
        %699 = vmatprep.subr.bf16.mxu0 0
        %700 = vmatpush2.bf16.xpose.msra.mxu0 0
        %701 = vmatprep.subr.bf16.mxu0 0
        %702 = vmatpush2.bf16.xpose.msra.mxu0 0
        %703 = vmatprep.subr.bf16.mxu0 0
        %704 = vmatpush2.bf16.xpose.msra.mxu0 0
        %705 = vmatprep.subr.bf16.mxu0 0
        %706 = vmatpush2.bf16.xpose.msra.mxu0 0
        %707 = vmatprep.subr.bf16.mxu0 0
        %708 = vmatpush2.bf16.xpose.msra.mxu0 0
        %709 = vmatprep.mubr.bf16.mxu0 0
        %710 = vmatmul.mubr.bf16.gmra.mxu0 %v672
        %v711 = vpop.f32.mrf.mxu0
        %v712 = vadd.f32 %v663, %v711
        %v713 = vpop.f32.mrf.mxu0
        %v714 = vpop.f32.mrf.mxu0
        %v715 = vpop.f32.mrf.mxu0
        %716 = vdwg.mxu0
        %v718 = vunpack.c.l.b16 %v658
        %v719 = vpack.c.b16 %v718, %v718
        %720 = vrot.lane.b32.xlu0 %v719, 112
        %v721 = vpop.permute.xlu0 %720
        %722 = vrot.lane.b32.xlu0 %v719, 48
        %v723 = vpop.permute.xlu0 %722
        %v725 = vsel %vm431, %v721, 0
        %v728 = vsel %vm431, %v723, 0
        %730 = vmatprep.subr.bf16.mxu0 0
        %731 = vmatpush1.bf16.xpose.msra.mxu0 0
        %732 = vmatprep.subr.bf16.mxu0 0
        %733 = vmatpush1.bf16.xpose.msra.mxu0 0
        %734 = vmatprep.subr.bf16.mxu0 0
        %735 = vmatpush1.bf16.xpose.msra.mxu0 0
        %736 = vmatprep.subr.bf16.mxu0 0
        %737 = vmatpush1.bf16.xpose.msra.mxu0 0
        %738 = vmatprep.subr.bf16.mxu0 0
        %739 = vmatpush1.bf16.xpose.msra.mxu0 0
        %740 = vmatprep.subr.bf16.mxu0 0
        %741 = vmatpush1.bf16.xpose.msra.mxu0 0
        %742 = vmatprep.subr.bf16.mxu0 0
        %743 = vmatpush1.bf16.xpose.msra.mxu0 0
        %744 = vmatprep.subr.bf16.mxu0 0
        %745 = vmatpush1.bf16.xpose.msra.mxu0 %v728
        %746 = vmatprep.subr.bf16.mxu0 0
        %747 = vmatpush2.bf16.xpose.msra.mxu0 0
        %748 = vmatprep.subr.bf16.mxu0 0
        %749 = vmatpush2.bf16.xpose.msra.mxu0 0
        %750 = vmatprep.subr.bf16.mxu0 0
        %751 = vmatpush2.bf16.xpose.msra.mxu0 0
        %752 = vmatprep.subr.bf16.mxu0 0
        %753 = vmatpush2.bf16.xpose.msra.mxu0 0
        %754 = vmatprep.subr.bf16.mxu0 0
        %755 = vmatpush2.bf16.xpose.msra.mxu0 0
        %756 = vmatprep.subr.bf16.mxu0 0
        %757 = vmatpush2.bf16.xpose.msra.mxu0 0
        %758 = vmatprep.subr.bf16.mxu0 0
        %759 = vmatpush2.bf16.xpose.msra.mxu0 0
        %760 = vmatprep.subr.bf16.mxu0 0
        %761 = vmatpush2.bf16.xpose.msra.mxu0 0
        %762 = vmatprep.mubr.bf16.mxu0 0
        %763 = vmatmul.mubr.bf16.gmra.mxu0 %v725
        %v764 = vpop.f32.mrf.mxu0
        %v765 = vadd.f32 %v663, %v764
        %v766 = vpop.f32.mrf.mxu0
        %v767 = vpop.f32.mrf.mxu0
        %v768 = vpop.f32.mrf.mxu0
        %769 = vdwg.mxu0
        %v770 = vsel %vm529, %v712, -inf
        %771 = vmax.xlane.f32.xlu0 %v770
        %v772 = vpop.xlane.xlu0 %771
        %v773 = vsel %vm529, %v765, -inf
        %774 = vmax.xlane.f32.xlu0 %v773
        %v775 = vpop.xlane.xlu0 %774
        %v776 = vsub.f32 %v712, %v772
        %v777 = vsub.f32 %v765, %v775
        %v778 = vmul.f32 %v776, 1.442695
        %v779 = vpow.pop %v778
        %v780 = vmul.f32 %v777, 1.442695
        %v781 = vpow.pop %v780
        %v782 = vsel %vm529, %v779, 0.0
        %783 = vadd.xlane.f32.xlu0 %v782
        %v784 = vpop.xlane.xlu0 %783
        %v785 = vsel %vm529, %v781, 0.0
        %786 = vadd.xlane.f32.xlu0 %v785
        %v787 = vpop.xlane.xlu0 %786
        %v788 = vpack.c.bf16 %v779, %v779
        %v789 = vpack.c.bf16 %v781, %v781
        %v791 = vunpack.c.l.b16 %v659
        %v792 = vpack.c.b16 %v791, %v791
        %793 = vrot.lane.b32.xlu0 %v792, 112
        %v794 = vpop.permute.xlu0 %793
        %v796 = vsel %vm529, %v788, 0
        %v799 = vsel %vm415, %v794, 0
        %801 = vmatprep.subr.bf16.mxu0 0
        %802 = vmatpush1.bf16.msra.mxu0 0
        %803 = vmatprep.subr.bf16.mxu0 0
        %804 = vmatpush1.bf16.msra.mxu0 0
        %805 = vmatprep.subr.bf16.mxu0 0
        %806 = vmatpush1.bf16.msra.mxu0 0
        %807 = vmatprep.subr.bf16.mxu0 0
        %808 = vmatpush1.bf16.msra.mxu0 0
        %809 = vmatprep.subr.bf16.mxu0 0
        %810 = vmatpush1.bf16.msra.mxu0 0
        %811 = vmatprep.subr.bf16.mxu0 0
        %812 = vmatpush1.bf16.msra.mxu0 0
        %813 = vmatprep.subr.bf16.mxu0 0
        %814 = vmatpush1.bf16.msra.mxu0 0
        %815 = vmatprep.subr.bf16.mxu0 0
        %816 = vmatpush1.bf16.msra.mxu0 %v799
        %817 = vmatprep.subr.bf16.mxu0 0
        %818 = vmatpush2.bf16.msra.mxu0 0
        %819 = vmatprep.subr.bf16.mxu0 0
        %820 = vmatpush2.bf16.msra.mxu0 0
        %821 = vmatprep.subr.bf16.mxu0 0
        %822 = vmatpush2.bf16.msra.mxu0 0
        %823 = vmatprep.subr.bf16.mxu0 0
        %824 = vmatpush2.bf16.msra.mxu0 0
        %825 = vmatprep.subr.bf16.mxu0 0
        %826 = vmatpush2.bf16.msra.mxu0 0
        %827 = vmatprep.subr.bf16.mxu0 0
        %828 = vmatpush2.bf16.msra.mxu0 0
        %829 = vmatprep.subr.bf16.mxu0 0
        %830 = vmatpush2.bf16.msra.mxu0 0
        %831 = vmatprep.subr.bf16.mxu0 0
        %832 = vmatpush2.bf16.msra.mxu0 0
        %833 = vmatprep.mubr.bf16.mxu0 0
        %834 = vmatmul.mubr.bf16.gmra.mxu0 %v796
        %v835 = vpop.f32.mrf.mxu0
        %v836 = vadd.f32 0.0, %v835
        %v837 = vpop.f32.mrf.mxu0
        %v838 = vpop.f32.mrf.mxu0
        %v839 = vpop.f32.mrf.mxu0
        %840 = vdwg.mxu0
        %v842 = vunpack.c.l.b16 %v660
        %v843 = vpack.c.b16 %v842, %v842
        %844 = vrot.lane.b32.xlu0 %v843, 112
        %v845 = vpop.permute.xlu0 %844
        %v847 = vsel %vm529, %v789, 0
        %v850 = vsel %vm415, %v845, 0
        %852 = vmatprep.subr.bf16.mxu0 0
        %853 = vmatpush1.bf16.msra.mxu0 0
        %854 = vmatprep.subr.bf16.mxu0 0
        %855 = vmatpush1.bf16.msra.mxu0 0
        %856 = vmatprep.subr.bf16.mxu0 0
        %857 = vmatpush1.bf16.msra.mxu0 0
        %858 = vmatprep.subr.bf16.mxu0 0
        %859 = vmatpush1.bf16.msra.mxu0 0
        %860 = vmatprep.subr.bf16.mxu0 0
        %861 = vmatpush1.bf16.msra.mxu0 0
        %862 = vmatprep.subr.bf16.mxu0 0
        %863 = vmatpush1.bf16.msra.mxu0 0
        %864 = vmatprep.subr.bf16.mxu0 0
        %865 = vmatpush1.bf16.msra.mxu0 0
        %866 = vmatprep.subr.bf16.mxu0 0
        %867 = vmatpush1.bf16.msra.mxu0 %v850
        %868 = vmatprep.subr.bf16.mxu0 0
        %869 = vmatpush2.bf16.msra.mxu0 0
        %870 = vmatprep.subr.bf16.mxu0 0
        %871 = vmatpush2.bf16.msra.mxu0 0
        %872 = vmatprep.subr.bf16.mxu0 0
        %873 = vmatpush2.bf16.msra.mxu0 0
        %874 = vmatprep.subr.bf16.mxu0 0
        %875 = vmatpush2.bf16.msra.mxu0 0
        %876 = vmatprep.subr.bf16.mxu0 0
        %877 = vmatpush2.bf16.msra.mxu0 0
        %878 = vmatprep.subr.bf16.mxu0 0
        %879 = vmatpush2.bf16.msra.mxu0 0
        %880 = vmatprep.subr.bf16.mxu0 0
        %881 = vmatpush2.bf16.msra.mxu0 0
        %882 = vmatprep.subr.bf16.mxu0 0
        %883 = vmatpush2.bf16.msra.mxu0 0
        %884 = vmatprep.mubr.bf16.mxu0 0
        %885 = vmatmul.mubr.bf16.gmra.mxu0 %v847
        %v886 = vpop.f32.mrf.mxu0
        %v887 = vadd.f32 0.0, %v886
        %v888 = vpop.f32.mrf.mxu0
        %v889 = vpop.f32.mrf.mxu0
        %v890 = vpop.f32.mrf.mxu0
        %891 = vdwg.mxu0
        %v892 = vrcp.pop %v784
        %v893 = vrcp.pop %v787
        %v894 = vmul.f32 %v836, %v892
        %v895 = vmul.f32 %v887, %v893
        %v896 = vpack.c.bf16 %v895, %v894
        %v898 = vunpack.c.l.b16 %v896
        %v899 = vunpack.c.h.b16 %v896
        %v900 = vpack.c.b16 %v898, %v898
        %v901 = vpack.c.b16 %v899, %v899
        %902 = vrot.lane.b32.xlu0 %v900, 16
        %v903 = vpop.permute.xlu0 %902
        %904 = vrot.lane.b32.xlu0 %v901, 16
        %v905 = vpop.permute.xlu0 %904
        %vm908 = vcmask 257152
        %909 = vst.msk [vmem:[#allocation3] sm:$0xf] %vm908, %v903
        %910 = vst.msk [vmem:[#allocation3 + $0x4] sm:$0xf] %vm908, %v905
        %v911 = vld [vmem:[#allocation2] sm:$0xf]
        %v912 = vld [vmem:[#allocation2 + $0x8] sm:$0xf]
        %v913 = vld [vmem:[#allocation2 + $0x4] sm:$0xf]
        %v914 = vld [vmem:[#allocation2 + $0xc] sm:$0xf]
        %s915 = scalar_lea.vmem [#allocation10], 8
        %v916 = vld [vmem:[%s915] sm:$0xf]
        %v917 = vunpack.c.l.bf16 %v916
        %v919 = vunpack.c.l.b16 %v911
        %v920 = vpack.c.b16 %v919, %v919
        %921 = vrot.lane.b32.xlu0 %v920, 96
        %v922 = vpop.permute.xlu0 %921
        %923 = vrot.lane.b32.xlu0 %v920, 32
        %v924 = vpop.permute.xlu0 %923
        %v926 = vsel %vm431, %v922, 0
        %v929 = vsel %vm431, %v924, 0
        %931 = vmatprep.subr.bf16.mxu0 0
        %932 = vmatpush1.bf16.xpose.msra.mxu0 0
        %933 = vmatprep.subr.bf16.mxu0 0
        %934 = vmatpush1.bf16.xpose.msra.mxu0 0
        %935 = vmatprep.subr.bf16.mxu0 0
        %936 = vmatpush1.bf16.xpose.msra.mxu0 0
        %937 = vmatprep.subr.bf16.mxu0 0
        %938 = vmatpush1.bf16.xpose.msra.mxu0 0
        %939 = vmatprep.subr.bf16.mxu0 0
        %940 = vmatpush1.bf16.xpose.msra.mxu0 0
        %941 = vmatprep.subr.bf16.mxu0 0
        %942 = vmatpush1.bf16.xpose.msra.mxu0 0
        %943 = vmatprep.subr.bf16.mxu0 0
        %944 = vmatpush1.bf16.xpose.msra.mxu0 0
        %945 = vmatprep.subr.bf16.mxu0 0
        %946 = vmatpush1.bf16.xpose.msra.mxu0 %v929
        %947 = vmatprep.subr.bf16.mxu0 0
        %948 = vmatpush2.bf16.xpose.msra.mxu0 0
        %949 = vmatprep.subr.bf16.mxu0 0
        %950 = vmatpush2.bf16.xpose.msra.mxu0 0
        %951 = vmatprep.subr.bf16.mxu0 0
        %952 = vmatpush2.bf16.xpose.msra.mxu0 0
        %953 = vmatprep.subr.bf16.mxu0 0
        %954 = vmatpush2.bf16.xpose.msra.mxu0 0
        %955 = vmatprep.subr.bf16.mxu0 0
        %956 = vmatpush2.bf16.xpose.msra.mxu0 0
        %957 = vmatprep.subr.bf16.mxu0 0
        %958 = vmatpush2.bf16.xpose.msra.mxu0 0
        %959 = vmatprep.subr.bf16.mxu0 0
        %960 = vmatpush2.bf16.xpose.msra.mxu0 0
        %961 = vmatprep.subr.bf16.mxu0 0
        %962 = vmatpush2.bf16.xpose.msra.mxu0 0
        %963 = vmatprep.mubr.bf16.mxu0 0
        %964 = vmatmul.mubr.bf16.gmra.mxu0 %v926
        %v965 = vpop.f32.mrf.mxu0
        %v966 = vadd.f32 %v917, %v965
        %v967 = vpop.f32.mrf.mxu0
        %v968 = vpop.f32.mrf.mxu0
        %v969 = vpop.f32.mrf.mxu0
        %970 = vdwg.mxu0
        %v972 = vunpack.c.l.b16 %v912
        %v973 = vpack.c.b16 %v972, %v972
        %974 = vrot.lane.b32.xlu0 %v973, 96
        %v975 = vpop.permute.xlu0 %974
        %976 = vrot.lane.b32.xlu0 %v973, 32
        %v977 = vpop.permute.xlu0 %976
        %v979 = vsel %vm431, %v975, 0
        %v982 = vsel %vm431, %v977, 0
        %984 = vmatprep.subr.bf16.mxu0 0
        %985 = vmatpush1.bf16.xpose.msra.mxu0 0
        %986 = vmatprep.subr.bf16.mxu0 0
        %987 = vmatpush1.bf16.xpose.msra.mxu0 0
        %988 = vmatprep.subr.bf16.mxu0 0
        %989 = vmatpush1.bf16.xpose.msra.mxu0 0
        %990 = vmatprep.subr.bf16.mxu0 0
        %991 = vmatpush1.bf16.xpose.msra.mxu0 0
        %992 = vmatprep.subr.bf16.mxu0 0
        %993 = vmatpush1.bf16.xpose.msra.mxu0 0
        %994 = vmatprep.subr.bf16.mxu0 0
        %995 = vmatpush1.bf16.xpose.msra.mxu0 0
        %996 = vmatprep.subr.bf16.mxu0 0
        %997 = vmatpush1.bf16.xpose.msra.mxu0 0
        %998 = vmatprep.subr.bf16.mxu0 0
        %999 = vmatpush1.bf16.xpose.msra.mxu0 %v982
        %1000 = vmatprep.subr.bf16.mxu0 0
        %1001 = vmatpush2.bf16.xpose.msra.mxu0 0
        %1002 = vmatprep.subr.bf16.mxu0 0
        %1003 = vmatpush2.bf16.xpose.msra.mxu0 0
        %1004 = vmatprep.subr.bf16.mxu0 0
        %1005 = vmatpush2.bf16.xpose.msra.mxu0 0
        %1006 = vmatprep.subr.bf16.mxu0 0
        %1007 = vmatpush2.bf16.xpose.msra.mxu0 0
        %1008 = vmatprep.subr.bf16.mxu0 0
        %1009 = vmatpush2.bf16.xpose.msra.mxu0 0
        %1010 = vmatprep.subr.bf16.mxu0 0
        %1011 = vmatpush2.bf16.xpose.msra.mxu0 0
        %1012 = vmatprep.subr.bf16.mxu0 0
        %1013 = vmatpush2.bf16.xpose.msra.mxu0 0
        %1014 = vmatprep.subr.bf16.mxu0 0
        %1015 = vmatpush2.bf16.xpose.msra.mxu0 0
        %1016 = vmatprep.mubr.bf16.mxu0 0
        %1017 = vmatmul.mubr.bf16.gmra.mxu0 %v979
        %v1018 = vpop.f32.mrf.mxu0
        %v1019 = vadd.f32 %v917, %v1018
        %v1020 = vpop.f32.mrf.mxu0
        %v1021 = vpop.f32.mrf.mxu0
        %v1022 = vpop.f32.mrf.mxu0
        %1023 = vdwg.mxu0
        %v1024 = vsel %vm529, %v966, -inf
        %1025 = vmax.xlane.f32.xlu0 %v1024
        %v1026 = vpop.xlane.xlu0 %1025
        %v1027 = vsel %vm529, %v1019, -inf
        %1028 = vmax.xlane.f32.xlu0 %v1027
        %v1029 = vpop.xlane.xlu0 %1028
        %v1030 = vsub.f32 %v966, %v1026
        %v1031 = vsub.f32 %v1019, %v1029
        %v1032 = vmul.f32 %v1030, 1.442695
        %v1033 = vpow.pop %v1032
        %v1034 = vmul.f32 %v1031, 1.442695
        %v1035 = vpow.pop %v1034
        %v1036 = vsel %vm529, %v1033, 0.0
        %1037 = vadd.xlane.f32.xlu0 %v1036
        %v1038 = vpop.xlane.xlu0 %1037
        %v1039 = vsel %vm529, %v1035, 0.0
        %1040 = vadd.xlane.f32.xlu0 %v1039
        %v1041 = vpop.xlane.xlu0 %1040
        %v1042 = vpack.c.bf16 %v1033, %v1033
        %v1043 = vpack.c.bf16 %v1035, %v1035
        %v1045 = vunpack.c.l.b16 %v913
        %v1046 = vpack.c.b16 %v1045, %v1045
        %1047 = vrot.lane.b32.xlu0 %v1046, 96
        %v1048 = vpop.permute.xlu0 %1047
        %v1050 = vsel %vm529, %v1042, 0
        %v1053 = vsel %vm415, %v1048, 0
        %1055 = vmatprep.subr.bf16.mxu0 0
        %1056 = vmatpush1.bf16.msra.mxu0 0
        %1057 = vmatprep.subr.bf16.mxu0 0
        %1058 = vmatpush1.bf16.msra.mxu0 0
        %1059 = vmatprep.subr.bf16.mxu0 0
        %1060 = vmatpush1.bf16.msra.mxu0 0
        %1061 = vmatprep.subr.bf16.mxu0 0
        %1062 = vmatpush1.bf16.msra.mxu0 0
        %1063 = vmatprep.subr.bf16.mxu0 0
        %1064 = vmatpush1.bf16.msra.mxu0 0
        %1065 = vmatprep.subr.bf16.mxu0 0
        %1066 = vmatpush1.bf16.msra.mxu0 0
        %1067 = vmatprep.subr.bf16.mxu0 0
        %1068 = vmatpush1.bf16.msra.mxu0 0
        %1069 = vmatprep.subr.bf16.mxu0 0
        %1070 = vmatpush1.bf16.msra.mxu0 %v1053
        %1071 = vmatprep.subr.bf16.mxu0 0
        %1072 = vmatpush2.bf16.msra.mxu0 0
        %1073 = vmatprep.subr.bf16.mxu0 0
        %1074 = vmatpush2.bf16.msra.mxu0 0
        %1075 = vmatprep.subr.bf16.mxu0 0
        %1076 = vmatpush2.bf16.msra.mxu0 0
        %1077 = vmatprep.subr.bf16.mxu0 0
        %1078 = vmatpush2.bf16.msra.mxu0 0
        %1079 = vmatprep.subr.bf16.mxu0 0
        %1080 = vmatpush2.bf16.msra.mxu0 0
        %1081 = vmatprep.subr.bf16.mxu0 0
        %1082 = vmatpush2.bf16.msra.mxu0 0
        %1083 = vmatprep.subr.bf16.mxu0 0
        %1084 = vmatpush2.bf16.msra.mxu0 0
        %1085 = vmatprep.subr.bf16.mxu0 0
        %1086 = vmatpush2.bf16.msra.mxu0 0
        %1087 = vmatprep.mubr.bf16.mxu0 0
        %1088 = vmatmul.mubr.bf16.gmra.mxu0 %v1050
        %v1089 = vpop.f32.mrf.mxu0
        %v1090 = vadd.f32 0.0, %v1089
        %v1091 = vpop.f32.mrf.mxu0
        %v1092 = vpop.f32.mrf.mxu0
        %v1093 = vpop.f32.mrf.mxu0
        %1094 = vdwg.mxu0
        %v1096 = vunpack.c.l.b16 %v914
        %v1097 = vpack.c.b16 %v1096, %v1096
        %1098 = vrot.lane.b32.xlu0 %v1097, 96
        %v1099 = vpop.permute.xlu0 %1098
        %v1101 = vsel %vm529, %v1043, 0
        %v1104 = vsel %vm415, %v1099, 0
        %1106 = vmatprep.subr.bf16.mxu0 0
        %1107 = vmatpush1.bf16.msra.mxu0 0
        %1108 = vmatprep.subr.bf16.mxu0 0
        %1109 = vmatpush1.bf16.msra.mxu0 0
        %1110 = vmatprep.subr.bf16.mxu0 0
        %1111 = vmatpush1.bf16.msra.mxu0 0
        %1112 = vmatprep.subr.bf16.mxu0 0
        %1113 = vmatpush1.bf16.msra.mxu0 0
        %1114 = vmatprep.subr.bf16.mxu0 0
        %1115 = vmatpush1.bf16.msra.mxu0 0
        %1116 = vmatprep.subr.bf16.mxu0 0
        %1117 = vmatpush1.bf16.msra.mxu0 0
        %1118 = vmatprep.subr.bf16.mxu0 0
        %1119 = vmatpush1.bf16.msra.mxu0 0
        %1120 = vmatprep.subr.bf16.mxu0 0
        %1121 = vmatpush1.bf16.msra.mxu0 %v1104
        %1122 = vmatprep.subr.bf16.mxu0 0
        %1123 = vmatpush2.bf16.msra.mxu0 0
        %1124 = vmatprep.subr.bf16.mxu0 0
        %1125 = vmatpush2.bf16.msra.mxu0 0
        %1126 = vmatprep.subr.bf16.mxu0 0
        %1127 = vmatpush2.bf16.msra.mxu0 0
        %1128 = vmatprep.subr.bf16.mxu0 0
        %1129 = vmatpush2.bf16.msra.mxu0 0
        %1130 = vmatprep.subr.bf16.mxu0 0
        %1131 = vmatpush2.bf16.msra.mxu0 0
        %1132 = vmatprep.subr.bf16.mxu0 0
        %1133 = vmatpush2.bf16.msra.mxu0 0
        %1134 = vmatprep.subr.bf16.mxu0 0
        %1135 = vmatpush2.bf16.msra.mxu0 0
        %1136 = vmatprep.subr.bf16.mxu0 0
        %1137 = vmatpush2.bf16.msra.mxu0 0
        %1138 = vmatprep.mubr.bf16.mxu0 0
        %1139 = vmatmul.mubr.bf16.gmra.mxu0 %v1101
        %v1140 = vpop.f32.mrf.mxu0
        %v1141 = vadd.f32 0.0, %v1140
        %v1142 = vpop.f32.mrf.mxu0
        %v1143 = vpop.f32.mrf.mxu0
        %v1144 = vpop.f32.mrf.mxu0
        %1145 = vdwg.mxu0
        %v1146 = vrcp.pop %v1038
        %v1147 = vrcp.pop %v1041
        %v1148 = vmul.f32 %v1090, %v1146
        %v1149 = vmul.f32 %v1141, %v1147
        %v1150 = vpack.c.bf16 %v1149, %v1148
        %v1152 = vunpack.c.l.b16 %v1150
        %v1153 = vunpack.c.h.b16 %v1150
        %v1154 = vpack.c.b16 %v1152, %v1152
        %v1155 = vpack.c.b16 %v1153, %v1153
        %1156 = vrot.lane.b32.xlu0 %v1154, 32
        %v1157 = vpop.permute.xlu0 %1156
        %1158 = vrot.lane.b32.xlu0 %v1155, 32
        %v1159 = vpop.permute.xlu0 %1158
        %vm1162 = vcmask 388352
        %1163 = vst.msk [vmem:[#allocation3] sm:$0xf] %vm1162, %v1157
        %1164 = vst.msk [vmem:[#allocation3 + $0x4] sm:$0xf] %vm1162, %v1159
        %v1165 = vld [vmem:[#allocation2] sm:$0xf]
        %v1166 = vld [vmem:[#allocation2 + $0x8] sm:$0xf]
        %v1167 = vld [vmem:[#allocation2 + $0x4] sm:$0xf]
        %v1168 = vld [vmem:[#allocation2 + $0xc] sm:$0xf]
        %s1169 = scalar_lea.vmem [#allocation10], 12
        %v1170 = vld [vmem:[%s1169] sm:$0xf]
        %v1171 = vunpack.c.l.bf16 %v1170
        %v1173 = vunpack.c.l.b16 %v1165
        %v1174 = vpack.c.b16 %v1173, %v1173
        %1175 = vrot.lane.b32.xlu0 %v1174, 80
        %v1176 = vpop.permute.xlu0 %1175
        %1177 = vrot.lane.b32.xlu0 %v1174, 16
        %v1178 = vpop.permute.xlu0 %1177
        %v1180 = vsel %vm431, %v1176, 0
        %v1183 = vsel %vm431, %v1178, 0
        %1185 = vmatprep.subr.bf16.mxu0 0
        %1186 = vmatpush1.bf16.xpose.msra.mxu0 0
        %1187 = vmatprep.subr.bf16.mxu0 0
        %1188 = vmatpush1.bf16.xpose.msra.mxu0 0
        %1189 = vmatprep.subr.bf16.mxu0 0
        %1190 = vmatpush1.bf16.xpose.msra.mxu0 0
        %1191 = vmatprep.subr.bf16.mxu0 0
        %1192 = vmatpush1.bf16.xpose.msra.mxu0 0
        %1193 = vmatprep.subr.bf16.mxu0 0
        %1194 = vmatpush1.bf16.xpose.msra.mxu0 0
        %1195 = vmatprep.subr.bf16.mxu0 0
        %1196 = vmatpush1.bf16.xpose.msra.mxu0 0
        %1197 = vmatprep.subr.bf16.mxu0 0
        %1198 = vmatpush1.bf16.xpose.msra.mxu0 0
        %1199 = vmatprep.subr.bf16.mxu0 0
        %1200 = vmatpush1.bf16.xpose.msra.mxu0 %v1183
        %1201 = vmatprep.subr.bf16.mxu0 0
        %1202 = vmatpush2.bf16.xpose.msra.mxu0 0
        %1203 = vmatprep.subr.bf16.mxu0 0
        %1204 = vmatpush2.bf16.xpose.msra.mxu0 0
        %1205 = vmatprep.subr.bf16.mxu0 0
        %1206 = vmatpush2.bf16.xpose.msra.mxu0 0
        %1207 = vmatprep.subr.bf16.mxu0 0
        %1208 = vmatpush2.bf16.xpose.msra.mxu0 0
        %1209 = vmatprep.subr.bf16.mxu0 0
        %1210 = vmatpush2.bf16.xpose.msra.mxu0 0
        %1211 = vmatprep.subr.bf16.mxu0 0
        %1212 = vmatpush2.bf16.xpose.msra.mxu0 0
        %1213 = vmatprep.subr.bf16.mxu0 0
        %1214 = vmatpush2.bf16.xpose.msra.mxu0 0
        %1215 = vmatprep.subr.bf16.mxu0 0
        %1216 = vmatpush2.bf16.xpose.msra.mxu0 0
        %1217 = vmatprep.mubr.bf16.mxu0 0
        %1218 = vmatmul.mubr.bf16.gmra.mxu0 %v1180
        %v1219 = vpop.f32.mrf.mxu0
        %v1220 = vadd.f32 %v1171, %v1219
        %v1221 = vpop.f32.mrf.mxu0
        %v1222 = vpop.f32.mrf.mxu0
        %v1223 = vpop.f32.mrf.mxu0
        %1224 = vdwg.mxu0
        %v1226 = vunpack.c.l.b16 %v1166
        %v1227 = vpack.c.b16 %v1226, %v1226
        %1228 = vrot.lane.b32.xlu0 %v1227, 80
        %v1229 = vpop.permute.xlu0 %1228
        %1230 = vrot.lane.b32.xlu0 %v1227, 16
        %v1231 = vpop.permute.xlu0 %1230
        %v1233 = vsel %vm431, %v1229, 0
        %v1236 = vsel %vm431, %v1231, 0
        %1238 = vmatprep.subr.bf16.mxu0 0
        %1239 = vmatpush1.bf16.xpose.msra.mxu0 0
        %1240 = vmatprep.subr.bf16.mxu0 0
        %1241 = vmatpush1.bf16.xpose.msra.mxu0 0
        %1242 = vmatprep.subr.bf16.mxu0 0
        %1243 = vmatpush1.bf16.xpose.msra.mxu0 0
        %1244 = vmatprep.subr.bf16.mxu0 0
        %1245 = vmatpush1.bf16.xpose.msra.mxu0 0
        %1246 = vmatprep.subr.bf16.mxu0 0
        %1247 = vmatpush1.bf16.xpose.msra.mxu0 0
        %1248 = vmatprep.subr.bf16.mxu0 0
        %1249 = vmatpush1.bf16.xpose.msra.mxu0 0
        %1250 = vmatprep.subr.bf16.mxu0 0
        %1251 = vmatpush1.bf16.xpose.msra.mxu0 0
        %1252 = vmatprep.subr.bf16.mxu0 0
        %1253 = vmatpush1.bf16.xpose.msra.mxu0 %v1236
        %1254 = vmatprep.subr.bf16.mxu0 0
        %1255 = vmatpush2.bf16.xpose.msra.mxu0 0
        %1256 = vmatprep.subr.bf16.mxu0 0
        %1257 = vmatpush2.bf16.xpose.msra.mxu0 0
        %1258 = vmatprep.subr.bf16.mxu0 0
        %1259 = vmatpush2.bf16.xpose.msra.mxu0 0
        %1260 = vmatprep.subr.bf16.mxu0 0
        %1261 = vmatpush2.bf16.xpose.msra.mxu0 0
        %1262 = vmatprep.subr.bf16.mxu0 0
        %1263 = vmatpush2.bf16.xpose.msra.mxu0 0
        %1264 = vmatprep.subr.bf16.mxu0 0
        %1265 = vmatpush2.bf16.xpose.msra.mxu0 0
        %1266 = vmatprep.subr.bf16.mxu0 0
        %1267 = vmatpush2.bf16.xpose.msra.mxu0 0
        %1268 = vmatprep.subr.bf16.mxu0 0
        %1269 = vmatpush2.bf16.xpose.msra.mxu0 0
        %1270 = vmatprep.mubr.bf16.mxu0 0
        %1271 = vmatmul.mubr.bf16.gmra.mxu0 %v1233
        %v1272 = vpop.f32.mrf.mxu0
        %v1273 = vadd.f32 %v1171, %v1272
        %v1274 = vpop.f32.mrf.mxu0
        %v1275 = vpop.f32.mrf.mxu0
        %v1276 = vpop.f32.mrf.mxu0
        %1277 = vdwg.mxu0
        %v1278 = vsel %vm529, %v1220, -inf
        %1279 = vmax.xlane.f32.xlu0 %v1278
        %v1280 = vpop.xlane.xlu0 %1279
        %v1281 = vsel %vm529, %v1273, -inf
        %1282 = vmax.xlane.f32.xlu0 %v1281
        %v1283 = vpop.xlane.xlu0 %1282
        %v1284 = vsub.f32 %v1220, %v1280
        %v1285 = vsub.f32 %v1273, %v1283
        %v1286 = vmul.f32 %v1284, 1.442695
        %v1287 = vpow.pop %v1286
        %v1288 = vmul.f32 %v1285, 1.442695
        %v1289 = vpow.pop %v1288
        %v1290 = vsel %vm529, %v1287, 0.0
        %1291 = vadd.xlane.f32.xlu0 %v1290
        %v1292 = vpop.xlane.xlu0 %1291
        %v1293 = vsel %vm529, %v1289, 0.0
        %1294 = vadd.xlane.f32.xlu0 %v1293
        %v1295 = vpop.xlane.xlu0 %1294
        %v1296 = vpack.c.bf16 %v1287, %v1287
        %v1297 = vpack.c.bf16 %v1289, %v1289
        %v1299 = vunpack.c.l.b16 %v1167
        %v1300 = vpack.c.b16 %v1299, %v1299
        %1301 = vrot.lane.b32.xlu0 %v1300, 80
        %v1302 = vpop.permute.xlu0 %1301
        %v1304 = vsel %vm529, %v1296, 0
        %v1307 = vsel %vm415, %v1302, 0
        %1309 = vmatprep.subr.bf16.mxu0 0
        %1310 = vmatpush1.bf16.msra.mxu0 0
        %1311 = vmatprep.subr.bf16.mxu0 0
        %1312 = vmatpush1.bf16.msra.mxu0 0
        %1313 = vmatprep.subr.bf16.mxu0 0
        %1314 = vmatpush1.bf16.msra.mxu0 0
        %1315 = vmatprep.subr.bf16.mxu0 0
        %1316 = vmatpush1.bf16.msra.mxu0 0
        %1317 = vmatprep.subr.bf16.mxu0 0
        %1318 = vmatpush1.bf16.msra.mxu0 0
        %1319 = vmatprep.subr.bf16.mxu0 0
        %1320 = vmatpush1.bf16.msra.mxu0 0
        %1321 = vmatprep.subr.bf16.mxu0 0
        %1322 = vmatpush1.bf16.msra.mxu0 0
        %1323 = vmatprep.subr.bf16.mxu0 0
        %1324 = vmatpush1.bf16.msra.mxu0 %v1307
        %1325 = vmatprep.subr.bf16.mxu0 0
        %1326 = vmatpush2.bf16.msra.mxu0 0
        %1327 = vmatprep.subr.bf16.mxu0 0
        %1328 = vmatpush2.bf16.msra.mxu0 0
        %1329 = vmatprep.subr.bf16.mxu0 0
        %1330 = vmatpush2.bf16.msra.mxu0 0
        %1331 = vmatprep.subr.bf16.mxu0 0
        %1332 = vmatpush2.bf16.msra.mxu0 0
        %1333 = vmatprep.subr.bf16.mxu0 0
        %1334 = vmatpush2.bf16.msra.mxu0 0
        %1335 = vmatprep.subr.bf16.mxu0 0
        %1336 = vmatpush2.bf16.msra.mxu0 0
        %1337 = vmatprep.subr.bf16.mxu0 0
        %1338 = vmatpush2.bf16.msra.mxu0 0
        %1339 = vmatprep.subr.bf16.mxu0 0
        %1340 = vmatpush2.bf16.msra.mxu0 0
        %1341 = vmatprep.mubr.bf16.mxu0 0
        %1342 = vmatmul.mubr.bf16.gmra.mxu0 %v1304
        %v1343 = vpop.f32.mrf.mxu0
        %v1344 = vadd.f32 0.0, %v1343
        %v1345 = vpop.f32.mrf.mxu0
        %v1346 = vpop.f32.mrf.mxu0
        %v1347 = vpop.f32.mrf.mxu0
        %1348 = vdwg.mxu0
        %v1350 = vunpack.c.l.b16 %v1168
        %v1351 = vpack.c.b16 %v1350, %v1350
        %1352 = vrot.lane.b32.xlu0 %v1351, 80
        %v1353 = vpop.permute.xlu0 %1352
        %v1355 = vsel %vm529, %v1297, 0
        %v1358 = vsel %vm415, %v1353, 0
        %1360 = vmatprep.subr.bf16.mxu0 0
        %1361 = vmatpush1.bf16.msra.mxu0 0
        %1362 = vmatprep.subr.bf16.mxu0 0
        %1363 = vmatpush1.bf16.msra.mxu0 0
        %1364 = vmatprep.subr.bf16.mxu0 0
        %1365 = vmatpush1.bf16.msra.mxu0 0
        %1366 = vmatprep.subr.bf16.mxu0 0
        %1367 = vmatpush1.bf16.msra.mxu0 0
        %1368 = vmatprep.subr.bf16.mxu0 0
        %1369 = vmatpush1.bf16.msra.mxu0 0
        %1370 = vmatprep.subr.bf16.mxu0 0
        %1371 = vmatpush1.bf16.msra.mxu0 0
        %1372 = vmatprep.subr.bf16.mxu0 0
        %1373 = vmatpush1.bf16.msra.mxu0 0
        %1374 = vmatprep.subr.bf16.mxu0 0
        %1375 = vmatpush1.bf16.msra.mxu0 %v1358
        %1376 = vmatprep.subr.bf16.mxu0 0
        %1377 = vmatpush2.bf16.msra.mxu0 0
        %1378 = vmatprep.subr.bf16.mxu0 0
        %1379 = vmatpush2.bf16.msra.mxu0 0
        %1380 = vmatprep.subr.bf16.mxu0 0
        %1381 = vmatpush2.bf16.msra.mxu0 0
        %1382 = vmatprep.subr.bf16.mxu0 0
        %1383 = vmatpush2.bf16.msra.mxu0 0
        %1384 = vmatprep.subr.bf16.mxu0 0
        %1385 = vmatpush2.bf16.msra.mxu0 0
        %1386 = vmatprep.subr.bf16.mxu0 0
        %1387 = vmatpush2.bf16.msra.mxu0 0
        %1388 = vmatprep.subr.bf16.mxu0 0
        %1389 = vmatpush2.bf16.msra.mxu0 0
        %1390 = vmatprep.subr.bf16.mxu0 0
        %1391 = vmatpush2.bf16.msra.mxu0 0
        %1392 = vmatprep.mubr.bf16.mxu0 0
        %1393 = vmatmul.mubr.bf16.gmra.mxu0 %v1355
        %v1394 = vpop.f32.mrf.mxu0
        %v1395 = vadd.f32 0.0, %v1394
        %v1396 = vpop.f32.mrf.mxu0
        %v1397 = vpop.f32.mrf.mxu0
        %v1398 = vpop.f32.mrf.mxu0
        %1399 = vdwg.mxu0
        %v1400 = vrcp.pop %v1292
        %v1401 = vrcp.pop %v1295
        %v1402 = vmul.f32 %v1344, %v1400
        %v1403 = vmul.f32 %v1395, %v1401
        %v1404 = vpack.c.bf16 %v1403, %v1402
        %v1406 = vunpack.c.l.b16 %v1404
        %v1407 = vunpack.c.h.b16 %v1404
        %v1408 = vpack.c.b16 %v1406, %v1406
        %v1409 = vpack.c.b16 %v1407, %v1407
        %1410 = vrot.lane.b32.xlu0 %v1408, 48
        %v1411 = vpop.permute.xlu0 %1410
        %1412 = vrot.lane.b32.xlu0 %v1409, 48
        %v1413 = vpop.permute.xlu0 %1412
        %vm1416 = vcmask 519552
        %1417 = vst.msk [vmem:[#allocation3] sm:$0xf] %vm1416, %v1411
        %1418 = vst.msk [vmem:[#allocation3 + $0x4] sm:$0xf] %vm1416, %v1413
        %v1419 = vld [vmem:[#allocation3] sm:$0xf]
        %v1420 = vld [vmem:[#allocation3 + $0x4] sm:$0xf]
        %v1421 = vld [vmem:[#allocation9] sm:$0xf]
        %v1422 = vld [vmem:[#allocation9 + $0x4] sm:$0xf]
        %v1423 = vld [vmem:[#allocation9 + $0x8] sm:$0xf]
        %v1424 = vld [vmem:[#allocation9 + $0xc] sm:$0xf]
        %v1425 = vld [vmem:[#allocation9 + $0x10] sm:$0xf]
        %v1426 = vld [vmem:[#allocation9 + $0x14] sm:$0xf]
        %v1427 = vld [vmem:[#allocation9 + $0x18] sm:$0xf]
        %v1428 = vld [vmem:[#allocation9 + $0x1c] sm:$0xf]
        %v1429 = vld [vmem:[%s4] sm:$0x1]
        %v1431 = vlaneseq
        %v1432 = vshrl.u32 %v1431, 7
        %v1433 = vsub.s32 0, %v1432
        %v1434 = vrot.slane %v1429, %v1433
        %v1438 = vunpack.c.l.b16 %v1419
        %v1439 = vunpack.c.l.b16 %v1420
        %v1440 = vpack.c.b16 %v1439, %v1438
        %v1449 = vunpack.c.l.b16 %v1421
        %v1450 = vunpack.c.l.b16 %v1422
        %v1451 = vunpack.c.l.b16 %v1423
        %v1452 = vunpack.c.l.b16 %v1424
        %v1453 = vunpack.c.l.b16 %v1425
        %v1454 = vunpack.c.l.b16 %v1426
        %v1455 = vunpack.c.l.b16 %v1427
        %v1456 = vunpack.c.l.b16 %v1428
        %v1457 = vpack.c.b16 %v1450, %v1449
        %v1458 = vpack.c.b16 %v1452, %v1451
        %v1459 = vpack.c.b16 %v1454, %v1453
        %v1460 = vpack.c.b16 %v1456, %v1455
        %vm1465 = vcmask 523264
        %v1467 = vsel %vm1465, %v1440, 0
        %1469 = vmatprep.subr.bf16.mxu0 0
        %1470 = vmatpush1.bf16.msra.mxu0 0
        %1471 = vmatprep.subr.bf16.mxu0 0
        %1472 = vmatpush1.bf16.msra.mxu0 0
        %1473 = vmatprep.subr.bf16.mxu0 0
        %1474 = vmatpush1.bf16.msra.mxu0 0
        %1475 = vmatprep.subr.bf16.mxu0 0
        %1476 = vmatpush1.bf16.msra.mxu0 0
        %1477 = vmatprep.subr.bf16.mxu0 0
        %1478 = vmatpush1.bf16.msra.mxu0 %v1460
        %1479 = vmatprep.subr.bf16.mxu0 0
        %1480 = vmatpush1.bf16.msra.mxu0 %v1459
        %1481 = vmatprep.subr.bf16.mxu0 0
        %1482 = vmatpush1.bf16.msra.mxu0 %v1458
        %1483 = vmatprep.subr.bf16.mxu0 0
        %1484 = vmatpush1.bf16.msra.mxu0 %v1457
        %1485 = vmatprep.subr.bf16.mxu0 0
        %1486 = vmatpush2.bf16.msra.mxu0 0
        %1487 = vmatprep.subr.bf16.mxu0 0
        %1488 = vmatpush2.bf16.msra.mxu0 0
        %1489 = vmatprep.subr.bf16.mxu0 0
        %1490 = vmatpush2.bf16.msra.mxu0 0
        %1491 = vmatprep.subr.bf16.mxu0 0
        %1492 = vmatpush2.bf16.msra.mxu0 0
        %1493 = vmatprep.subr.bf16.mxu0 0
        %1494 = vmatpush2.bf16.msra.mxu0 0
        %1495 = vmatprep.subr.bf16.mxu0 0
        %1496 = vmatpush2.bf16.msra.mxu0 0
        %1497 = vmatprep.subr.bf16.mxu0 0
        %1498 = vmatpush2.bf16.msra.mxu0 0
        %1499 = vmatprep.subr.bf16.mxu0 0
        %1500 = vmatpush2.bf16.msra.mxu0 0
        %1501 = vmatprep.mubr.bf16.mxu0 0
        %1502 = vmatmul.mubr.bf16.gmra.mxu0 %v1467
        %v1503 = vpop.f32.mrf.mxu0
        %v1504 = vadd.f32 %v1434, %v1503
        %v1505 = vpop.f32.mrf.mxu0
        %v1506 = vpop.f32.mrf.mxu0
        %v1507 = vadd.f32 %v1434, %v1506
        %v1508 = vpop.f32.mrf.mxu0
        %1509 = vdwg.mxu0
        %1510 = vst [vmem:[%s313] sm:$0xff] %v1504
        %1511 = vst [vmem:[%s313 + $0x8] sm:$0xff] %v1507
        %s1512 = sand.u32 %s164, 1
        %s1513 = scalar_lea.sflag [#allocation6], %s1512
        %s1514 = sand.u32 %s164, 1
        %s1515 = smul.addr %s1514, 16
        %s1516 = scalar_lea.vmem [#allocation12], %s1515
        // Predicated region
        $region61: #{tpu_custom_call.1} parent=43 // pred_check
          %p1517 = pneg %p174
        $region62: #{tpu_custom_call.1} parent=43 // pred_check_branch
          %1519 = sbr.rel (%p1517) target = $region64
        $region63: #{tpu_custom_call.1} parent=43 // pred_region
          %s1520 = smul.u32 2, %s25
          %s1522 = ssub.s32 256, 256
          %1523 = vsyncadd %s1513, %s1522
          %s1524 = smul.addr %s1520, 128
          %s1525 = scalar_lea.hbm %s6, %s1524
          %s1526 = sshll.u32 %s1516, 4
          %s1527 = int_to_ptr.vmem [resolvable:$true] %s1526
          %1532 = dma.vmem_to_hbm [thread:$0]  %s1527, 256, %s1525, %s1513, 128, 128, 8
        $region64: #{tpu_custom_call.1} parent=43 // pred_fallthru
          _
      $region44: #{tpu_custom_call.1} parent=5 // pred_fallthru
        _
      %p1533 = scmp.le.s32.totalorder 2, %s20
      // Predicated region
      $region65: #{tpu_custom_call.1} parent=5 // pred_check
        %p1534 = pneg %p1533
      $region66: #{tpu_custom_call.1} parent=5 // pred_check_branch
        %1536 = sbr.rel (%p1534) target = $region68
      $region67: #{tpu_custom_call.1} parent=5 // pred_region
        %s1537 = ssub.s32 %s20, 2
        // Predicated region
        $region69: #{tpu_custom_call.1} parent=67 // pred_check
          %p1538 = pneg %p180
        $region70: #{tpu_custom_call.1} parent=67 // pred_check_branch
          %1540 = sbr.rel (%p1538) target = $region72
        $region71: #{tpu_custom_call.1} parent=67 // pred_region
          %s1541 = sand.u32 %s165, 1
          %s1542 = scalar_lea.sflag [#allocation6], %s1541
          %s1543 = sand.u32 %s165, 1
          %s1544 = smul.addr %s1543, 16
          %s1545 = scalar_lea.vmem [#allocation12], %s1544
          %1546 = dma.done %s1542, 256
        $region72: #{tpu_custom_call.1} parent=67 // pred_fallthru
          _
      $region68: #{tpu_custom_call.1} parent=5 // pred_fallthru
        _
    $region6: #{tpu_custom_call.1} parent=1 // loop_footer
      %s24 = sadd.s32 1, %s20
    $region7: #{tpu_custom_call.1} parent=1 // loop_footer_branch
      %19 = sbr.rel target = $region3
    $region8: #{tpu_custom_call.1} parent=1 // loop_exit
      _
    %1547 = vsyncpa [#allocation5], 1
    %s1548 = scalar_lea.sflag [#allocation5], 1
    %1549 = vsyncpa %s1548, 1
    %1550 = vsyncpa [#allocation8], 1
    %1551 = vsyncpa [#allocation11], 1
    %1552 = vsyncpa [#allocation6], 1
    %s1553 = scalar_lea.sflag [#allocation6], 1
    %1554 = vsyncpa %s1553, 1

</llo_original>
